<compile_context>
chip_gen: v6e
topology: v6e:2x2x1
jax: 0.10.0
libtpu: 0.0.40
codegen_flags: <defaults>
</compile_context>

<pallas_src>
import jax
import jax.numpy as jnp
import numpy as np
from jax import lax
from jax.experimental import pallas as pl
from jax.experimental.pallas import tpu as pltpu

K = 4  # Conv1d kernel size for all three convs


def _round_up(a, m):
    return (a + m - 1) // m * m


def dnngp_kernel(x_ref, w1_ref, w2_ref, w3_ref, aux_ref, fcw_ref, fcb_ref, out_ref):
    # x_ref:   (L*Cin, TB)          row = l*Cin + c, batch on lanes
    # w1_ref:  (L1*Cmid, L*Cin)     zero-padded block-Toeplitz conv1 weight
    # w2_ref:  (L2, Cmid, K*Cmid)   conv2 weight, pre-broadcast over output positions
    # w3_ref:  (L3, Cmid, K*Cmid)   conv3 weight, pre-broadcast over output positions
    # aux_ref: (Cmid, 8)  f32       cols: b1, b2, b3, bn_scale, bn_bias, 0, 0, 0
    # fcw_ref: (L3, Cmid) f32       fc weight as [l, c]
    # fcb_ref: (1, 1) in SMEM       fc bias scalar
    # out_ref: (1, TB)              lane-dense output (batch on lanes)
    tb = x_ref.shape[1]
    cmid = aux_ref.shape[0]
    l2 = w2_ref.shape[0]
    l3 = w3_ref.shape[0]
    l1 = w1_ref.shape[0] // cmid
    mm_dtype = w1_ref.dtype

    b1 = aux_ref[:, 0:1]
    b2 = aux_ref[:, 1:2]
    b3 = aux_ref[:, 2:3]
    bn_scale = aux_ref[:, 3:4]
    bn_bias = aux_ref[:, 4:5]

    # ---- conv1: one block-Toeplitz matmul covering every output position (MXU) ----
    y1 = jnp.dot(w1_ref[...], x_ref[...].astype(mm_dtype),
                 preferred_element_type=jnp.float32)            # (L1*Cmid, TB) f32
    h = y1.reshape(l1, cmid, tb)                                 # free relabel (Cmid % 8 == 0)
    # bias + ReLU + Dropout(identity, eval) + folded BatchNorm (f32 epilogue, v5e-safe)
    h = jnp.maximum(h + b1[None], 0.0)
    h = h * bn_scale[None] + bn_bias[None]

    def conv(h_in, w_ref, lout):
        # h_in: (Lin, Cmid, TB) f32 ; w_ref: (Lout, Cmid, K*Cmid)
        hb = h_in.astype(w_ref.dtype)
        # K-tap im2col: leading-axis shifts + whole-vreg sublane concat (offsets k*Cmid).
        xcol = jnp.concatenate([hb[k:k + lout] for k in range(K)], axis=1)  # (Lout, K*Cmid, TB)
        # Batched matmul over output positions: (Cmid, K*Cmid) @ (K*Cmid, TB) per slab.
        return lax.dot_general(
            w_ref[...], xcol,
            dimension_numbers=(((2,), (1,)), ((0,), (0,))),
            preferred_element_type=jnp.float32)                  # (Lout, Cmid, TB) f32

    # ---- conv2 + bias + ReLU + Dropout(identity, eval) ----
    h = conv(h, w2_ref, l2)
    h = jnp.maximum(h + b2[None], 0.0)
    # ---- conv3 + bias + ReLU ----
    h = conv(h, w3_ref, l3)
    h = jnp.maximum(h + b3[None], 0.0)                           # (L3, Cmid, TB) f32

    # ---- Flatten + Linear(out_features=1): VPU multiply + leading/sublane reductions ----
    prod = h * fcw_ref[...][:, :, None]                          # (L3, Cmid, TB)
    fc = jnp.sum(jnp.sum(prod, axis=0), axis=0, keepdims=True)   # (1, TB), lane-dense
    out_ref[...] = (fc + fcb_ref[0, 0]).astype(out_ref.dtype)


def prepare_params(torch_params, matmul_dtype=jnp.bfloat16, eps=1e-5):
    """One-time (param-load) conversion of PyTorch-layout weights into kernel layout."""
    (w1, b1, w2, b2, w3, b3, gamma, beta, rmean, rvar, fcw, fcb) = torch_params
    cmid, cin, k = w1.shape
    assert k == K
    l3 = fcw.shape[1] // cmid
    l2 = l3 + (K - 1)
    l1 = l2 + (K - 1)
    l0 = l1 + (K - 1)        # = in_dim

    # conv1 -> zero-padded block-Toeplitz: W[p*Cmid + o, l*Cin + c] = w1[o, c, l - p].
    w1_okc = np.transpose(np.asarray(w1, np.float32), (0, 2, 1))      # (Cmid, K, Cin)
    w1_np = np.zeros((l1, cmid, l0, cin), np.float32)
    for p in range(l1):
        w1_np[p, :, p:p + K, :] = w1_okc
    w1_toep = jnp.asarray(w1_np.reshape(l1 * cmid, l0 * cin)).astype(matmul_dtype)

    def conv_w_bcast(w, lout):
        # (Cout, Cin, K) -> (Cout, K*Cin), col = k*Cin + c, pre-broadcast over positions
        # so the kernel's batched dot_general needs no in-kernel weight broadcast.
        wp = jnp.transpose(w, (0, 2, 1)).reshape(w.shape[0], -1)
        return jnp.broadcast_to(wp[None], (lout,) + wp.shape).astype(matmul_dtype)

    w2_k = conv_w_bcast(w2, l2)
    w3_k = conv_w_bcast(w3, l3)

    inv = gamma / jnp.sqrt(rvar + eps)
    zeros = jnp.zeros_like(b1)
    aux = jnp.stack([b1, b2, b3, inv, beta - rmean * inv, zeros, zeros, zeros],
                    axis=1).astype(jnp.float32)                        # (Cmid, 8)
    # torch flatten index = c*L3 + l ; kernel wants fcw[l, c]
    fcw_k = fcw.reshape(cmid, l3).T.astype(jnp.float32)                # (L3, Cmid)
    fcb_k = fcb.reshape(1, 1).astype(jnp.float32)
    return (w1_toep, w2_k, w3_k, aux, fcw_k, fcb_k)


def dnngp_forward(x_ncw, kernel_params, *, block_b=512, vmem_limit_bytes=None):
    """x_ncw: (B, nb_classes, L) as in PyTorch. Returns (B, 1) float32."""
    w1_k, w2_k, w3_k, aux, fcw_k, fcb_k = kernel_params
    B, cin, L = x_ncw.shape
    cmid = aux.shape[0]
    mm_dtype = w1_k.dtype

    # (B, Cin, L) -> (L*Cin, B): batch on lanes (lane-dense DMA rows), cast to the matmul
    # dtype on the host (bf16 fast path halves HBM traffic).  See TODO about the producer.
    x_lcb = jnp.transpose(x_ncw, (2, 1, 0)).reshape(L * cin, B).astype(mm_dtype)

    # Batch-tile selection: lane-dense (multiple of 128) once B >= 128; >= 2 grid steps
    # once B > 256 so both v7x TensorCores get work via dimension_semantics=("parallel",).
    if B <= 128:
        tb = _round_up(max(B, 1), 8)
    else:
        target = block_b
        if B > 256:
            target = min(target, _round_up(-(-B // 2), 128))
        tb = _round_up(min(target, B), 128)
    b_pad = _round_up(B, tb)
    if b_pad != B:
        x_lcb = jnp.pad(x_lcb, ((0, 0), (0, b_pad - B)))

    out = pl.pallas_call(
        dnngp_kernel,
        out_shape=jax.ShapeDtypeStruct((1, b_pad), jnp.float32),
        grid_spec=pltpu.PrefetchScalarGridSpec(
            num_scalar_prefetch=0,
            grid=(b_pad // tb,),
            in_specs=[
                pl.BlockSpec((L * cin, tb), lambda i: (0, i)),           # x: batch-tiled
                pl.BlockSpec(w1_k.shape, lambda i: (0, 0)),              # conv1 Toeplitz
                pl.BlockSpec(w2_k.shape, lambda i: (0, 0, 0)),           # conv2 weight
                pl.BlockSpec(w3_k.shape, lambda i: (0, 0, 0)),           # conv3 weight
                pl.BlockSpec(aux.shape, lambda i: (0, 0)),               # biases + BN fold
                pl.BlockSpec(fcw_k.shape, lambda i: (0, 0)),             # fc weight
                pl.BlockSpec((1, 1), lambda i: (0, 0),
                             memory_space=pltpu.MemorySpace.SMEM),       # fc bias scalar
            ],
            out_specs=pl.BlockSpec((1, tb), lambda i: (0, i)),           # lane-dense out
        ),
        compiler_params=pltpu.CompilerParams(
            dimension_semantics=("parallel",),
            vmem_limit_bytes=vmem_limit_bytes,   # raise explicitly for v6e-sized tiles
        ),
    )(x_lcb, w1_k, w2_k, w3_k, aux, fcw_k, fcb_k)
    return out[0, :B].reshape(B, 1)


def dnngp_reference(x_ncw, params):
    """Pure-JAX reference matching PyTorch eval-mode forward."""
    (w1_t, b1_t, w2_t, b2_t, w3_t, b3_t, gamma, beta, rmean, rvar, fcw_t, fcb_t) = params

    def conv1d(x, w, b):  # NCW, OIW weights, VALID
        y = lax.conv_general_dilated(x, w, window_strides=(1,), padding='VALID',
                                     dimension_numbers=('NCH', 'OIH', 'NCH'))
        return y + b[None, :, None]

    eps = 1e-5
    h = jnp.maximum(conv1d(x_ncw, w1_t, b1_t), 0.0)
    h = (h - rmean[None, :, None]) / jnp.sqrt(rvar[None, :, None] + eps)
    h = h * gamma[None, :, None] + beta[None, :, None]
    h = jnp.maximum(conv1d(h, w2_t, b2_t), 0.0)
    h = jnp.maximum(conv1d(h, w3_t, b3_t), 0.0)
    flat = h.reshape(h.shape[0], -1)          # channel-major flatten, like torch
    return flat @ fcw_t.T + fcb_t[None, :]


if __name__ == "__main__":
    B, nb_classes, L = 2, 4, 16   # in_dim = 16 -> after three convs: 7 -> fc in = 7*64
    Cmid = 64
    L3 = L - 9

    key = jax.random.PRNGKey(0)
    ks = jax.random.split(key, 13)
    n = lambda k, s, sc=0.05: sc * jax.random.normal(k, s, dtype=jnp.float32)

    w1_t = n(ks[0], (Cmid, nb_classes, K), 0.1)
    b1_t = n(ks[1], (Cmid,), 0.1)
    w2_t = n(ks[2], (Cmid, Cmid, K))
    b2_t = n(ks[3], (Cmid,), 0.1)
    w3_t = n(ks[4], (Cmid, Cmid, K))
    b3_t = n(ks[5], (Cmid,), 0.1)
    gamma = 1.0 + n(ks[6], (Cmid,), 0.1)
    beta = n(ks[7], (Cmid,), 0.1)
    rmean = n(ks[8], (Cmid,), 0.1)
    rvar = 1.0 + jnp.abs(n(ks[9], (Cmid,), 0.1))
    fcw_t = n(ks[10], (1, Cmid * L3))
    fcb_t = n(ks[11], (1,), 0.1)
    params = (w1_t, b1_t, w2_t, b2_t, w3_t, b3_t, gamma, beta, rmean, rvar, fcw_t, fcb_t)

    x = jax.random.normal(ks[12], (B, nb_classes, L), dtype=jnp.float32)
    ref = dnngp_reference(x, params)

    # Exact f32 matmul path (tight tolerance) and bf16-operand MXU fast path (bf16 tolerance).
    for mm_dtype, tol in ((jnp.float32, 1e-4), (jnp.bfloat16, 5e-2)):
        kp = prepare_params(params, matmul_dtype=mm_dtype)
        out = jax.block_until_ready(dnngp_forward(x, kp))
        assert out.shape == (B, 1)
        np.testing.assert_allclose(np.asarray(out), np.asarray(ref), rtol=tol, atol=tol)

    # Multi-tile batch-grid path: exercises padding, lane-dense 128-wide tiles and the
    # >= 2-grid-step rule (pipelined batch tiles / megacore sharding).
    Bbig = 260
    xb = jax.random.normal(jax.random.PRNGKey(1), (Bbig, nb_classes, L), dtype=jnp.float32)
    kp = prepare_params(params, matmul_dtype=jnp.bfloat16)
    outb = jax.block_until_ready(dnngp_forward(xb, kp, block_b=128))
    refb = dnngp_reference(xb, params)
    assert outb.shape == (Bbig, 1)
    np.testing.assert_allclose(np.asarray(outb), np.asarray(refb), rtol=5e-2, atol=5e-2)

    print("KERNEL_OK")
</pallas_src>

<mosaic_0001>
module attributes {stable_mosaic.version = 11 : i64} {
  func.func @dnngp_kernel(%arg0: i32, %arg1: memref<64x8xf32, #tpu.memory_space<vmem>>, %arg2: memref<832x64xf32, #tpu.memory_space<vmem>>, %arg3: memref<10x64x256xf32, #tpu.memory_space<vmem>>, %arg4: memref<7x64x256xf32, #tpu.memory_space<vmem>>, %arg5: memref<64x8xf32, #tpu.memory_space<vmem>>, %arg6: memref<7x64xf32, #tpu.memory_space<vmem>>, %arg7: memref<1x1xf32, #tpu.memory_space<smem>>, %arg8: memref<1x8xf32, #tpu.memory_space<vmem>>) attributes {dimension_semantics = [#tpu.dimension_semantics<parallel>], iteration_bounds = array<i64: 1>, scalar_prefetch = 0 : i64, scratch_operands = 0 : i64, tpu.core_type = #tpu.core_type<tc>, window_params = [{transform_indices = @transform_0, window_bounds = array<i64: 64, 8>}, {pipeline_mode = #tpu.pipeline_mode<synchronous>, transform_indices = @transform_1, window_bounds = array<i64: 832, 64>}, {pipeline_mode = #tpu.pipeline_mode<synchronous>, transform_indices = @transform_2, window_bounds = array<i64: 10, 64, 256>}, {pipeline_mode = #tpu.pipeline_mode<synchronous>, transform_indices = @transform_3, window_bounds = array<i64: 7, 64, 256>}, {pipeline_mode = #tpu.pipeline_mode<synchronous>, transform_indices = @transform_4, window_bounds = array<i64: 64, 8>}, {pipeline_mode = #tpu.pipeline_mode<synchronous>, transform_indices = @transform_5, window_bounds = array<i64: 7, 64>}, {transform_indices = @transform_6, window_bounds = array<i64: 1, 1>}, {transform_indices = @transform_7, window_bounds = array<i64: 1, 8>}]} {
    %c0 = arith.constant 0 : index
    %c0_0 = arith.constant 0 : index
    %0 = vector.load %arg5[%c0, %c0_0] : memref<64x8xf32, #tpu.memory_space<vmem>>, vector<64x1xf32>
    %c0_1 = arith.constant 0 : index
    %c1 = arith.constant 1 : index
    %1 = vector.load %arg5[%c0_1, %c1] : memref<64x8xf32, #tpu.memory_space<vmem>>, vector<64x1xf32>
    %c0_2 = arith.constant 0 : index
    %c2 = arith.constant 2 : index
    %2 = vector.load %arg5[%c0_2, %c2] : memref<64x8xf32, #tpu.memory_space<vmem>>, vector<64x1xf32>
    %c0_3 = arith.constant 0 : index
    %c3 = arith.constant 3 : index
    %3 = vector.load %arg5[%c0_3, %c3] : memref<64x8xf32, #tpu.memory_space<vmem>>, vector<64x1xf32>
    %c0_4 = arith.constant 0 : index
    %c4 = arith.constant 4 : index
    %4 = vector.load %arg5[%c0_4, %c4] : memref<64x8xf32, #tpu.memory_space<vmem>>, vector<64x1xf32>
    %c0_5 = arith.constant 0 : index
    %c0_6 = arith.constant 0 : index
    %5 = vector.load %arg2[%c0_5, %c0_6] : memref<832x64xf32, #tpu.memory_space<vmem>>, vector<832x64xf32>
    %c0_7 = arith.constant 0 : index
    %c0_8 = arith.constant 0 : index
    %6 = vector.load %arg1[%c0_7, %c0_8] : memref<64x8xf32, #tpu.memory_space<vmem>>, vector<64x8xf32>
    %cst = arith.constant dense<0.000000e+00> : vector<832x8xf32>
    %7 = tpu.matmul %5, %6, %cst {dimension_numbers = #tpu.dot_dimension_numbers<[1], [0], [0], [1], [0, 0, 1, 1], [], []>} : vector<832x64xf32>, vector<64x8xf32>, vector<832x8xf32> -> vector<832x8xf32>
    %8 = vector.shape_cast %7 : vector<832x8xf32> to vector<13x64x8xf32>
    %9 = vector.shape_cast %0 : vector<64x1xf32> to vector<1x64x1xf32>
    %10 = vector.broadcast %9 : vector<1x64x1xf32> to vector<13x64x8xf32>
    %11 = arith.addf %8, %10 : vector<13x64x8xf32>
    %cst_9 = arith.constant 0.000000e+00 : f32
    %12 = vector.broadcast %cst_9 : f32 to vector<13x64x8xf32>
    %13 = arith.maximumf %11, %12 : vector<13x64x8xf32>
    %14 = vector.shape_cast %3 : vector<64x1xf32> to vector<1x64x1xf32>
    %15 = vector.broadcast %14 : vector<1x64x1xf32> to vector<13x64x8xf32>
    %16 = arith.mulf %13, %15 : vector<13x64x8xf32>
    %17 = vector.shape_cast %4 : vector<64x1xf32> to vector<1x64x1xf32>
    %18 = vector.broadcast %17 : vector<1x64x1xf32> to vector<13x64x8xf32>
    %19 = arith.addf %16, %18 : vector<13x64x8xf32>
    %20 = vector.extract_strided_slice %19 {offsets = [0, 0, 0], sizes = [10, 64, 8], strides = [1, 1, 1]} : vector<13x64x8xf32> to vector<10x64x8xf32>
    %21 = vector.extract_strided_slice %19 {offsets = [1, 0, 0], sizes = [10, 64, 8], strides = [1, 1, 1]} : vector<13x64x8xf32> to vector<10x64x8xf32>
    %22 = vector.extract_strided_slice %19 {offsets = [2, 0, 0], sizes = [10, 64, 8], strides = [1, 1, 1]} : vector<13x64x8xf32> to vector<10x64x8xf32>
    %23 = vector.extract_strided_slice %19 {offsets = [3, 0, 0], sizes = [10, 64, 8], strides = [1, 1, 1]} : vector<13x64x8xf32> to vector<10x64x8xf32>
    %24 = tpu.concatenate %20, %21, %22, %23 in 1 : vector<10x64x8xf32>, vector<10x64x8xf32>, vector<10x64x8xf32>, vector<10x64x8xf32> -> vector<10x256x8xf32>
    %c0_10 = arith.constant 0 : index
    %c0_11 = arith.constant 0 : index
    %c0_12 = arith.constant 0 : index
    %25 = vector.load %arg3[%c0_10, %c0_11, %c0_12] : memref<10x64x256xf32, #tpu.memory_space<vmem>>, vector<10x64x256xf32>
    %cst_13 = arith.constant dense<0.000000e+00> : vector<10x64x8xf32>
    %26 = tpu.matmul %25, %24, %cst_13 {dimension_numbers = #tpu.dot_dimension_numbers<[2], [1], [1], [2], [0, 0, 0, 1, 1, 2], [0], [0]>} : vector<10x64x256xf32>, vector<10x256x8xf32>, vector<10x64x8xf32> -> vector<10x64x8xf32>
    %27 = vector.shape_cast %1 : vector<64x1xf32> to vector<1x64x1xf32>
    %28 = vector.broadcast %27 : vector<1x64x1xf32> to vector<10x64x8xf32>
    %29 = arith.addf %26, %28 : vector<10x64x8xf32>
    %cst_14 = arith.constant 0.000000e+00 : f32
    %30 = vector.broadcast %cst_14 : f32 to vector<10x64x8xf32>
    %31 = arith.maximumf %29, %30 : vector<10x64x8xf32>
    %32 = vector.extract_strided_slice %31 {offsets = [0, 0, 0], sizes = [7, 64, 8], strides = [1, 1, 1]} : vector<10x64x8xf32> to vector<7x64x8xf32>
    %33 = vector.extract_strided_slice %31 {offsets = [1, 0, 0], sizes = [7, 64, 8], strides = [1, 1, 1]} : vector<10x64x8xf32> to vector<7x64x8xf32>
    %34 = vector.extract_strided_slice %31 {offsets = [2, 0, 0], sizes = [7, 64, 8], strides = [1, 1, 1]} : vector<10x64x8xf32> to vector<7x64x8xf32>
    %35 = vector.extract_strided_slice %31 {offsets = [3, 0, 0], sizes = [7, 64, 8], strides = [1, 1, 1]} : vector<10x64x8xf32> to vector<7x64x8xf32>
    %36 = tpu.concatenate %32, %33, %34, %35 in 1 : vector<7x64x8xf32>, vector<7x64x8xf32>, vector<7x64x8xf32>, vector<7x64x8xf32> -> vector<7x256x8xf32>
    %c0_15 = arith.constant 0 : index
    %c0_16 = arith.constant 0 : index
    %c0_17 = arith.constant 0 : index
    %37 = vector.load %arg4[%c0_15, %c0_16, %c0_17] : memref<7x64x256xf32, #tpu.memory_space<vmem>>, vector<7x64x256xf32>
    %cst_18 = arith.constant dense<0.000000e+00> : vector<7x64x8xf32>
    %38 = tpu.matmul %37, %36, %cst_18 {dimension_numbers = #tpu.dot_dimension_numbers<[2], [1], [1], [2], [0, 0, 0, 1, 1, 2], [0], [0]>} : vector<7x64x256xf32>, vector<7x256x8xf32>, vector<7x64x8xf32> -> vector<7x64x8xf32>
    %39 = vector.shape_cast %2 : vector<64x1xf32> to vector<1x64x1xf32>
    %40 = vector.broadcast %39 : vector<1x64x1xf32> to vector<7x64x8xf32>
    %41 = arith.addf %38, %40 : vector<7x64x8xf32>
    %cst_19 = arith.constant 0.000000e+00 : f32
    %42 = vector.broadcast %cst_19 : f32 to vector<7x64x8xf32>
    %43 = arith.maximumf %41, %42 : vector<7x64x8xf32>
    %c0_20 = arith.constant 0 : index
    %c0_21 = arith.constant 0 : index
    %44 = vector.load %arg6[%c0_20, %c0_21] : memref<7x64xf32, #tpu.memory_space<vmem>>, vector<7x64xf32>
    %45 = vector.shape_cast %44 : vector<7x64xf32> to vector<7x64x1xf32>
    %46 = vector.broadcast %45 : vector<7x64x1xf32> to vector<7x64x8xf32>
    %47 = arith.mulf %43, %46 : vector<7x64x8xf32>
    %cst_22 = arith.constant dense<0.000000e+00> : vector<64x8xf32>
    %48 = vector.multi_reduction <add>, %47, %cst_22 [0] : vector<7x64x8xf32> to vector<64x8xf32>
    %cst_23 = arith.constant dense<0.000000e+00> : vector<8xf32>
    %49 = vector.multi_reduction <add>, %48, %cst_23 [0] : vector<64x8xf32> to vector<8xf32>
    %50 = vector.shape_cast %49 : vector<8xf32> to vector<1x8xf32>
    %c0_24 = arith.constant 0 : index
    %c0_25 = arith.constant 0 : index
    %51 = memref.load %arg7[%c0_24, %c0_25] : memref<1x1xf32, #tpu.memory_space<smem>>
    %52 = vector.broadcast %51 : f32 to vector<1x8xf32>
    %53 = arith.addf %50, %52 : vector<1x8xf32>
    %c0_26 = arith.constant 0 : index
    %c0_27 = arith.constant 0 : index
    %54 = vector.load %arg8[%c0_26, %c0_27] : memref<1x8xf32, #tpu.memory_space<vmem>>, vector<1x8xf32>
    tpu.vector_store %arg8[%c0_26, %c0_27], %53 {strides = array<i32>} : memref<1x8xf32, #tpu.memory_space<vmem>>, vector<1x8xf32>,
    return
  }
  func.func @transform_0(%arg0: i32) -> (i32, i32) {
    %c0_i32 = arith.constant 0 : i32
    %c0_i32_0 = arith.constant 0 : i32
    return %c0_i32, %arg0 : i32, i32
  }
  func.func @transform_1(%arg0: i32) -> (i32, i32) {
    %c0_i32 = arith.constant 0 : i32
    %c0_i32_0 = arith.constant 0 : i32
    %c0_i32_1 = arith.constant 0 : i32
    return %c0_i32, %c0_i32_0 : i32, i32
  }
  func.func @transform_2(%arg0: i32) -> (i32, i32, i32) {
    %c0_i32 = arith.constant 0 : i32
    %c0_i32_0 = arith.constant 0 : i32
    %c0_i32_1 = arith.constant 0 : i32
    %c0_i32_2 = arith.constant 0 : i32
    return %c0_i32, %c0_i32_0, %c0_i32_1 : i32, i32, i32
  }
  func.func @transform_3(%arg0: i32) -> (i32, i32, i32) {
    %c0_i32 = arith.constant 0 : i32
    %c0_i32_0 = arith.constant 0 : i32
    %c0_i32_1 = arith.constant 0 : i32
    %c0_i32_2 = arith.constant 0 : i32
    return %c0_i32, %c0_i32_0, %c0_i32_1 : i32, i32, i32
  }
  func.func @transform_4(%arg0: i32) -> (i32, i32) {
    %c0_i32 = arith.constant 0 : i32
    %c0_i32_0 = arith.constant 0 : i32
    %c0_i32_1 = arith.constant 0 : i32
    return %c0_i32, %c0_i32_0 : i32, i32
  }
  func.func @transform_5(%arg0: i32) -> (i32, i32) {
    %c0_i32 = arith.constant 0 : i32
    %c0_i32_0 = arith.constant 0 : i32
    %c0_i32_1 = arith.constant 0 : i32
    return %c0_i32, %c0_i32_0 : i32, i32
  }
  func.func @transform_6(%arg0: i32) -> (i32, i32) {
    %c0_i32 = arith.constant 0 : i32
    %c0_i32_0 = arith.constant 0 : i32
    %c0_i32_1 = arith.constant 0 : i32
    return %c0_i32, %c0_i32_0 : i32, i32
  }
  func.func @transform_7(%arg0: i32) -> (i32, i32) {
    %c0_i32 = arith.constant 0 : i32
    %c0_i32_0 = arith.constant 0 : i32
    return %c0_i32, %arg0 : i32, i32
  }
}

</mosaic_0001>

<llo_original>
// kernel: tpu_custom_call.1
$region0: #{tpu_custom_call.1}
  #allocation0 [shape = 'u32[]', space=smem, size = 0x4, offset = 0x4, fixed_abs, tag = 'smem constant byte address 0x4 - core index']
  #allocation1 [shape = 'u32[144,128]{1,0:T(1,128)}', space=vmem, size = 0x12000, scoped, tag = 'internal scratch']
  #allocation2 [shape = 'f32[1,1]{1,0:T(1,128)S(6)}', space=smem, size = 0x200, scoped, tag = 'scoped memory for tpu_custom_call.1']
  %s0 = inlined_call_operand.vmem [shape: f32[64,8], index: 0, kind: input, shape index: {}]
  %s1 = inlined_call_operand.vmem [shape: f32[832,64], index: 1, kind: input, shape index: {}]
  %s2 = inlined_call_operand.vmem [shape: f32[10,64,256], index: 2, kind: input, shape index: {}]
  %s3 = inlined_call_operand.hbm [shape: f32[7,64,256], index: 3, kind: input, shape index: {}]
  %s4 = inlined_call_operand.vmem [shape: f32[64,8], index: 4, kind: input, shape index: {}]
  %s5 = inlined_call_operand.vmem [shape: f32[7,64], index: 5, kind: input, shape index: {}]
  %s6 = inlined_call_operand.<no memory space> [shape: f32[1,1], index: 6, kind: input, shape index: {}]
  %s7 = inlined_call_operand.hbm [shape: f32[1,8], index: 7, kind: output, shape index: {}]
  %s8 = sld [smem:[#allocation0]]
  $region42: #{tpu_custom_call.1} parent=0
    _
  %s10 = ssub.s32 1, %s8
  %s11 = scalar_select 0, %s10, %s8
  %12 = sst [smem:[#allocation2]] %s6
  $region1: #{tpu_custom_call.1} parent=0
    #allocation3 [shape = 'u8[458752]{0}', space=vmem, size = 0x70000, scoped, tag = 'input window, operand 3, single buffered']
    #allocation4 [shape = 's32[1]{0}', space=sflag, size = 0x4, scoped, tag = 'scoped memory for tpu_custom_call.1']
    #allocation5 [shape = 's32[1]{0}', space=sflag, size = 0x4, scoped, tag = 'scoped memory for tpu_custom_call.1']
    #allocation6 [shape = 'u8[512]{0}', space=vmem, size = 0x400, scoped, tag = 'output window, operand 0, single buffered']
    %13 = vsyncpa [#allocation4], 0
    %14 = vsyncpa [#allocation5], 0
    // Predicated region
    $region2: #{tpu_custom_call.1} parent=1 // pred_check
      _
    $region3: #{tpu_custom_call.1} parent=1 // pred_check_branch
      %16 = sbr.rel (0) target = $region5
    $region4: #{tpu_custom_call.1} parent=1 // pred_region
      _
    $region5: #{tpu_custom_call.1} parent=1 // pred_fallthru
      _
    // Predicated region
    $region6: #{tpu_custom_call.1} parent=1 // pred_check
      _
    $region7: #{tpu_custom_call.1} parent=1 // pred_check_branch
      %18 = sbr.rel (0) target = $region9
    $region8: #{tpu_custom_call.1} parent=1 // pred_region
      _
    $region9: #{tpu_custom_call.1} parent=1 // pred_fallthru
      _
    // Predicated region
    $region10: #{tpu_custom_call.1} parent=1 // pred_check
      _
    $region11: #{tpu_custom_call.1} parent=1 // pred_check_branch
      %20 = sbr.rel (0) target = $region13
    $region12: #{tpu_custom_call.1} parent=1 // pred_region
      _
    $region13: #{tpu_custom_call.1} parent=1 // pred_fallthru
      _
    // Predicated region
    $region14: #{tpu_custom_call.1} parent=1 // pred_check
      _
    $region15: #{tpu_custom_call.1} parent=1 // pred_check_branch
      %22 = sbr.rel (0) target = $region17
    $region16: #{tpu_custom_call.1} parent=1 // pred_region
      %s24 = ssub.s32 14336, 14336
      %25 = vsyncadd [#allocation4], %s24
      %s26 = sshll.u32 [#allocation3], 4
      %s27 = int_to_ptr.vmem [resolvable:$true] %s26
      %32 = dma.hbm_to_vmem [thread:$0]  %s3, 14336, %s27, [#allocation4], 256, 256, 16
    $region17: #{tpu_custom_call.1} parent=1 // pred_fallthru
      _
    // Predicated region
    $region18: #{tpu_custom_call.1} parent=1 // pred_check
      _
    $region19: #{tpu_custom_call.1} parent=1 // pred_check_branch
      %34 = sbr.rel (0) target = $region21
    $region20: #{tpu_custom_call.1} parent=1 // pred_region
      _
    $region21: #{tpu_custom_call.1} parent=1 // pred_fallthru
      _
    // Predicated region
    $region22: #{tpu_custom_call.1} parent=1 // pred_check
      _
    $region23: #{tpu_custom_call.1} parent=1 // pred_check_branch
      %36 = sbr.rel (0) target = $region25
    $region24: #{tpu_custom_call.1} parent=1 // pred_region
      _
    $region25: #{tpu_custom_call.1} parent=1 // pred_fallthru
      _
    // Predicated region
    $region26: #{tpu_custom_call.1} parent=1 // pred_check
      _
    $region27: #{tpu_custom_call.1} parent=1 // pred_check_branch
      %38 = sbr.rel (0) target = $region29
    $region28: #{tpu_custom_call.1} parent=1 // pred_region
      _
    $region29: #{tpu_custom_call.1} parent=1 // pred_fallthru
      _
    // Predicated region
    $region30: #{tpu_custom_call.1} parent=1 // pred_check
      _
    $region31: #{tpu_custom_call.1} parent=1 // pred_check_branch
      %40 = sbr.rel (0) target = $region33
    $region32: #{tpu_custom_call.1} parent=1 // pred_region
      %41 = dma.done [#allocation4], 14336
    $region33: #{tpu_custom_call.1} parent=1 // pred_fallthru
      _
    %v42 = vld [vmem:[%s4] sm:$0xff]
    %v43 = vld [vmem:[%s4 + $0x8] sm:$0xff]
    %v44 = vld [vmem:[%s4 + $0x10] sm:$0xff]
    %v45 = vld [vmem:[%s4 + $0x18] sm:$0xff]
    %v46 = vld [vmem:[%s4 + $0x20] sm:$0xff]
    %v47 = vld [vmem:[%s4 + $0x28] sm:$0xff]
    %v48 = vld [vmem:[%s4 + $0x30] sm:$0xff]
    %v49 = vld [vmem:[%s4 + $0x38] sm:$0xff]
    %v50 = vld [vmem:[%s1] sm:$0xff]
    %v51 = vld [vmem:[%s1 + $0x8] sm:$0xff]
    %v52 = vld [vmem:[%s1 + $0x10] sm:$0xff]
    %v53 = vld [vmem:[%s1 + $0x18] sm:$0xff]
    %v54 = vld [vmem:[%s1 + $0x20] sm:$0xff]
    %v55 = vld [vmem:[%s1 + $0x28] sm:$0xff]
    %v56 = vld [vmem:[%s1 + $0x30] sm:$0xff]
    %v57 = vld [vmem:[%s1 + $0x38] sm:$0xff]
    %v58 = vld [vmem:[%s1 + $0x40] sm:$0xff]
    %v59 = vld [vmem:[%s1 + $0x48] sm:$0xff]
    %v60 = vld [vmem:[%s1 + $0x50] sm:$0xff]
    %v61 = vld [vmem:[%s1 + $0x58] sm:$0xff]
    %v62 = vld [vmem:[%s1 + $0x60] sm:$0xff]
    %v63 = vld [vmem:[%s1 + $0x68] sm:$0xff]
    %v64 = vld [vmem:[%s1 + $0x70] sm:$0xff]
    %v65 = vld [vmem:[%s1 + $0x78] sm:$0xff]
    %v66 = vld [vmem:[%s1 + $0x80] sm:$0xff]
    %v67 = vld [vmem:[%s1 + $0x88] sm:$0xff]
    %v68 = vld [vmem:[%s1 + $0x90] sm:$0xff]
    %v69 = vld [vmem:[%s1 + $0x98] sm:$0xff]
    %v70 = vld [vmem:[%s1 + $0xa0] sm:$0xff]
    %v71 = vld [vmem:[%s1 + $0xa8] sm:$0xff]
    %v72 = vld [vmem:[%s1 + $0xb0] sm:$0xff]
    %v73 = vld [vmem:[%s1 + $0xb8] sm:$0xff]
    %v74 = vld [vmem:[%s1 + $0xc0] sm:$0xff]
    %v75 = vld [vmem:[%s1 + $0xc8] sm:$0xff]
    %v76 = vld [vmem:[%s1 + $0xd0] sm:$0xff]
    %v77 = vld [vmem:[%s1 + $0xd8] sm:$0xff]
    %v78 = vld [vmem:[%s1 + $0xe0] sm:$0xff]
    %v79 = vld [vmem:[%s1 + $0xe8] sm:$0xff]
    %v80 = vld [vmem:[%s1 + $0xf0] sm:$0xff]
    %v81 = vld [vmem:[%s1 + $0xf8] sm:$0xff]
    %v82 = vld [vmem:[%s1 + $0x100] sm:$0xff]
    %v83 = vld [vmem:[%s1 + $0x108] sm:$0xff]
    %v84 = vld [vmem:[%s1 + $0x110] sm:$0xff]
    %v85 = vld [vmem:[%s1 + $0x118] sm:$0xff]
    %v86 = vld [vmem:[%s1 + $0x120] sm:$0xff]
    %v87 = vld [vmem:[%s1 + $0x128] sm:$0xff]
    %v88 = vld [vmem:[%s1 + $0x130] sm:$0xff]
    %v89 = vld [vmem:[%s1 + $0x138] sm:$0xff]
    %v90 = vld [vmem:[%s1 + $0x140] sm:$0xff]
    %v91 = vld [vmem:[%s1 + $0x148] sm:$0xff]
    %v92 = vld [vmem:[%s1 + $0x150] sm:$0xff]
    %v93 = vld [vmem:[%s1 + $0x158] sm:$0xff]
    %v94 = vld [vmem:[%s1 + $0x160] sm:$0xff]
    %v95 = vld [vmem:[%s1 + $0x168] sm:$0xff]
    %v96 = vld [vmem:[%s1 + $0x170] sm:$0xff]
    %v97 = vld [vmem:[%s1 + $0x178] sm:$0xff]
    %v98 = vld [vmem:[%s1 + $0x180] sm:$0xff]
    %v99 = vld [vmem:[%s1 + $0x188] sm:$0xff]
    %v100 = vld [vmem:[%s1 + $0x190] sm:$0xff]
    %v101 = vld [vmem:[%s1 + $0x198] sm:$0xff]
    %v102 = vld [vmem:[%s1 + $0x1a0] sm:$0xff]
    %v103 = vld [vmem:[%s1 + $0x1a8] sm:$0xff]
    %v104 = vld [vmem:[%s1 + $0x1b0] sm:$0xff]
    %v105 = vld [vmem:[%s1 + $0x1b8] sm:$0xff]
    %v106 = vld [vmem:[%s1 + $0x1c0] sm:$0xff]
    %v107 = vld [vmem:[%s1 + $0x1c8] sm:$0xff]
    %v108 = vld [vmem:[%s1 + $0x1d0] sm:$0xff]
    %v109 = vld [vmem:[%s1 + $0x1d8] sm:$0xff]
    %v110 = vld [vmem:[%s1 + $0x1e0] sm:$0xff]
    %v111 = vld [vmem:[%s1 + $0x1e8] sm:$0xff]
    %v112 = vld [vmem:[%s1 + $0x1f0] sm:$0xff]
    %v113 = vld [vmem:[%s1 + $0x1f8] sm:$0xff]
    %v114 = vld [vmem:[%s1 + $0x200] sm:$0xff]
    %v115 = vld [vmem:[%s1 + $0x208] sm:$0xff]
    %v116 = vld [vmem:[%s1 + $0x210] sm:$0xff]
    %v117 = vld [vmem:[%s1 + $0x218] sm:$0xff]
    %v118 = vld [vmem:[%s1 + $0x220] sm:$0xff]
    %v119 = vld [vmem:[%s1 + $0x228] sm:$0xff]
    %v120 = vld [vmem:[%s1 + $0x230] sm:$0xff]
    %v121 = vld [vmem:[%s1 + $0x238] sm:$0xff]
    %v122 = vld [vmem:[%s1 + $0x240] sm:$0xff]
    %v123 = vld [vmem:[%s1 + $0x248] sm:$0xff]
    %v124 = vld [vmem:[%s1 + $0x250] sm:$0xff]
    %v125 = vld [vmem:[%s1 + $0x258] sm:$0xff]
    %v126 = vld [vmem:[%s1 + $0x260] sm:$0xff]
    %v127 = vld [vmem:[%s1 + $0x268] sm:$0xff]
    %v128 = vld [vmem:[%s1 + $0x270] sm:$0xff]
    %v129 = vld [vmem:[%s1 + $0x278] sm:$0xff]
    %v130 = vld [vmem:[%s1 + $0x280] sm:$0xff]
    %v131 = vld [vmem:[%s1 + $0x288] sm:$0xff]
    %v132 = vld [vmem:[%s1 + $0x290] sm:$0xff]
    %v133 = vld [vmem:[%s1 + $0x298] sm:$0xff]
    %v134 = vld [vmem:[%s1 + $0x2a0] sm:$0xff]
    %v135 = vld [vmem:[%s1 + $0x2a8] sm:$0xff]
    %v136 = vld [vmem:[%s1 + $0x2b0] sm:$0xff]
    %v137 = vld [vmem:[%s1 + $0x2b8] sm:$0xff]
    %v138 = vld [vmem:[%s1 + $0x2c0] sm:$0xff]
    %v139 = vld [vmem:[%s1 + $0x2c8] sm:$0xff]
    %v140 = vld [vmem:[%s1 + $0x2d0] sm:$0xff]
    %v141 = vld [vmem:[%s1 + $0x2d8] sm:$0xff]
    %v142 = vld [vmem:[%s1 + $0x2e0] sm:$0xff]
    %v143 = vld [vmem:[%s1 + $0x2e8] sm:$0xff]
    %v144 = vld [vmem:[%s1 + $0x2f0] sm:$0xff]
    %v145 = vld [vmem:[%s1 + $0x2f8] sm:$0xff]
    %v146 = vld [vmem:[%s1 + $0x300] sm:$0xff]
    %v147 = vld [vmem:[%s1 + $0x308] sm:$0xff]
    %v148 = vld [vmem:[%s1 + $0x310] sm:$0xff]
    %v149 = vld [vmem:[%s1 + $0x318] sm:$0xff]
    %v150 = vld [vmem:[%s1 + $0x320] sm:$0xff]
    %v151 = vld [vmem:[%s1 + $0x328] sm:$0xff]
    %v152 = vld [vmem:[%s1 + $0x330] sm:$0xff]
    %v153 = vld [vmem:[%s1 + $0x338] sm:$0xff]
    %v154 = vld [vmem:[%s0] sm:$0xff]
    %v155 = vld [vmem:[%s0 + $0x8] sm:$0xff]
    %v156 = vld [vmem:[%s0 + $0x10] sm:$0xff]
    %v157 = vld [vmem:[%s0 + $0x18] sm:$0xff]
    %v158 = vld [vmem:[%s0 + $0x20] sm:$0xff]
    %v159 = vld [vmem:[%s0 + $0x28] sm:$0xff]
    %v160 = vld [vmem:[%s0 + $0x30] sm:$0xff]
    %v161 = vld [vmem:[%s0 + $0x38] sm:$0xff]
    %vm162 = vcmask 523264
    %v164 = vsel %vm162, %v50, 0
    %v167 = vsel %vm162, %v51, 0
    %v170 = vsel %vm162, %v52, 0
    %v173 = vsel %vm162, %v53, 0
    %v176 = vsel %vm162, %v54, 0
    %v179 = vsel %vm162, %v55, 0
    %v182 = vsel %vm162, %v56, 0
    %v185 = vsel %vm162, %v57, 0
    %v188 = vsel %vm162, %v58, 0
    %v191 = vsel %vm162, %v59, 0
    %v194 = vsel %vm162, %v60, 0
    %v197 = vsel %vm162, %v61, 0
    %v200 = vsel %vm162, %v62, 0
    %v203 = vsel %vm162, %v63, 0
    %v206 = vsel %vm162, %v64, 0
    %v209 = vsel %vm162, %v65, 0
    %v212 = vsel %vm162, %v66, 0
    %v215 = vsel %vm162, %v67, 0
    %v218 = vsel %vm162, %v68, 0
    %v221 = vsel %vm162, %v69, 0
    %v224 = vsel %vm162, %v70, 0
    %v227 = vsel %vm162, %v71, 0
    %v230 = vsel %vm162, %v72, 0
    %v233 = vsel %vm162, %v73, 0
    %v236 = vsel %vm162, %v74, 0
    %v239 = vsel %vm162, %v75, 0
    %v242 = vsel %vm162, %v76, 0
    %v245 = vsel %vm162, %v77, 0
    %v248 = vsel %vm162, %v78, 0
    %v251 = vsel %vm162, %v79, 0
    %v254 = vsel %vm162, %v80, 0
    %v257 = vsel %vm162, %v81, 0
    %v260 = vsel %vm162, %v82, 0
    %v263 = vsel %vm162, %v83, 0
    %v266 = vsel %vm162, %v84, 0
    %v269 = vsel %vm162, %v85, 0
    %v272 = vsel %vm162, %v86, 0
    %v275 = vsel %vm162, %v87, 0
    %v278 = vsel %vm162, %v88, 0
    %v281 = vsel %vm162, %v89, 0
    %v284 = vsel %vm162, %v90, 0
    %v287 = vsel %vm162, %v91, 0
    %v290 = vsel %vm162, %v92, 0
    %v293 = vsel %vm162, %v93, 0
    %v296 = vsel %vm162, %v94, 0
    %v299 = vsel %vm162, %v95, 0
    %v302 = vsel %vm162, %v96, 0
    %v305 = vsel %vm162, %v97, 0
    %v308 = vsel %vm162, %v98, 0
    %v311 = vsel %vm162, %v99, 0
    %v314 = vsel %vm162, %v100, 0
    %v317 = vsel %vm162, %v101, 0
    %v320 = vsel %vm162, %v102, 0
    %v323 = vsel %vm162, %v103, 0
    %v326 = vsel %vm162, %v104, 0
    %v329 = vsel %vm162, %v105, 0
    %v332 = vsel %vm162, %v106, 0
    %v335 = vsel %vm162, %v107, 0
    %v338 = vsel %vm162, %v108, 0
    %v341 = vsel %vm162, %v109, 0
    %v344 = vsel %vm162, %v110, 0
    %v347 = vsel %vm162, %v111, 0
    %v350 = vsel %vm162, %v112, 0
    %v353 = vsel %vm162, %v113, 0
    %v356 = vsel %vm162, %v114, 0
    %v359 = vsel %vm162, %v115, 0
    %v362 = vsel %vm162, %v116, 0
    %v365 = vsel %vm162, %v117, 0
    %v368 = vsel %vm162, %v118, 0
    %v371 = vsel %vm162, %v119, 0
    %v374 = vsel %vm162, %v120, 0
    %v377 = vsel %vm162, %v121, 0
    %v380 = vsel %vm162, %v122, 0
    %v383 = vsel %vm162, %v123, 0
    %v386 = vsel %vm162, %v124, 0
    %v389 = vsel %vm162, %v125, 0
    %v392 = vsel %vm162, %v126, 0
    %v395 = vsel %vm162, %v127, 0
    %v398 = vsel %vm162, %v128, 0
    %v401 = vsel %vm162, %v129, 0
    %v404 = vsel %vm162, %v130, 0
    %v407 = vsel %vm162, %v131, 0
    %v410 = vsel %vm162, %v132, 0
    %v413 = vsel %vm162, %v133, 0
    %v416 = vsel %vm162, %v134, 0
    %v419 = vsel %vm162, %v135, 0
    %v422 = vsel %vm162, %v136, 0
    %v425 = vsel %vm162, %v137, 0
    %v428 = vsel %vm162, %v138, 0
    %v431 = vsel %vm162, %v139, 0
    %v434 = vsel %vm162, %v140, 0
    %v437 = vsel %vm162, %v141, 0
    %v440 = vsel %vm162, %v142, 0
    %v443 = vsel %vm162, %v143, 0
    %v446 = vsel %vm162, %v144, 0
    %v449 = vsel %vm162, %v145, 0
    %v452 = vsel %vm162, %v146, 0
    %v455 = vsel %vm162, %v147, 0
    %v458 = vsel %vm162, %v148, 0
    %v461 = vsel %vm162, %v149, 0
    %v464 = vsel %vm162, %v150, 0
    %v467 = vsel %vm162, %v151, 0
    %v470 = vsel %vm162, %v152, 0
    %v473 = vsel %vm162, %v153, 0
    %475 = vmatprep.subr.mxu0 0.0
    %476 = vmatpush1.msra.mxu0 0.0
    %477 = vmatprep.subr.mxu0 0.0
    %478 = vmatpush1.msra.mxu0 0.0
    %479 = vmatprep.subr.mxu0 0.0
    %480 = vmatpush1.msra.mxu0 0.0
    %481 = vmatprep.subr.mxu0 0.0
    %482 = vmatpush1.msra.mxu0 0.0
    %483 = vmatprep.subr.mxu0 0.0
    %484 = vmatpush1.msra.mxu0 0.0
    %485 = vmatprep.subr.mxu0 0.0
    %486 = vmatpush1.msra.mxu0 0.0
    %487 = vmatprep.subr.mxu0 0.0
    %488 = vmatpush1.msra.mxu0 0.0
    %489 = vmatprep.subr.mxu0 0.0
    %490 = vmatpush1.msra.mxu0 0.0
    %491 = vmatprep.subr.mxu0 0.0
    %492 = vmatpush1.msra.mxu0 %v161
    %493 = vmatprep.subr.mxu0 0.0
    %494 = vmatpush1.msra.mxu0 %v160
    %495 = vmatprep.subr.mxu0 0.0
    %496 = vmatpush1.msra.mxu0 %v159
    %497 = vmatprep.subr.mxu0 0.0
    %498 = vmatpush1.msra.mxu0 %v158
    %499 = vmatprep.subr.mxu0 0.0
    %500 = vmatpush1.msra.mxu0 %v157
    %501 = vmatprep.subr.mxu0 0.0
    %502 = vmatpush1.msra.mxu0 %v156
    %503 = vmatprep.subr.mxu0 0.0
    %504 = vmatpush1.msra.mxu0 %v155
    %505 = vmatprep.subr.mxu0 0.0
    %506 = vmatpush1.msra.mxu0 %v154
    %507 = vmatprep.subr.mxu0 0.0
    %508 = vmatpush2.msra.mxu0 0.0
    %509 = vmatprep.subr.mxu0 0.0
    %510 = vmatpush2.msra.mxu0 0.0
    %511 = vmatprep.subr.mxu0 0.0
    %512 = vmatpush2.msra.mxu0 0.0
    %513 = vmatprep.subr.mxu0 0.0
    %514 = vmatpush2.msra.mxu0 0.0
    %515 = vmatprep.subr.mxu0 0.0
    %516 = vmatpush2.msra.mxu0 0.0
    %517 = vmatprep.subr.mxu0 0.0
    %518 = vmatpush2.msra.mxu0 0.0
    %519 = vmatprep.subr.mxu0 0.0
    %520 = vmatpush2.msra.mxu0 0.0
    %521 = vmatprep.subr.mxu0 0.0
    %522 = vmatpush2.msra.mxu0 0.0
    %523 = vmatprep.subr.mxu0 0.0
    %524 = vmatpush2.msra.mxu0 0.0
    %525 = vmatprep.subr.mxu0 0.0
    %526 = vmatpush2.msra.mxu0 0.0
    %527 = vmatprep.subr.mxu0 0.0
    %528 = vmatpush2.msra.mxu0 0.0
    %529 = vmatprep.subr.mxu0 0.0
    %530 = vmatpush2.msra.mxu0 0.0
    %531 = vmatprep.subr.mxu0 0.0
    %532 = vmatpush2.msra.mxu0 0.0
    %533 = vmatprep.subr.mxu0 0.0
    %534 = vmatpush2.msra.mxu0 0.0
    %535 = vmatprep.subr.mxu0 0.0
    %536 = vmatpush2.msra.mxu0 0.0
    %537 = vmatprep.subr.mxu0 0.0
    %538 = vmatpush2.msra.mxu0 0.0
    %539 = vmatprep.mubr.f32.mxu0 0.0
    %540 = vmatmul.mubr.f32.gmra.mxu0 %v164
    %v541 = vpop.f32.mrf.mxu0
    %v542 = vadd.f32 0.0, %v541
    %v543 = vpop.f32.mrf.mxu0
    %544 = vmatprep.mubr.f32.mxu0 0.0
    %545 = vmatmul.mubr.f32.gmra.mxu0 %v167
    %v546 = vpop.f32.mrf.mxu0
    %v547 = vadd.f32 0.0, %v546
    %v548 = vpop.f32.mrf.mxu0
    %549 = vmatprep.mubr.f32.mxu0 0.0
    %550 = vmatmul.mubr.f32.gmra.mxu0 %v170
    %v551 = vpop.f32.mrf.mxu0
    %v552 = vadd.f32 0.0, %v551
    %v553 = vpop.f32.mrf.mxu0
    %554 = vmatprep.mubr.f32.mxu0 0.0
    %555 = vmatmul.mubr.f32.gmra.mxu0 %v173
    %v556 = vpop.f32.mrf.mxu0
    %v557 = vadd.f32 0.0, %v556
    %v558 = vpop.f32.mrf.mxu0
    %559 = vmatprep.mubr.f32.mxu0 0.0
    %560 = vmatmul.mubr.f32.gmra.mxu0 %v176
    %v561 = vpop.f32.mrf.mxu0
    %v562 = vadd.f32 0.0, %v561
    %v563 = vpop.f32.mrf.mxu0
    %564 = vmatprep.mubr.f32.mxu0 0.0
    %565 = vmatmul.mubr.f32.gmra.mxu0 %v179
    %v566 = vpop.f32.mrf.mxu0
    %v567 = vadd.f32 0.0, %v566
    %v568 = vpop.f32.mrf.mxu0
    %569 = vmatprep.mubr.f32.mxu0 0.0
    %570 = vmatmul.mubr.f32.gmra.mxu0 %v182
    %v571 = vpop.f32.mrf.mxu0
    %v572 = vadd.f32 0.0, %v571
    %v573 = vpop.f32.mrf.mxu0
    %574 = vmatprep.mubr.f32.mxu0 0.0
    %575 = vmatmul.mubr.f32.gmra.mxu0 %v185
    %v576 = vpop.f32.mrf.mxu0
    %v577 = vadd.f32 0.0, %v576
    %v578 = vpop.f32.mrf.mxu0
    %579 = vmatprep.mubr.f32.mxu0 0.0
    %580 = vmatmul.mubr.f32.gmra.mxu0 %v188
    %v581 = vpop.f32.mrf.mxu0
    %v582 = vadd.f32 0.0, %v581
    %v583 = vpop.f32.mrf.mxu0
    %584 = vmatprep.mubr.f32.mxu0 0.0
    %585 = vmatmul.mubr.f32.gmra.mxu0 %v191
    %v586 = vpop.f32.mrf.mxu0
    %v587 = vadd.f32 0.0, %v586
    %v588 = vpop.f32.mrf.mxu0
    %589 = vmatprep.mubr.f32.mxu0 0.0
    %590 = vmatmul.mubr.f32.gmra.mxu0 %v194
    %v591 = vpop.f32.mrf.mxu0
    %v592 = vadd.f32 0.0, %v591
    %v593 = vpop.f32.mrf.mxu0
    %594 = vmatprep.mubr.f32.mxu0 0.0
    %595 = vmatmul.mubr.f32.gmra.mxu0 %v197
    %v596 = vpop.f32.mrf.mxu0
    %v597 = vadd.f32 0.0, %v596
    %v598 = vpop.f32.mrf.mxu0
    %599 = vmatprep.mubr.f32.mxu0 0.0
    %600 = vmatmul.mubr.f32.gmra.mxu0 %v200
    %v601 = vpop.f32.mrf.mxu0
    %v602 = vadd.f32 0.0, %v601
    %v603 = vpop.f32.mrf.mxu0
    %604 = vmatprep.mubr.f32.mxu0 0.0
    %605 = vmatmul.mubr.f32.gmra.mxu0 %v203
    %v606 = vpop.f32.mrf.mxu0
    %v607 = vadd.f32 0.0, %v606
    %v608 = vpop.f32.mrf.mxu0
    %609 = vmatprep.mubr.f32.mxu0 0.0
    %610 = vmatmul.mubr.f32.gmra.mxu0 %v206
    %v611 = vpop.f32.mrf.mxu0
    %v612 = vadd.f32 0.0, %v611
    %v613 = vpop.f32.mrf.mxu0
    %614 = vmatprep.mubr.f32.mxu0 0.0
    %615 = vmatmul.mubr.f32.gmra.mxu0 %v209
    %v616 = vpop.f32.mrf.mxu0
    %v617 = vadd.f32 0.0, %v616
    %v618 = vpop.f32.mrf.mxu0
    %619 = vmatprep.mubr.f32.mxu0 0.0
    %620 = vmatmul.mubr.f32.gmra.mxu0 %v212
    %v621 = vpop.f32.mrf.mxu0
    %v622 = vadd.f32 0.0, %v621
    %v623 = vpop.f32.mrf.mxu0
    %624 = vmatprep.mubr.f32.mxu0 0.0
    %625 = vmatmul.mubr.f32.gmra.mxu0 %v215
    %v626 = vpop.f32.mrf.mxu0
    %v627 = vadd.f32 0.0, %v626
    %v628 = vpop.f32.mrf.mxu0
    %629 = vmatprep.mubr.f32.mxu0 0.0
    %630 = vmatmul.mubr.f32.gmra.mxu0 %v218
    %v631 = vpop.f32.mrf.mxu0
    %v632 = vadd.f32 0.0, %v631
    %v633 = vpop.f32.mrf.mxu0
    %634 = vmatprep.mubr.f32.mxu0 0.0
    %635 = vmatmul.mubr.f32.gmra.mxu0 %v221
    %v636 = vpop.f32.mrf.mxu0
    %v637 = vadd.f32 0.0, %v636
    %v638 = vpop.f32.mrf.mxu0
    %639 = vmatprep.mubr.f32.mxu0 0.0
    %640 = vmatmul.mubr.f32.gmra.mxu0 %v224
    %v641 = vpop.f32.mrf.mxu0
    %v642 = vadd.f32 0.0, %v641
    %v643 = vpop.f32.mrf.mxu0
    %644 = vmatprep.mubr.f32.mxu0 0.0
    %645 = vmatmul.mubr.f32.gmra.mxu0 %v227
    %v646 = vpop.f32.mrf.mxu0
    %v647 = vadd.f32 0.0, %v646
    %v648 = vpop.f32.mrf.mxu0
    %649 = vmatprep.mubr.f32.mxu0 0.0
    %650 = vmatmul.mubr.f32.gmra.mxu0 %v230
    %v651 = vpop.f32.mrf.mxu0
    %v652 = vadd.f32 0.0, %v651
    %v653 = vpop.f32.mrf.mxu0
    %654 = vmatprep.mubr.f32.mxu0 0.0
    %655 = vmatmul.mubr.f32.gmra.mxu0 %v233
    %v656 = vpop.f32.mrf.mxu0
    %v657 = vadd.f32 0.0, %v656
    %v658 = vpop.f32.mrf.mxu0
    %659 = vmatprep.mubr.f32.mxu0 0.0
    %660 = vmatmul.mubr.f32.gmra.mxu0 %v236
    %v661 = vpop.f32.mrf.mxu0
    %v662 = vadd.f32 0.0, %v661
    %v663 = vpop.f32.mrf.mxu0
    %664 = vmatprep.mubr.f32.mxu0 0.0
    %665 = vmatmul.mubr.f32.gmra.mxu0 %v239
    %v666 = vpop.f32.mrf.mxu0
    %v667 = vadd.f32 0.0, %v666
    %v668 = vpop.f32.mrf.mxu0
    %669 = vmatprep.mubr.f32.mxu0 0.0
    %670 = vmatmul.mubr.f32.gmra.mxu0 %v242
    %v671 = vpop.f32.mrf.mxu0
    %v672 = vadd.f32 0.0, %v671
    %v673 = vpop.f32.mrf.mxu0
    %674 = vmatprep.mubr.f32.mxu0 0.0
    %675 = vmatmul.mubr.f32.gmra.mxu0 %v245
    %v676 = vpop.f32.mrf.mxu0
    %v677 = vadd.f32 0.0, %v676
    %v678 = vpop.f32.mrf.mxu0
    %679 = vmatprep.mubr.f32.mxu0 0.0
    %680 = vmatmul.mubr.f32.gmra.mxu0 %v248
    %v681 = vpop.f32.mrf.mxu0
    %v682 = vadd.f32 0.0, %v681
    %v683 = vpop.f32.mrf.mxu0
    %684 = vmatprep.mubr.f32.mxu0 0.0
    %685 = vmatmul.mubr.f32.gmra.mxu0 %v251
    %v686 = vpop.f32.mrf.mxu0
    %v687 = vadd.f32 0.0, %v686
    %v688 = vpop.f32.mrf.mxu0
    %689 = vmatprep.mubr.f32.mxu0 0.0
    %690 = vmatmul.mubr.f32.gmra.mxu0 %v254
    %v691 = vpop.f32.mrf.mxu0
    %v692 = vadd.f32 0.0, %v691
    %v693 = vpop.f32.mrf.mxu0
    %694 = vmatprep.mubr.f32.mxu0 0.0
    %695 = vmatmul.mubr.f32.gmra.mxu0 %v257
    %v696 = vpop.f32.mrf.mxu0
    %v697 = vadd.f32 0.0, %v696
    %v698 = vpop.f32.mrf.mxu0
    %699 = vmatprep.mubr.f32.mxu0 0.0
    %700 = vmatmul.mubr.f32.gmra.mxu0 %v260
    %v701 = vpop.f32.mrf.mxu0
    %v702 = vadd.f32 0.0, %v701
    %v703 = vpop.f32.mrf.mxu0
    %704 = vmatprep.mubr.f32.mxu0 0.0
    %705 = vmatmul.mubr.f32.gmra.mxu0 %v263
    %v706 = vpop.f32.mrf.mxu0
    %v707 = vadd.f32 0.0, %v706
    %v708 = vpop.f32.mrf.mxu0
    %709 = vmatprep.mubr.f32.mxu0 0.0
    %710 = vmatmul.mubr.f32.gmra.mxu0 %v266
    %v711 = vpop.f32.mrf.mxu0
    %v712 = vadd.f32 0.0, %v711
    %v713 = vpop.f32.mrf.mxu0
    %714 = vmatprep.mubr.f32.mxu0 0.0
    %715 = vmatmul.mubr.f32.gmra.mxu0 %v269
    %v716 = vpop.f32.mrf.mxu0
    %v717 = vadd.f32 0.0, %v716
    %v718 = vpop.f32.mrf.mxu0
    %719 = vmatprep.mubr.f32.mxu0 0.0
    %720 = vmatmul.mubr.f32.gmra.mxu0 %v272
    %v721 = vpop.f32.mrf.mxu0
    %v722 = vadd.f32 0.0, %v721
    %v723 = vpop.f32.mrf.mxu0
    %724 = vmatprep.mubr.f32.mxu0 0.0
    %725 = vmatmul.mubr.f32.gmra.mxu0 %v275
    %v726 = vpop.f32.mrf.mxu0
    %v727 = vadd.f32 0.0, %v726
    %v728 = vpop.f32.mrf.mxu0
    %729 = vmatprep.mubr.f32.mxu0 0.0
    %730 = vmatmul.mubr.f32.gmra.mxu0 %v278
    %v731 = vpop.f32.mrf.mxu0
    %v732 = vadd.f32 0.0, %v731
    %v733 = vpop.f32.mrf.mxu0
    %734 = vmatprep.mubr.f32.mxu0 0.0
    %735 = vmatmul.mubr.f32.gmra.mxu0 %v281
    %v736 = vpop.f32.mrf.mxu0
    %v737 = vadd.f32 0.0, %v736
    %v738 = vpop.f32.mrf.mxu0
    %739 = vmatprep.mubr.f32.mxu0 0.0
    %740 = vmatmul.mubr.f32.gmra.mxu0 %v284
    %v741 = vpop.f32.mrf.mxu0
    %v742 = vadd.f32 0.0, %v741
    %v743 = vpop.f32.mrf.mxu0
    %744 = vmatprep.mubr.f32.mxu0 0.0
    %745 = vmatmul.mubr.f32.gmra.mxu0 %v287
    %v746 = vpop.f32.mrf.mxu0
    %v747 = vadd.f32 0.0, %v746
    %v748 = vpop.f32.mrf.mxu0
    %749 = vmatprep.mubr.f32.mxu0 0.0
    %750 = vmatmul.mubr.f32.gmra.mxu0 %v290
    %v751 = vpop.f32.mrf.mxu0
    %v752 = vadd.f32 0.0, %v751
    %v753 = vpop.f32.mrf.mxu0
    %754 = vmatprep.mubr.f32.mxu0 0.0
    %755 = vmatmul.mubr.f32.gmra.mxu0 %v293
    %v756 = vpop.f32.mrf.mxu0
    %v757 = vadd.f32 0.0, %v756
    %v758 = vpop.f32.mrf.mxu0
    %759 = vmatprep.mubr.f32.mxu0 0.0
    %760 = vmatmul.mubr.f32.gmra.mxu0 %v296
    %v761 = vpop.f32.mrf.mxu0
    %v762 = vadd.f32 0.0, %v761
    %v763 = vpop.f32.mrf.mxu0
    %764 = vmatprep.mubr.f32.mxu0 0.0
    %765 = vmatmul.mubr.f32.gmra.mxu0 %v299
    %v766 = vpop.f32.mrf.mxu0
    %v767 = vadd.f32 0.0, %v766
    %v768 = vpop.f32.mrf.mxu0
    %769 = vmatprep.mubr.f32.mxu0 0.0
    %770 = vmatmul.mubr.f32.gmra.mxu0 %v302
    %v771 = vpop.f32.mrf.mxu0
    %v772 = vadd.f32 0.0, %v771
    %v773 = vpop.f32.mrf.mxu0
    %774 = vmatprep.mubr.f32.mxu0 0.0
    %775 = vmatmul.mubr.f32.gmra.mxu0 %v305
    %v776 = vpop.f32.mrf.mxu0
    %v777 = vadd.f32 0.0, %v776
    %v778 = vpop.f32.mrf.mxu0
    %779 = vmatprep.mubr.f32.mxu0 0.0
    %780 = vmatmul.mubr.f32.gmra.mxu0 %v308
    %v781 = vpop.f32.mrf.mxu0
    %v782 = vadd.f32 0.0, %v781
    %v783 = vpop.f32.mrf.mxu0
    %784 = vmatprep.mubr.f32.mxu0 0.0
    %785 = vmatmul.mubr.f32.gmra.mxu0 %v311
    %v786 = vpop.f32.mrf.mxu0
    %v787 = vadd.f32 0.0, %v786
    %v788 = vpop.f32.mrf.mxu0
    %789 = vmatprep.mubr.f32.mxu0 0.0
    %790 = vmatmul.mubr.f32.gmra.mxu0 %v314
    %v791 = vpop.f32.mrf.mxu0
    %v792 = vadd.f32 0.0, %v791
    %v793 = vpop.f32.mrf.mxu0
    %794 = vmatprep.mubr.f32.mxu0 0.0
    %795 = vmatmul.mubr.f32.gmra.mxu0 %v317
    %v796 = vpop.f32.mrf.mxu0
    %v797 = vadd.f32 0.0, %v796
    %v798 = vpop.f32.mrf.mxu0
    %799 = vmatprep.mubr.f32.mxu0 0.0
    %800 = vmatmul.mubr.f32.gmra.mxu0 %v320
    %v801 = vpop.f32.mrf.mxu0
    %v802 = vadd.f32 0.0, %v801
    %v803 = vpop.f32.mrf.mxu0
    %804 = vmatprep.mubr.f32.mxu0 0.0
    %805 = vmatmul.mubr.f32.gmra.mxu0 %v323
    %v806 = vpop.f32.mrf.mxu0
    %v807 = vadd.f32 0.0, %v806
    %v808 = vpop.f32.mrf.mxu0
    %809 = vmatprep.mubr.f32.mxu0 0.0
    %810 = vmatmul.mubr.f32.gmra.mxu0 %v326
    %v811 = vpop.f32.mrf.mxu0
    %v812 = vadd.f32 0.0, %v811
    %v813 = vpop.f32.mrf.mxu0
    %814 = vmatprep.mubr.f32.mxu0 0.0
    %815 = vmatmul.mubr.f32.gmra.mxu0 %v329
    %v816 = vpop.f32.mrf.mxu0
    %v817 = vadd.f32 0.0, %v816
    %v818 = vpop.f32.mrf.mxu0
    %819 = vmatprep.mubr.f32.mxu0 0.0
    %820 = vmatmul.mubr.f32.gmra.mxu0 %v332
    %v821 = vpop.f32.mrf.mxu0
    %v822 = vadd.f32 0.0, %v821
    %v823 = vpop.f32.mrf.mxu0
    %824 = vmatprep.mubr.f32.mxu0 0.0
    %825 = vmatmul.mubr.f32.gmra.mxu0 %v335
    %v826 = vpop.f32.mrf.mxu0
    %v827 = vadd.f32 0.0, %v826
    %v828 = vpop.f32.mrf.mxu0
    %829 = vmatprep.mubr.f32.mxu0 0.0
    %830 = vmatmul.mubr.f32.gmra.mxu0 %v338
    %v831 = vpop.f32.mrf.mxu0
    %v832 = vadd.f32 0.0, %v831
    %v833 = vpop.f32.mrf.mxu0
    %834 = vmatprep.mubr.f32.mxu0 0.0
    %835 = vmatmul.mubr.f32.gmra.mxu0 %v341
    %v836 = vpop.f32.mrf.mxu0
    %v837 = vadd.f32 0.0, %v836
    %v838 = vpop.f32.mrf.mxu0
    %839 = vmatprep.mubr.f32.mxu0 0.0
    %840 = vmatmul.mubr.f32.gmra.mxu0 %v344
    %v841 = vpop.f32.mrf.mxu0
    %v842 = vadd.f32 0.0, %v841
    %v843 = vpop.f32.mrf.mxu0
    %844 = vmatprep.mubr.f32.mxu0 0.0
    %845 = vmatmul.mubr.f32.gmra.mxu0 %v347
    %v846 = vpop.f32.mrf.mxu0
    %v847 = vadd.f32 0.0, %v846
    %v848 = vpop.f32.mrf.mxu0
    %849 = vmatprep.mubr.f32.mxu0 0.0
    %850 = vmatmul.mubr.f32.gmra.mxu0 %v350
    %v851 = vpop.f32.mrf.mxu0
    %v852 = vadd.f32 0.0, %v851
    %v853 = vpop.f32.mrf.mxu0
    %854 = vmatprep.mubr.f32.mxu0 0.0
    %855 = vmatmul.mubr.f32.gmra.mxu0 %v353
    %v856 = vpop.f32.mrf.mxu0
    %v857 = vadd.f32 0.0, %v856
    %v858 = vpop.f32.mrf.mxu0
    %859 = vmatprep.mubr.f32.mxu0 0.0
    %860 = vmatmul.mubr.f32.gmra.mxu0 %v356
    %v861 = vpop.f32.mrf.mxu0
    %v862 = vadd.f32 0.0, %v861
    %v863 = vpop.f32.mrf.mxu0
    %864 = vmatprep.mubr.f32.mxu0 0.0
    %865 = vmatmul.mubr.f32.gmra.mxu0 %v359
    %v866 = vpop.f32.mrf.mxu0
    %v867 = vadd.f32 0.0, %v866
    %v868 = vpop.f32.mrf.mxu0
    %869 = vmatprep.mubr.f32.mxu0 0.0
    %870 = vmatmul.mubr.f32.gmra.mxu0 %v362
    %v871 = vpop.f32.mrf.mxu0
    %v872 = vadd.f32 0.0, %v871
    %v873 = vpop.f32.mrf.mxu0
    %874 = vmatprep.mubr.f32.mxu0 0.0
    %875 = vmatmul.mubr.f32.gmra.mxu0 %v365
    %v876 = vpop.f32.mrf.mxu0
    %v877 = vadd.f32 0.0, %v876
    %v878 = vpop.f32.mrf.mxu0
    %879 = vmatprep.mubr.f32.mxu0 0.0
    %880 = vmatmul.mubr.f32.gmra.mxu0 %v368
    %v881 = vpop.f32.mrf.mxu0
    %v882 = vadd.f32 0.0, %v881
    %v883 = vpop.f32.mrf.mxu0
    %884 = vmatprep.mubr.f32.mxu0 0.0
    %885 = vmatmul.mubr.f32.gmra.mxu0 %v371
    %v886 = vpop.f32.mrf.mxu0
    %v887 = vadd.f32 0.0, %v886
    %v888 = vpop.f32.mrf.mxu0
    %889 = vmatprep.mubr.f32.mxu0 0.0
    %890 = vmatmul.mubr.f32.gmra.mxu0 %v374
    %v891 = vpop.f32.mrf.mxu0
    %v892 = vadd.f32 0.0, %v891
    %v893 = vpop.f32.mrf.mxu0
    %894 = vmatprep.mubr.f32.mxu0 0.0
    %895 = vmatmul.mubr.f32.gmra.mxu0 %v377
    %v896 = vpop.f32.mrf.mxu0
    %v897 = vadd.f32 0.0, %v896
    %v898 = vpop.f32.mrf.mxu0
    %899 = vmatprep.mubr.f32.mxu0 0.0
    %900 = vmatmul.mubr.f32.gmra.mxu0 %v380
    %v901 = vpop.f32.mrf.mxu0
    %v902 = vadd.f32 0.0, %v901
    %v903 = vpop.f32.mrf.mxu0
    %904 = vmatprep.mubr.f32.mxu0 0.0
    %905 = vmatmul.mubr.f32.gmra.mxu0 %v383
    %v906 = vpop.f32.mrf.mxu0
    %v907 = vadd.f32 0.0, %v906
    %v908 = vpop.f32.mrf.mxu0
    %909 = vmatprep.mubr.f32.mxu0 0.0
    %910 = vmatmul.mubr.f32.gmra.mxu0 %v386
    %v911 = vpop.f32.mrf.mxu0
    %v912 = vadd.f32 0.0, %v911
    %v913 = vpop.f32.mrf.mxu0
    %914 = vmatprep.mubr.f32.mxu0 0.0
    %915 = vmatmul.mubr.f32.gmra.mxu0 %v389
    %v916 = vpop.f32.mrf.mxu0
    %v917 = vadd.f32 0.0, %v916
    %v918 = vpop.f32.mrf.mxu0
    %919 = vmatprep.mubr.f32.mxu0 0.0
    %920 = vmatmul.mubr.f32.gmra.mxu0 %v392
    %v921 = vpop.f32.mrf.mxu0
    %v922 = vadd.f32 0.0, %v921
    %v923 = vpop.f32.mrf.mxu0
    %924 = vmatprep.mubr.f32.mxu0 0.0
    %925 = vmatmul.mubr.f32.gmra.mxu0 %v395
    %v926 = vpop.f32.mrf.mxu0
    %v927 = vadd.f32 0.0, %v926
    %v928 = vpop.f32.mrf.mxu0
    %929 = vmatprep.mubr.f32.mxu0 0.0
    %930 = vmatmul.mubr.f32.gmra.mxu0 %v398
    %v931 = vpop.f32.mrf.mxu0
    %v932 = vadd.f32 0.0, %v931
    %v933 = vpop.f32.mrf.mxu0
    %934 = vmatprep.mubr.f32.mxu0 0.0
    %935 = vmatmul.mubr.f32.gmra.mxu0 %v401
    %v936 = vpop.f32.mrf.mxu0
    %v937 = vadd.f32 0.0, %v936
    %v938 = vpop.f32.mrf.mxu0
    %939 = vmatprep.mubr.f32.mxu0 0.0
    %940 = vmatmul.mubr.f32.gmra.mxu0 %v404
    %v941 = vpop.f32.mrf.mxu0
    %v942 = vadd.f32 0.0, %v941
    %v943 = vpop.f32.mrf.mxu0
    %944 = vmatprep.mubr.f32.mxu0 0.0
    %945 = vmatmul.mubr.f32.gmra.mxu0 %v407
    %v946 = vpop.f32.mrf.mxu0
    %v947 = vadd.f32 0.0, %v946
    %v948 = vpop.f32.mrf.mxu0
    %949 = vmatprep.mubr.f32.mxu0 0.0
    %950 = vmatmul.mubr.f32.gmra.mxu0 %v410
    %v951 = vpop.f32.mrf.mxu0
    %v952 = vadd.f32 0.0, %v951
    %v953 = vpop.f32.mrf.mxu0
    %954 = vmatprep.mubr.f32.mxu0 0.0
    %955 = vmatmul.mubr.f32.gmra.mxu0 %v413
    %v956 = vpop.f32.mrf.mxu0
    %v957 = vadd.f32 0.0, %v956
    %v958 = vpop.f32.mrf.mxu0
    %959 = vmatprep.mubr.f32.mxu0 0.0
    %960 = vmatmul.mubr.f32.gmra.mxu0 %v416
    %v961 = vpop.f32.mrf.mxu0
    %v962 = vadd.f32 0.0, %v961
    %v963 = vpop.f32.mrf.mxu0
    %964 = vmatprep.mubr.f32.mxu0 0.0
    %965 = vmatmul.mubr.f32.gmra.mxu0 %v419
    %v966 = vpop.f32.mrf.mxu0
    %v967 = vadd.f32 0.0, %v966
    %v968 = vpop.f32.mrf.mxu0
    %969 = vmatprep.mubr.f32.mxu0 0.0
    %970 = vmatmul.mubr.f32.gmra.mxu0 %v422
    %v971 = vpop.f32.mrf.mxu0
    %v972 = vadd.f32 0.0, %v971
    %v973 = vpop.f32.mrf.mxu0
    %974 = vmatprep.mubr.f32.mxu0 0.0
    %975 = vmatmul.mubr.f32.gmra.mxu0 %v425
    %v976 = vpop.f32.mrf.mxu0
    %v977 = vadd.f32 0.0, %v976
    %v978 = vpop.f32.mrf.mxu0
    %979 = vmatprep.mubr.f32.mxu0 0.0
    %980 = vmatmul.mubr.f32.gmra.mxu0 %v428
    %v981 = vpop.f32.mrf.mxu0
    %v982 = vadd.f32 0.0, %v981
    %v983 = vpop.f32.mrf.mxu0
    %984 = vmatprep.mubr.f32.mxu0 0.0
    %985 = vmatmul.mubr.f32.gmra.mxu0 %v431
    %v986 = vpop.f32.mrf.mxu0
    %v987 = vadd.f32 0.0, %v986
    %v988 = vpop.f32.mrf.mxu0
    %989 = vmatprep.mubr.f32.mxu0 0.0
    %990 = vmatmul.mubr.f32.gmra.mxu0 %v434
    %v991 = vpop.f32.mrf.mxu0
    %v992 = vadd.f32 0.0, %v991
    %v993 = vpop.f32.mrf.mxu0
    %994 = vmatprep.mubr.f32.mxu0 0.0
    %995 = vmatmul.mubr.f32.gmra.mxu0 %v437
    %v996 = vpop.f32.mrf.mxu0
    %v997 = vadd.f32 0.0, %v996
    %v998 = vpop.f32.mrf.mxu0
    %999 = vmatprep.mubr.f32.mxu0 0.0
    %1000 = vmatmul.mubr.f32.gmra.mxu0 %v440
    %v1001 = vpop.f32.mrf.mxu0
    %v1002 = vadd.f32 0.0, %v1001
    %v1003 = vpop.f32.mrf.mxu0
    %1004 = vmatprep.mubr.f32.mxu0 0.0
    %1005 = vmatmul.mubr.f32.gmra.mxu0 %v443
    %v1006 = vpop.f32.mrf.mxu0
    %v1007 = vadd.f32 0.0, %v1006
    %v1008 = vpop.f32.mrf.mxu0
    %1009 = vmatprep.mubr.f32.mxu0 0.0
    %1010 = vmatmul.mubr.f32.gmra.mxu0 %v446
    %v1011 = vpop.f32.mrf.mxu0
    %v1012 = vadd.f32 0.0, %v1011
    %v1013 = vpop.f32.mrf.mxu0
    %1014 = vmatprep.mubr.f32.mxu0 0.0
    %1015 = vmatmul.mubr.f32.gmra.mxu0 %v449
    %v1016 = vpop.f32.mrf.mxu0
    %v1017 = vadd.f32 0.0, %v1016
    %v1018 = vpop.f32.mrf.mxu0
    %1019 = vmatprep.mubr.f32.mxu0 0.0
    %1020 = vmatmul.mubr.f32.gmra.mxu0 %v452
    %v1021 = vpop.f32.mrf.mxu0
    %v1022 = vadd.f32 0.0, %v1021
    %v1023 = vpop.f32.mrf.mxu0
    %1024 = vmatprep.mubr.f32.mxu0 0.0
    %1025 = vmatmul.mubr.f32.gmra.mxu0 %v455
    %v1026 = vpop.f32.mrf.mxu0
    %v1027 = vadd.f32 0.0, %v1026
    %v1028 = vpop.f32.mrf.mxu0
    %1029 = vmatprep.mubr.f32.mxu0 0.0
    %1030 = vmatmul.mubr.f32.gmra.mxu0 %v458
    %v1031 = vpop.f32.mrf.mxu0
    %v1032 = vadd.f32 0.0, %v1031
    %v1033 = vpop.f32.mrf.mxu0
    %1034 = vmatprep.mubr.f32.mxu0 0.0
    %1035 = vmatmul.mubr.f32.gmra.mxu0 %v461
    %v1036 = vpop.f32.mrf.mxu0
    %v1037 = vadd.f32 0.0, %v1036
    %v1038 = vpop.f32.mrf.mxu0
    %1039 = vmatprep.mubr.f32.mxu0 0.0
    %1040 = vmatmul.mubr.f32.gmra.mxu0 %v464
    %v1041 = vpop.f32.mrf.mxu0
    %v1042 = vadd.f32 0.0, %v1041
    %v1043 = vpop.f32.mrf.mxu0
    %1044 = vmatprep.mubr.f32.mxu0 0.0
    %1045 = vmatmul.mubr.f32.gmra.mxu0 %v467
    %v1046 = vpop.f32.mrf.mxu0
    %v1047 = vadd.f32 0.0, %v1046
    %v1048 = vpop.f32.mrf.mxu0
    %1049 = vmatprep.mubr.f32.mxu0 0.0
    %1050 = vmatmul.mubr.f32.gmra.mxu0 %v470
    %v1051 = vpop.f32.mrf.mxu0
    %v1052 = vadd.f32 0.0, %v1051
    %v1053 = vpop.f32.mrf.mxu0
    %1054 = vmatprep.mubr.f32.mxu0 0.0
    %1055 = vmatmul.mubr.f32.gmra.mxu0 %v473
    %v1056 = vpop.f32.mrf.mxu0
    %v1057 = vadd.f32 0.0, %v1056
    %v1058 = vpop.f32.mrf.mxu0
    %1059 = vdwg.mxu0
    %1061 = vset.pattern.permute.xlu0 0
    %1062 = vperm.xlu0 %1061, %v42
    %v1063 = vpop.permute.xlu0 %1062
    %1066 = vset.pattern.permute.xlu0 0
    %1067 = vperm.xlu0 %1066, %v43
    %v1068 = vpop.permute.xlu0 %1067
    %1071 = vset.pattern.permute.xlu0 0
    %1072 = vperm.xlu0 %1071, %v44
    %v1073 = vpop.permute.xlu0 %1072
    %1076 = vset.pattern.permute.xlu0 0
    %1077 = vperm.xlu0 %1076, %v45
    %v1078 = vpop.permute.xlu0 %1077
    %1081 = vset.pattern.permute.xlu0 0
    %1082 = vperm.xlu0 %1081, %v46
    %v1083 = vpop.permute.xlu0 %1082
    %1086 = vset.pattern.permute.xlu0 0
    %1087 = vperm.xlu0 %1086, %v47
    %v1088 = vpop.permute.xlu0 %1087
    %1091 = vset.pattern.permute.xlu0 0
    %1092 = vperm.xlu0 %1091, %v48
    %v1093 = vpop.permute.xlu0 %1092
    %1096 = vset.pattern.permute.xlu0 0
    %1097 = vperm.xlu0 %1096, %v49
    %v1098 = vpop.permute.xlu0 %1097
    %v1100 = vadd.f32 %v542, %v1063
    %v1101 = vadd.f32 %v547, %v1068
    %v1102 = vadd.f32 %v552, %v1073
    %v1103 = vadd.f32 %v557, %v1078
    %v1104 = vadd.f32 %v562, %v1083
    %v1105 = vadd.f32 %v567, %v1088
    %v1106 = vadd.f32 %v572, %v1093
    %v1107 = vadd.f32 %v577, %v1098
    %v1108 = vadd.f32 %v582, %v1063
    %v1109 = vadd.f32 %v587, %v1068
    %v1110 = vadd.f32 %v592, %v1073
    %v1111 = vadd.f32 %v597, %v1078
    %v1112 = vadd.f32 %v602, %v1083
    %v1113 = vadd.f32 %v607, %v1088
    %v1114 = vadd.f32 %v612, %v1093
    %v1115 = vadd.f32 %v617, %v1098
    %v1116 = vadd.f32 %v622, %v1063
    %v1117 = vadd.f32 %v627, %v1068
    %v1118 = vadd.f32 %v632, %v1073
    %v1119 = vadd.f32 %v637, %v1078
    %v1120 = vadd.f32 %v642, %v1083
    %v1121 = vadd.f32 %v647, %v1088
    %v1122 = vadd.f32 %v652, %v1093
    %v1123 = vadd.f32 %v657, %v1098
    %v1124 = vadd.f32 %v662, %v1063
    %v1125 = vadd.f32 %v667, %v1068
    %v1126 = vadd.f32 %v672, %v1073
    %v1127 = vadd.f32 %v677, %v1078
    %v1128 = vadd.f32 %v682, %v1083
    %v1129 = vadd.f32 %v687, %v1088
    %v1130 = vadd.f32 %v692, %v1093
    %v1131 = vadd.f32 %v697, %v1098
    %v1132 = vadd.f32 %v702, %v1063
    %v1133 = vadd.f32 %v707, %v1068
    %v1134 = vadd.f32 %v712, %v1073
    %v1135 = vadd.f32 %v717, %v1078
    %v1136 = vadd.f32 %v722, %v1083
    %v1137 = vadd.f32 %v727, %v1088
    %v1138 = vadd.f32 %v732, %v1093
    %v1139 = vadd.f32 %v737, %v1098
    %v1140 = vadd.f32 %v742, %v1063
    %v1141 = vadd.f32 %v747, %v1068
    %v1142 = vadd.f32 %v752, %v1073
    %v1143 = vadd.f32 %v757, %v1078
    %v1144 = vadd.f32 %v762, %v1083
    %v1145 = vadd.f32 %v767, %v1088
    %v1146 = vadd.f32 %v772, %v1093
    %v1147 = vadd.f32 %v777, %v1098
    %v1148 = vadd.f32 %v782, %v1063
    %v1149 = vadd.f32 %v787, %v1068
    %v1150 = vadd.f32 %v792, %v1073
    %v1151 = vadd.f32 %v797, %v1078
    %v1152 = vadd.f32 %v802, %v1083
    %v1153 = vadd.f32 %v807, %v1088
    %v1154 = vadd.f32 %v812, %v1093
    %v1155 = vadd.f32 %v817, %v1098
    %v1156 = vadd.f32 %v822, %v1063
    %v1157 = vadd.f32 %v827, %v1068
    %v1158 = vadd.f32 %v832, %v1073
    %v1159 = vadd.f32 %v837, %v1078
    %v1160 = vadd.f32 %v842, %v1083
    %v1161 = vadd.f32 %v847, %v1088
    %v1162 = vadd.f32 %v852, %v1093
    %v1163 = vadd.f32 %v857, %v1098
    %v1164 = vadd.f32 %v862, %v1063
    %v1165 = vadd.f32 %v867, %v1068
    %v1166 = vadd.f32 %v872, %v1073
    %v1167 = vadd.f32 %v877, %v1078
    %v1168 = vadd.f32 %v882, %v1083
    %v1169 = vadd.f32 %v887, %v1088
    %v1170 = vadd.f32 %v892, %v1093
    %v1171 = vadd.f32 %v897, %v1098
    %v1172 = vadd.f32 %v902, %v1063
    %v1173 = vadd.f32 %v907, %v1068
    %v1174 = vadd.f32 %v912, %v1073
    %v1175 = vadd.f32 %v917, %v1078
    %v1176 = vadd.f32 %v922, %v1083
    %v1177 = vadd.f32 %v927, %v1088
    %v1178 = vadd.f32 %v932, %v1093
    %v1179 = vadd.f32 %v937, %v1098
    %v1180 = vadd.f32 %v942, %v1063
    %v1181 = vadd.f32 %v947, %v1068
    %v1182 = vadd.f32 %v952, %v1073
    %v1183 = vadd.f32 %v957, %v1078
    %v1184 = vadd.f32 %v962, %v1083
    %v1185 = vadd.f32 %v967, %v1088
    %v1186 = vadd.f32 %v972, %v1093
    %v1187 = vadd.f32 %v977, %v1098
    %v1188 = vadd.f32 %v982, %v1063
    %v1189 = vadd.f32 %v987, %v1068
    %v1190 = vadd.f32 %v992, %v1073
    %v1191 = vadd.f32 %v997, %v1078
    %v1192 = vadd.f32 %v1002, %v1083
    %v1193 = vadd.f32 %v1007, %v1088
    %v1194 = vadd.f32 %v1012, %v1093
    %v1195 = vadd.f32 %v1017, %v1098
    %v1196 = vadd.f32 %v1022, %v1063
    %v1197 = vadd.f32 %v1027, %v1068
    %v1198 = vadd.f32 %v1032, %v1073
    %v1199 = vadd.f32 %v1037, %v1078
    %v1200 = vadd.f32 %v1042, %v1083
    %v1201 = vadd.f32 %v1047, %v1088
    %v1202 = vadd.f32 %v1052, %v1093
    %v1203 = vadd.f32 %v1057, %v1098
    %v1204 = vmax.f32 %v1100, 0.0
    %v1205 = vmax.f32 %v1101, 0.0
    %v1206 = vmax.f32 %v1102, 0.0
    %v1207 = vmax.f32 %v1103, 0.0
    %v1208 = vmax.f32 %v1104, 0.0
    %v1209 = vmax.f32 %v1105, 0.0
    %v1210 = vmax.f32 %v1106, 0.0
    %v1211 = vmax.f32 %v1107, 0.0
    %v1212 = vmax.f32 %v1108, 0.0
    %v1213 = vmax.f32 %v1109, 0.0
    %v1214 = vmax.f32 %v1110, 0.0
    %v1215 = vmax.f32 %v1111, 0.0
    %v1216 = vmax.f32 %v1112, 0.0
    %v1217 = vmax.f32 %v1113, 0.0
    %v1218 = vmax.f32 %v1114, 0.0
    %v1219 = vmax.f32 %v1115, 0.0
    %v1220 = vmax.f32 %v1116, 0.0
    %v1221 = vmax.f32 %v1117, 0.0
    %v1222 = vmax.f32 %v1118, 0.0
    %v1223 = vmax.f32 %v1119, 0.0
    %v1224 = vmax.f32 %v1120, 0.0
    %v1225 = vmax.f32 %v1121, 0.0
    %v1226 = vmax.f32 %v1122, 0.0
    %v1227 = vmax.f32 %v1123, 0.0
    %v1228 = vmax.f32 %v1124, 0.0
    %v1229 = vmax.f32 %v1125, 0.0
    %v1230 = vmax.f32 %v1126, 0.0
    %v1231 = vmax.f32 %v1127, 0.0
    %v1232 = vmax.f32 %v1128, 0.0
    %v1233 = vmax.f32 %v1129, 0.0
    %v1234 = vmax.f32 %v1130, 0.0
    %v1235 = vmax.f32 %v1131, 0.0
    %v1236 = vmax.f32 %v1132, 0.0
    %v1237 = vmax.f32 %v1133, 0.0
    %v1238 = vmax.f32 %v1134, 0.0
    %v1239 = vmax.f32 %v1135, 0.0
    %v1240 = vmax.f32 %v1136, 0.0
    %v1241 = vmax.f32 %v1137, 0.0
    %v1242 = vmax.f32 %v1138, 0.0
    %v1243 = vmax.f32 %v1139, 0.0
    %v1244 = vmax.f32 %v1140, 0.0
    %v1245 = vmax.f32 %v1141, 0.0
    %v1246 = vmax.f32 %v1142, 0.0
    %v1247 = vmax.f32 %v1143, 0.0
    %v1248 = vmax.f32 %v1144, 0.0
    %v1249 = vmax.f32 %v1145, 0.0
    %v1250 = vmax.f32 %v1146, 0.0
    %v1251 = vmax.f32 %v1147, 0.0
    %v1252 = vmax.f32 %v1148, 0.0
    %v1253 = vmax.f32 %v1149, 0.0
    %v1254 = vmax.f32 %v1150, 0.0
    %v1255 = vmax.f32 %v1151, 0.0
    %v1256 = vmax.f32 %v1152, 0.0
    %v1257 = vmax.f32 %v1153, 0.0
    %v1258 = vmax.f32 %v1154, 0.0
    %v1259 = vmax.f32 %v1155, 0.0
    %v1260 = vmax.f32 %v1156, 0.0
    %v1261 = vmax.f32 %v1157, 0.0
    %v1262 = vmax.f32 %v1158, 0.0
    %v1263 = vmax.f32 %v1159, 0.0
    %v1264 = vmax.f32 %v1160, 0.0
    %v1265 = vmax.f32 %v1161, 0.0
    %v1266 = vmax.f32 %v1162, 0.0
    %v1267 = vmax.f32 %v1163, 0.0
    %v1268 = vmax.f32 %v1164, 0.0
    %v1269 = vmax.f32 %v1165, 0.0
    %v1270 = vmax.f32 %v1166, 0.0
    %v1271 = vmax.f32 %v1167, 0.0
    %v1272 = vmax.f32 %v1168, 0.0
    %v1273 = vmax.f32 %v1169, 0.0
    %v1274 = vmax.f32 %v1170, 0.0
    %v1275 = vmax.f32 %v1171, 0.0
    %v1276 = vmax.f32 %v1172, 0.0
    %v1277 = vmax.f32 %v1173, 0.0
    %v1278 = vmax.f32 %v1174, 0.0
    %v1279 = vmax.f32 %v1175, 0.0
    %v1280 = vmax.f32 %v1176, 0.0
    %v1281 = vmax.f32 %v1177, 0.0
    %v1282 = vmax.f32 %v1178, 0.0
    %v1283 = vmax.f32 %v1179, 0.0
    %v1284 = vmax.f32 %v1180, 0.0
    %v1285 = vmax.f32 %v1181, 0.0
    %v1286 = vmax.f32 %v1182, 0.0
    %v1287 = vmax.f32 %v1183, 0.0
    %v1288 = vmax.f32 %v1184, 0.0
    %v1289 = vmax.f32 %v1185, 0.0
    %v1290 = vmax.f32 %v1186, 0.0
    %v1291 = vmax.f32 %v1187, 0.0
    %v1292 = vmax.f32 %v1188, 0.0
    %v1293 = vmax.f32 %v1189, 0.0
    %v1294 = vmax.f32 %v1190, 0.0
    %v1295 = vmax.f32 %v1191, 0.0
    %v1296 = vmax.f32 %v1192, 0.0
    %v1297 = vmax.f32 %v1193, 0.0
    %v1298 = vmax.f32 %v1194, 0.0
    %v1299 = vmax.f32 %v1195, 0.0
    %v1300 = vmax.f32 %v1196, 0.0
    %v1301 = vmax.f32 %v1197, 0.0
    %v1302 = vmax.f32 %v1198, 0.0
    %v1303 = vmax.f32 %v1199, 0.0
    %v1304 = vmax.f32 %v1200, 0.0
    %v1305 = vmax.f32 %v1201, 0.0
    %v1306 = vmax.f32 %v1202, 0.0
    %v1307 = vmax.f32 %v1203, 0.0
    %1308 = vset.pattern.permute.xlu0 3
    %1309 = vperm.xlu0 %1308, %v42
    %v1310 = vpop.permute.xlu0 %1309
    %1312 = vset.pattern.permute.xlu0 3
    %1313 = vperm.xlu0 %1312, %v43
    %v1314 = vpop.permute.xlu0 %1313
    %1316 = vset.pattern.permute.xlu0 3
    %1317 = vperm.xlu0 %1316, %v44
    %v1318 = vpop.permute.xlu0 %1317
    %1320 = vset.pattern.permute.xlu0 3
    %1321 = vperm.xlu0 %1320, %v45
    %v1322 = vpop.permute.xlu0 %1321
    %1324 = vset.pattern.permute.xlu0 3
    %1325 = vperm.xlu0 %1324, %v46
    %v1326 = vpop.permute.xlu0 %1325
    %1328 = vset.pattern.permute.xlu0 3
    %1329 = vperm.xlu0 %1328, %v47
    %v1330 = vpop.permute.xlu0 %1329
    %1332 = vset.pattern.permute.xlu0 3
    %1333 = vperm.xlu0 %1332, %v48
    %v1334 = vpop.permute.xlu0 %1333
    %1336 = vset.pattern.permute.xlu0 3
    %1337 = vperm.xlu0 %1336, %v49
    %v1338 = vpop.permute.xlu0 %1337
    %v1340 = vmul.f32 %v1204, %v1310
    %v1341 = vmul.f32 %v1205, %v1314
    %v1342 = vmul.f32 %v1206, %v1318
    %v1343 = vmul.f32 %v1207, %v1322
    %v1344 = vmul.f32 %v1208, %v1326
    %v1345 = vmul.f32 %v1209, %v1330
    %v1346 = vmul.f32 %v1210, %v1334
    %v1347 = vmul.f32 %v1211, %v1338
    %v1348 = vmul.f32 %v1212, %v1310
    %v1349 = vmul.f32 %v1213, %v1314
    %v1350 = vmul.f32 %v1214, %v1318
    %v1351 = vmul.f32 %v1215, %v1322
    %v1352 = vmul.f32 %v1216, %v1326
    %v1353 = vmul.f32 %v1217, %v1330
    %v1354 = vmul.f32 %v1218, %v1334
    %v1355 = vmul.f32 %v1219, %v1338
    %v1356 = vmul.f32 %v1220, %v1310
    %v1357 = vmul.f32 %v1221, %v1314
    %v1358 = vmul.f32 %v1222, %v1318
    %v1359 = vmul.f32 %v1223, %v1322
    %v1360 = vmul.f32 %v1224, %v1326
    %v1361 = vmul.f32 %v1225, %v1330
    %v1362 = vmul.f32 %v1226, %v1334
    %v1363 = vmul.f32 %v1227, %v1338
    %v1364 = vmul.f32 %v1228, %v1310
    %v1365 = vmul.f32 %v1229, %v1314
    %v1366 = vmul.f32 %v1230, %v1318
    %v1367 = vmul.f32 %v1231, %v1322
    %v1368 = vmul.f32 %v1232, %v1326
    %v1369 = vmul.f32 %v1233, %v1330
    %v1370 = vmul.f32 %v1234, %v1334
    %v1371 = vmul.f32 %v1235, %v1338
    %v1372 = vmul.f32 %v1236, %v1310
    %v1373 = vmul.f32 %v1237, %v1314
    %v1374 = vmul.f32 %v1238, %v1318
    %v1375 = vmul.f32 %v1239, %v1322
    %v1376 = vmul.f32 %v1240, %v1326
    %v1377 = vmul.f32 %v1241, %v1330
    %v1378 = vmul.f32 %v1242, %v1334
    %v1379 = vmul.f32 %v1243, %v1338
    %v1380 = vmul.f32 %v1244, %v1310
    %v1381 = vmul.f32 %v1245, %v1314
    %v1382 = vmul.f32 %v1246, %v1318
    %v1383 = vmul.f32 %v1247, %v1322
    %v1384 = vmul.f32 %v1248, %v1326
    %v1385 = vmul.f32 %v1249, %v1330
    %v1386 = vmul.f32 %v1250, %v1334
    %v1387 = vmul.f32 %v1251, %v1338
    %v1388 = vmul.f32 %v1252, %v1310
    %v1389 = vmul.f32 %v1253, %v1314
    %v1390 = vmul.f32 %v1254, %v1318
    %v1391 = vmul.f32 %v1255, %v1322
    %v1392 = vmul.f32 %v1256, %v1326
    %v1393 = vmul.f32 %v1257, %v1330
    %v1394 = vmul.f32 %v1258, %v1334
    %v1395 = vmul.f32 %v1259, %v1338
    %v1396 = vmul.f32 %v1260, %v1310
    %v1397 = vmul.f32 %v1261, %v1314
    %v1398 = vmul.f32 %v1262, %v1318
    %v1399 = vmul.f32 %v1263, %v1322
    %v1400 = vmul.f32 %v1264, %v1326
    %v1401 = vmul.f32 %v1265, %v1330
    %v1402 = vmul.f32 %v1266, %v1334
    %v1403 = vmul.f32 %v1267, %v1338
    %v1404 = vmul.f32 %v1268, %v1310
    %v1405 = vmul.f32 %v1269, %v1314
    %v1406 = vmul.f32 %v1270, %v1318
    %v1407 = vmul.f32 %v1271, %v1322
    %v1408 = vmul.f32 %v1272, %v1326
    %v1409 = vmul.f32 %v1273, %v1330
    %v1410 = vmul.f32 %v1274, %v1334
    %v1411 = vmul.f32 %v1275, %v1338
    %v1412 = vmul.f32 %v1276, %v1310
    %v1413 = vmul.f32 %v1277, %v1314
    %v1414 = vmul.f32 %v1278, %v1318
    %v1415 = vmul.f32 %v1279, %v1322
    %v1416 = vmul.f32 %v1280, %v1326
    %v1417 = vmul.f32 %v1281, %v1330
    %v1418 = vmul.f32 %v1282, %v1334
    %v1419 = vmul.f32 %v1283, %v1338
    %v1420 = vmul.f32 %v1284, %v1310
    %v1421 = vmul.f32 %v1285, %v1314
    %v1422 = vmul.f32 %v1286, %v1318
    %v1423 = vmul.f32 %v1287, %v1322
    %v1424 = vmul.f32 %v1288, %v1326
    %v1425 = vmul.f32 %v1289, %v1330
    %v1426 = vmul.f32 %v1290, %v1334
    %v1427 = vmul.f32 %v1291, %v1338
    %v1428 = vmul.f32 %v1292, %v1310
    %v1429 = vmul.f32 %v1293, %v1314
    %v1430 = vmul.f32 %v1294, %v1318
    %v1431 = vmul.f32 %v1295, %v1322
    %v1432 = vmul.f32 %v1296, %v1326
    %v1433 = vmul.f32 %v1297, %v1330
    %v1434 = vmul.f32 %v1298, %v1334
    %v1435 = vmul.f32 %v1299, %v1338
    %v1436 = vmul.f32 %v1300, %v1310
    %v1437 = vmul.f32 %v1301, %v1314
    %v1438 = vmul.f32 %v1302, %v1318
    %v1439 = vmul.f32 %v1303, %v1322
    %v1440 = vmul.f32 %v1304, %v1326
    %v1441 = vmul.f32 %v1305, %v1330
    %v1442 = vmul.f32 %v1306, %v1334
    %v1443 = vmul.f32 %v1307, %v1338
    %1444 = vset.pattern.permute.xlu0 4
    %1445 = vperm.xlu0 %1444, %v42
    %v1446 = vpop.permute.xlu0 %1445
    %1448 = vset.pattern.permute.xlu0 4
    %1449 = vperm.xlu0 %1448, %v43
    %v1450 = vpop.permute.xlu0 %1449
    %1452 = vset.pattern.permute.xlu0 4
    %1453 = vperm.xlu0 %1452, %v44
    %v1454 = vpop.permute.xlu0 %1453
    %1456 = vset.pattern.permute.xlu0 4
    %1457 = vperm.xlu0 %1456, %v45
    %v1458 = vpop.permute.xlu0 %1457
    %1460 = vset.pattern.permute.xlu0 4
    %1461 = vperm.xlu0 %1460, %v46
    %v1462 = vpop.permute.xlu0 %1461
    %1464 = vset.pattern.permute.xlu0 4
    %1465 = vperm.xlu0 %1464, %v47
    %v1466 = vpop.permute.xlu0 %1465
    %1468 = vset.pattern.permute.xlu0 4
    %1469 = vperm.xlu0 %1468, %v48
    %v1470 = vpop.permute.xlu0 %1469
    %1472 = vset.pattern.permute.xlu0 4
    %1473 = vperm.xlu0 %1472, %v49
    %v1474 = vpop.permute.xlu0 %1473
    %v1476 = vadd.f32 %v1340, %v1446
    %v1477 = vadd.f32 %v1341, %v1450
    %v1478 = vadd.f32 %v1342, %v1454
    %v1479 = vadd.f32 %v1343, %v1458
    %v1480 = vadd.f32 %v1344, %v1462
    %v1481 = vadd.f32 %v1345, %v1466
    %v1482 = vadd.f32 %v1346, %v1470
    %v1483 = vadd.f32 %v1347, %v1474
    %v1484 = vadd.f32 %v1348, %v1446
    %v1485 = vadd.f32 %v1349, %v1450
    %v1486 = vadd.f32 %v1350, %v1454
    %v1487 = vadd.f32 %v1351, %v1458
    %v1488 = vadd.f32 %v1352, %v1462
    %v1489 = vadd.f32 %v1353, %v1466
    %v1490 = vadd.f32 %v1354, %v1470
    %v1491 = vadd.f32 %v1355, %v1474
    %v1492 = vadd.f32 %v1356, %v1446
    %v1493 = vadd.f32 %v1357, %v1450
    %v1494 = vadd.f32 %v1358, %v1454
    %v1495 = vadd.f32 %v1359, %v1458
    %v1496 = vadd.f32 %v1360, %v1462
    %v1497 = vadd.f32 %v1361, %v1466
    %v1498 = vadd.f32 %v1362, %v1470
    %v1499 = vadd.f32 %v1363, %v1474
    %v1500 = vadd.f32 %v1364, %v1446
    %v1501 = vadd.f32 %v1365, %v1450
    %v1502 = vadd.f32 %v1366, %v1454
    %v1503 = vadd.f32 %v1367, %v1458
    %v1504 = vadd.f32 %v1368, %v1462
    %v1505 = vadd.f32 %v1369, %v1466
    %v1506 = vadd.f32 %v1370, %v1470
    %v1507 = vadd.f32 %v1371, %v1474
    %v1508 = vadd.f32 %v1372, %v1446
    %v1509 = vadd.f32 %v1373, %v1450
    %v1510 = vadd.f32 %v1374, %v1454
    %v1511 = vadd.f32 %v1375, %v1458
    %v1512 = vadd.f32 %v1376, %v1462
    %v1513 = vadd.f32 %v1377, %v1466
    %v1514 = vadd.f32 %v1378, %v1470
    %v1515 = vadd.f32 %v1379, %v1474
    %v1516 = vadd.f32 %v1380, %v1446
    %v1517 = vadd.f32 %v1381, %v1450
    %v1518 = vadd.f32 %v1382, %v1454
    %v1519 = vadd.f32 %v1383, %v1458
    %v1520 = vadd.f32 %v1384, %v1462
    %v1521 = vadd.f32 %v1385, %v1466
    %v1522 = vadd.f32 %v1386, %v1470
    %v1523 = vadd.f32 %v1387, %v1474
    %v1524 = vadd.f32 %v1388, %v1446
    %v1525 = vadd.f32 %v1389, %v1450
    %v1526 = vadd.f32 %v1390, %v1454
    %v1527 = vadd.f32 %v1391, %v1458
    %v1528 = vadd.f32 %v1392, %v1462
    %v1529 = vadd.f32 %v1393, %v1466
    %v1530 = vadd.f32 %v1394, %v1470
    %v1531 = vadd.f32 %v1395, %v1474
    %v1532 = vadd.f32 %v1396, %v1446
    %v1533 = vadd.f32 %v1397, %v1450
    %v1534 = vadd.f32 %v1398, %v1454
    %v1535 = vadd.f32 %v1399, %v1458
    %v1536 = vadd.f32 %v1400, %v1462
    %v1537 = vadd.f32 %v1401, %v1466
    %v1538 = vadd.f32 %v1402, %v1470
    %v1539 = vadd.f32 %v1403, %v1474
    %v1540 = vadd.f32 %v1404, %v1446
    %v1541 = vadd.f32 %v1405, %v1450
    %v1542 = vadd.f32 %v1406, %v1454
    %v1543 = vadd.f32 %v1407, %v1458
    %v1544 = vadd.f32 %v1408, %v1462
    %v1545 = vadd.f32 %v1409, %v1466
    %v1546 = vadd.f32 %v1410, %v1470
    %v1547 = vadd.f32 %v1411, %v1474
    %v1548 = vadd.f32 %v1412, %v1446
    %v1549 = vadd.f32 %v1413, %v1450
    %v1550 = vadd.f32 %v1414, %v1454
    %v1551 = vadd.f32 %v1415, %v1458
    %v1552 = vadd.f32 %v1416, %v1462
    %v1553 = vadd.f32 %v1417, %v1466
    %v1554 = vadd.f32 %v1418, %v1470
    %v1555 = vadd.f32 %v1419, %v1474
    %v1556 = vadd.f32 %v1420, %v1446
    %v1557 = vadd.f32 %v1421, %v1450
    %v1558 = vadd.f32 %v1422, %v1454
    %v1559 = vadd.f32 %v1423, %v1458
    %v1560 = vadd.f32 %v1424, %v1462
    %v1561 = vadd.f32 %v1425, %v1466
    %v1562 = vadd.f32 %v1426, %v1470
    %v1563 = vadd.f32 %v1427, %v1474
    %v1564 = vadd.f32 %v1428, %v1446
    %v1565 = vadd.f32 %v1429, %v1450
    %v1566 = vadd.f32 %v1430, %v1454
    %v1567 = vadd.f32 %v1431, %v1458
    %v1568 = vadd.f32 %v1432, %v1462
    %v1569 = vadd.f32 %v1433, %v1466
    %v1570 = vadd.f32 %v1434, %v1470
    %v1571 = vadd.f32 %v1435, %v1474
    %v1572 = vadd.f32 %v1436, %v1446
    %v1573 = vadd.f32 %v1437, %v1450
    %v1574 = vadd.f32 %v1438, %v1454
    %v1575 = vadd.f32 %v1439, %v1458
    %v1576 = vadd.f32 %v1440, %v1462
    %v1577 = vadd.f32 %v1441, %v1466
    %v1578 = vadd.f32 %v1442, %v1470
    %v1579 = vadd.f32 %v1443, %v1474
    %v1580 = vld [vmem:[%s2] sm:$0xff]
    %v1581 = vld [vmem:[%s2 + $0x8] sm:$0xff]
    %v1582 = vld [vmem:[%s2 + $0x10] sm:$0xff]
    %v1583 = vld [vmem:[%s2 + $0x18] sm:$0xff]
    %v1584 = vld [vmem:[%s2 + $0x20] sm:$0xff]
    %v1585 = vld [vmem:[%s2 + $0x28] sm:$0xff]
    %v1586 = vld [vmem:[%s2 + $0x30] sm:$0xff]
    %v1587 = vld [vmem:[%s2 + $0x38] sm:$0xff]
    %v1588 = vld [vmem:[%s2 + $0x40] sm:$0xff]
    %v1589 = vld [vmem:[%s2 + $0x48] sm:$0xff]
    %v1590 = vld [vmem:[%s2 + $0x50] sm:$0xff]
    %v1591 = vld [vmem:[%s2 + $0x58] sm:$0xff]
    %v1592 = vld [vmem:[%s2 + $0x60] sm:$0xff]
    %v1593 = vld [vmem:[%s2 + $0x68] sm:$0xff]
    %v1594 = vld [vmem:[%s2 + $0x70] sm:$0xff]
    %v1595 = vld [vmem:[%s2 + $0x78] sm:$0xff]
    %v1596 = vld [vmem:[%s2 + $0x80] sm:$0xff]
    %v1597 = vld [vmem:[%s2 + $0x88] sm:$0xff]
    %v1598 = vld [vmem:[%s2 + $0x90] sm:$0xff]
    %v1599 = vld [vmem:[%s2 + $0x98] sm:$0xff]
    %v1600 = vld [vmem:[%s2 + $0xa0] sm:$0xff]
    %v1601 = vld [vmem:[%s2 + $0xa8] sm:$0xff]
    %v1602 = vld [vmem:[%s2 + $0xb0] sm:$0xff]
    %v1603 = vld [vmem:[%s2 + $0xb8] sm:$0xff]
    %v1604 = vld [vmem:[%s2 + $0xc0] sm:$0xff]
    %v1605 = vld [vmem:[%s2 + $0xc8] sm:$0xff]
    %v1606 = vld [vmem:[%s2 + $0xd0] sm:$0xff]
    %v1607 = vld [vmem:[%s2 + $0xd8] sm:$0xff]
    %v1608 = vld [vmem:[%s2 + $0xe0] sm:$0xff]
    %v1609 = vld [vmem:[%s2 + $0xe8] sm:$0xff]
    %v1610 = vld [vmem:[%s2 + $0xf0] sm:$0xff]
    %v1611 = vld [vmem:[%s2 + $0xf8] sm:$0xff]
    %v1612 = vld [vmem:[%s2 + $0x100] sm:$0xff]
    %v1613 = vld [vmem:[%s2 + $0x108] sm:$0xff]
    %v1614 = vld [vmem:[%s2 + $0x110] sm:$0xff]
    %v1615 = vld [vmem:[%s2 + $0x118] sm:$0xff]
    %v1616 = vld [vmem:[%s2 + $0x120] sm:$0xff]
    %v1617 = vld [vmem:[%s2 + $0x128] sm:$0xff]
    %v1618 = vld [vmem:[%s2 + $0x130] sm:$0xff]
    %v1619 = vld [vmem:[%s2 + $0x138] sm:$0xff]
    %v1620 = vld [vmem:[%s2 + $0x140] sm:$0xff]
    %v1621 = vld [vmem:[%s2 + $0x148] sm:$0xff]
    %v1622 = vld [vmem:[%s2 + $0x150] sm:$0xff]
    %v1623 = vld [vmem:[%s2 + $0x158] sm:$0xff]
    %v1624 = vld [vmem:[%s2 + $0x160] sm:$0xff]
    %v1625 = vld [vmem:[%s2 + $0x168] sm:$0xff]
    %v1626 = vld [vmem:[%s2 + $0x170] sm:$0xff]
    %v1627 = vld [vmem:[%s2 + $0x178] sm:$0xff]
    %v1628 = vld [vmem:[%s2 + $0x180] sm:$0xff]
    %v1629 = vld [vmem:[%s2 + $0x188] sm:$0xff]
    %v1630 = vld [vmem:[%s2 + $0x190] sm:$0xff]
    %v1631 = vld [vmem:[%s2 + $0x198] sm:$0xff]
    %v1632 = vld [vmem:[%s2 + $0x1a0] sm:$0xff]
    %v1633 = vld [vmem:[%s2 + $0x1a8] sm:$0xff]
    %v1634 = vld [vmem:[%s2 + $0x1b0] sm:$0xff]
    %v1635 = vld [vmem:[%s2 + $0x1b8] sm:$0xff]
    %v1636 = vld [vmem:[%s2 + $0x1c0] sm:$0xff]
    %v1637 = vld [vmem:[%s2 + $0x1c8] sm:$0xff]
    %v1638 = vld [vmem:[%s2 + $0x1d0] sm:$0xff]
    %v1639 = vld [vmem:[%s2 + $0x1d8] sm:$0xff]
    %v1640 = vld [vmem:[%s2 + $0x1e0] sm:$0xff]
    %v1641 = vld [vmem:[%s2 + $0x1e8] sm:$0xff]
    %v1642 = vld [vmem:[%s2 + $0x1f0] sm:$0xff]
    %v1643 = vld [vmem:[%s2 + $0x1f8] sm:$0xff]
    %v1644 = vld [vmem:[%s2 + $0x200] sm:$0xff]
    %v1645 = vld [vmem:[%s2 + $0x208] sm:$0xff]
    %v1646 = vld [vmem:[%s2 + $0x210] sm:$0xff]
    %v1647 = vld [vmem:[%s2 + $0x218] sm:$0xff]
    %v1648 = vld [vmem:[%s2 + $0x220] sm:$0xff]
    %v1649 = vld [vmem:[%s2 + $0x228] sm:$0xff]
    %v1650 = vld [vmem:[%s2 + $0x230] sm:$0xff]
    %v1651 = vld [vmem:[%s2 + $0x238] sm:$0xff]
    %v1652 = vld [vmem:[%s2 + $0x240] sm:$0xff]
    %v1653 = vld [vmem:[%s2 + $0x248] sm:$0xff]
    %v1654 = vld [vmem:[%s2 + $0x250] sm:$0xff]
    %v1655 = vld [vmem:[%s2 + $0x258] sm:$0xff]
    %v1656 = vld [vmem:[%s2 + $0x260] sm:$0xff]
    %v1657 = vld [vmem:[%s2 + $0x268] sm:$0xff]
    %v1658 = vld [vmem:[%s2 + $0x270] sm:$0xff]
    %v1659 = vld [vmem:[%s2 + $0x278] sm:$0xff]
    %v1660 = vld [vmem:[%s2 + $0x280] sm:$0xff]
    %v1661 = vld [vmem:[%s2 + $0x288] sm:$0xff]
    %v1662 = vld [vmem:[%s2 + $0x290] sm:$0xff]
    %v1663 = vld [vmem:[%s2 + $0x298] sm:$0xff]
    %v1664 = vld [vmem:[%s2 + $0x2a0] sm:$0xff]
    %v1665 = vld [vmem:[%s2 + $0x2a8] sm:$0xff]
    %v1666 = vld [vmem:[%s2 + $0x2b0] sm:$0xff]
    %v1667 = vld [vmem:[%s2 + $0x2b8] sm:$0xff]
    %v1668 = vld [vmem:[%s2 + $0x2c0] sm:$0xff]
    %v1669 = vld [vmem:[%s2 + $0x2c8] sm:$0xff]
    %v1670 = vld [vmem:[%s2 + $0x2d0] sm:$0xff]
    %v1671 = vld [vmem:[%s2 + $0x2d8] sm:$0xff]
    %v1672 = vld [vmem:[%s2 + $0x2e0] sm:$0xff]
    %v1673 = vld [vmem:[%s2 + $0x2e8] sm:$0xff]
    %v1674 = vld [vmem:[%s2 + $0x2f0] sm:$0xff]
    %v1675 = vld [vmem:[%s2 + $0x2f8] sm:$0xff]
    %v1676 = vld [vmem:[%s2 + $0x300] sm:$0xff]
    %v1677 = vld [vmem:[%s2 + $0x308] sm:$0xff]
    %v1678 = vld [vmem:[%s2 + $0x310] sm:$0xff]
    %v1679 = vld [vmem:[%s2 + $0x318] sm:$0xff]
    %v1680 = vld [vmem:[%s2 + $0x320] sm:$0xff]
    %v1681 = vld [vmem:[%s2 + $0x328] sm:$0xff]
    %v1682 = vld [vmem:[%s2 + $0x330] sm:$0xff]
    %v1683 = vld [vmem:[%s2 + $0x338] sm:$0xff]
    %v1684 = vld [vmem:[%s2 + $0x340] sm:$0xff]
    %v1685 = vld [vmem:[%s2 + $0x348] sm:$0xff]
    %v1686 = vld [vmem:[%s2 + $0x350] sm:$0xff]
    %v1687 = vld [vmem:[%s2 + $0x358] sm:$0xff]
    %v1688 = vld [vmem:[%s2 + $0x360] sm:$0xff]
    %v1689 = vld [vmem:[%s2 + $0x368] sm:$0xff]
    %v1690 = vld [vmem:[%s2 + $0x370] sm:$0xff]
    %v1691 = vld [vmem:[%s2 + $0x378] sm:$0xff]
    %v1692 = vld [vmem:[%s2 + $0x380] sm:$0xff]
    %v1693 = vld [vmem:[%s2 + $0x388] sm:$0xff]
    %v1694 = vld [vmem:[%s2 + $0x390] sm:$0xff]
    %v1695 = vld [vmem:[%s2 + $0x398] sm:$0xff]
    %v1696 = vld [vmem:[%s2 + $0x3a0] sm:$0xff]
    %v1697 = vld [vmem:[%s2 + $0x3a8] sm:$0xff]
    %v1698 = vld [vmem:[%s2 + $0x3b0] sm:$0xff]
    %v1699 = vld [vmem:[%s2 + $0x3b8] sm:$0xff]
    %v1700 = vld [vmem:[%s2 + $0x3c0] sm:$0xff]
    %v1701 = vld [vmem:[%s2 + $0x3c8] sm:$0xff]
    %v1702 = vld [vmem:[%s2 + $0x3d0] sm:$0xff]
    %v1703 = vld [vmem:[%s2 + $0x3d8] sm:$0xff]
    %v1704 = vld [vmem:[%s2 + $0x3e0] sm:$0xff]
    %v1705 = vld [vmem:[%s2 + $0x3e8] sm:$0xff]
    %v1706 = vld [vmem:[%s2 + $0x3f0] sm:$0xff]
    %v1707 = vld [vmem:[%s2 + $0x3f8] sm:$0xff]
    %v1708 = vld [vmem:[%s2 + $0x400] sm:$0xff]
    %v1709 = vld [vmem:[%s2 + $0x408] sm:$0xff]
    %v1710 = vld [vmem:[%s2 + $0x410] sm:$0xff]
    %v1711 = vld [vmem:[%s2 + $0x418] sm:$0xff]
    %v1712 = vld [vmem:[%s2 + $0x420] sm:$0xff]
    %v1713 = vld [vmem:[%s2 + $0x428] sm:$0xff]
    %v1714 = vld [vmem:[%s2 + $0x430] sm:$0xff]
    %v1715 = vld [vmem:[%s2 + $0x438] sm:$0xff]
    %v1716 = vld [vmem:[%s2 + $0x440] sm:$0xff]
    %v1717 = vld [vmem:[%s2 + $0x448] sm:$0xff]
    %v1718 = vld [vmem:[%s2 + $0x450] sm:$0xff]
    %v1719 = vld [vmem:[%s2 + $0x458] sm:$0xff]
    %v1720 = vld [vmem:[%s2 + $0x460] sm:$0xff]
    %v1721 = vld [vmem:[%s2 + $0x468] sm:$0xff]
    %v1722 = vld [vmem:[%s2 + $0x470] sm:$0xff]
    %v1723 = vld [vmem:[%s2 + $0x478] sm:$0xff]
    %v1724 = vld [vmem:[%s2 + $0x480] sm:$0xff]
    %v1725 = vld [vmem:[%s2 + $0x488] sm:$0xff]
    %v1726 = vld [vmem:[%s2 + $0x490] sm:$0xff]
    %v1727 = vld [vmem:[%s2 + $0x498] sm:$0xff]
    %v1728 = vld [vmem:[%s2 + $0x4a0] sm:$0xff]
    %v1729 = vld [vmem:[%s2 + $0x4a8] sm:$0xff]
    %v1730 = vld [vmem:[%s2 + $0x4b0] sm:$0xff]
    %v1731 = vld [vmem:[%s2 + $0x4b8] sm:$0xff]
    %v1732 = vld [vmem:[%s2 + $0x4c0] sm:$0xff]
    %v1733 = vld [vmem:[%s2 + $0x4c8] sm:$0xff]
    %v1734 = vld [vmem:[%s2 + $0x4d0] sm:$0xff]
    %v1735 = vld [vmem:[%s2 + $0x4d8] sm:$0xff]
    %v1736 = vld [vmem:[%s2 + $0x4e0] sm:$0xff]
    %v1737 = vld [vmem:[%s2 + $0x4e8] sm:$0xff]
    %v1738 = vld [vmem:[%s2 + $0x4f0] sm:$0xff]
    %v1739 = vld [vmem:[%s2 + $0x4f8] sm:$0xff]
    %1740 = vset.pattern.permute.xlu0 1
    %1741 = vperm.xlu0 %1740, %v42
    %v1742 = vpop.permute.xlu0 %1741
    %1744 = vset.pattern.permute.xlu0 1
    %1745 = vperm.xlu0 %1744, %v43
    %v1746 = vpop.permute.xlu0 %1745
    %1748 = vset.pattern.permute.xlu0 1
    %1749 = vperm.xlu0 %1748, %v44
    %v1750 = vpop.permute.xlu0 %1749
    %1752 = vset.pattern.permute.xlu0 1
    %1753 = vperm.xlu0 %1752, %v45
    %v1754 = vpop.permute.xlu0 %1753
    %1756 = vset.pattern.permute.xlu0 1
    %1757 = vperm.xlu0 %1756, %v46
    %v1758 = vpop.permute.xlu0 %1757
    %1760 = vset.pattern.permute.xlu0 1
    %1761 = vperm.xlu0 %1760, %v47
    %v1762 = vpop.permute.xlu0 %1761
    %1764 = vset.pattern.permute.xlu0 1
    %1765 = vperm.xlu0 %1764, %v48
    %v1766 = vpop.permute.xlu0 %1765
    %1768 = vset.pattern.permute.xlu0 1
    %1769 = vperm.xlu0 %1768, %v49
    %v1770 = vpop.permute.xlu0 %1769
    %1772 = vmatprep.subr.mxu0 0.0
    %1773 = vmatpush1.msra.mxu0 %v1491
    %1774 = vmatprep.subr.mxu0 0.0
    %1775 = vmatpush1.msra.mxu0 %v1490
    %1776 = vmatprep.subr.mxu0 0.0
    %1777 = vmatpush1.msra.mxu0 %v1489
    %1778 = vmatprep.subr.mxu0 0.0
    %1779 = vmatpush1.msra.mxu0 %v1488
    %1780 = vmatprep.subr.mxu0 0.0
    %1781 = vmatpush1.msra.mxu0 %v1487
    %1782 = vmatprep.subr.mxu0 0.0
    %1783 = vmatpush1.msra.mxu0 %v1486
    %1784 = vmatprep.subr.mxu0 0.0
    %1785 = vmatpush1.msra.mxu0 %v1485
    %1786 = vmatprep.subr.mxu0 0.0
    %1787 = vmatpush1.msra.mxu0 %v1484
    %1788 = vmatprep.subr.mxu0 0.0
    %1789 = vmatpush1.msra.mxu0 %v1483
    %1790 = vmatprep.subr.mxu0 0.0
    %1791 = vmatpush1.msra.mxu0 %v1482
    %1792 = vmatprep.subr.mxu0 0.0
    %1793 = vmatpush1.msra.mxu0 %v1481
    %1794 = vmatprep.subr.mxu0 0.0
    %1795 = vmatpush1.msra.mxu0 %v1480
    %1796 = vmatprep.subr.mxu0 0.0
    %1797 = vmatpush1.msra.mxu0 %v1479
    %1798 = vmatprep.subr.mxu0 0.0
    %1799 = vmatpush1.msra.mxu0 %v1478
    %1800 = vmatprep.subr.mxu0 0.0
    %1801 = vmatpush1.msra.mxu0 %v1477
    %1802 = vmatprep.subr.mxu0 0.0
    %1803 = vmatpush1.msra.mxu0 %v1476
    %1804 = vmatprep.subr.mxu0 0.0
    %1805 = vmatpush2.msra.mxu0 %v1507
    %1806 = vmatprep.subr.mxu0 0.0
    %1807 = vmatpush2.msra.mxu0 %v1506
    %1808 = vmatprep.subr.mxu0 0.0
    %1809 = vmatpush2.msra.mxu0 %v1505
    %1810 = vmatprep.subr.mxu0 0.0
    %1811 = vmatpush2.msra.mxu0 %v1504
    %1812 = vmatprep.subr.mxu0 0.0
    %1813 = vmatpush2.msra.mxu0 %v1503
    %1814 = vmatprep.subr.mxu0 0.0
    %1815 = vmatpush2.msra.mxu0 %v1502
    %1816 = vmatprep.subr.mxu0 0.0
    %1817 = vmatpush2.msra.mxu0 %v1501
    %1818 = vmatprep.subr.mxu0 0.0
    %1819 = vmatpush2.msra.mxu0 %v1500
    %1820 = vmatprep.subr.mxu0 0.0
    %1821 = vmatpush2.msra.mxu0 %v1499
    %1822 = vmatprep.subr.mxu0 0.0
    %1823 = vmatpush2.msra.mxu0 %v1498
    %1824 = vmatprep.subr.mxu0 0.0
    %1825 = vmatpush2.msra.mxu0 %v1497
    %1826 = vmatprep.subr.mxu0 0.0
    %1827 = vmatpush2.msra.mxu0 %v1496
    %1828 = vmatprep.subr.mxu0 0.0
    %1829 = vmatpush2.msra.mxu0 %v1495
    %1830 = vmatprep.subr.mxu0 0.0
    %1831 = vmatpush2.msra.mxu0 %v1494
    %1832 = vmatprep.subr.mxu0 0.0
    %1833 = vmatpush2.msra.mxu0 %v1493
    %1834 = vmatprep.subr.mxu0 0.0
    %1835 = vmatpush2.msra.mxu0 %v1492
    %1836 = vmatprep.mubr.f32.mxu0 %v1581
    %1837 = vmatmul.mubr.f32.gmra.mxu0 %v1580
    %v1838 = vpop.f32.mrf.mxu0
    %v1839 = vadd.f32 %v1742, %v1838
    %v1840 = vpop.f32.mrf.mxu0
    %1841 = vmatprep.mubr.f32.mxu0 %v1583
    %1842 = vmatmul.mubr.f32.gmra.mxu0 %v1582
    %v1843 = vpop.f32.mrf.mxu0
    %v1844 = vadd.f32 %v1746, %v1843
    %v1845 = vpop.f32.mrf.mxu0
    %1846 = vmatprep.mubr.f32.mxu0 %v1585
    %1847 = vmatmul.mubr.f32.gmra.mxu0 %v1584
    %v1848 = vpop.f32.mrf.mxu0
    %v1849 = vadd.f32 %v1750, %v1848
    %v1850 = vpop.f32.mrf.mxu0
    %1851 = vmatprep.mubr.f32.mxu0 %v1587
    %1852 = vmatmul.mubr.f32.gmra.mxu0 %v1586
    %v1853 = vpop.f32.mrf.mxu0
    %v1854 = vadd.f32 %v1754, %v1853
    %v1855 = vpop.f32.mrf.mxu0
    %1856 = vmatprep.mubr.f32.mxu0 %v1589
    %1857 = vmatmul.mubr.f32.gmra.mxu0 %v1588
    %v1858 = vpop.f32.mrf.mxu0
    %v1859 = vadd.f32 %v1758, %v1858
    %v1860 = vpop.f32.mrf.mxu0
    %1861 = vmatprep.mubr.f32.mxu0 %v1591
    %1862 = vmatmul.mubr.f32.gmra.mxu0 %v1590
    %v1863 = vpop.f32.mrf.mxu0
    %v1864 = vadd.f32 %v1762, %v1863
    %v1865 = vpop.f32.mrf.mxu0
    %1866 = vmatprep.mubr.f32.mxu0 %v1593
    %1867 = vmatmul.mubr.f32.gmra.mxu0 %v1592
    %v1868 = vpop.f32.mrf.mxu0
    %v1869 = vadd.f32 %v1766, %v1868
    %v1870 = vpop.f32.mrf.mxu0
    %1871 = vmatprep.mubr.f32.mxu0 %v1595
    %1872 = vmatmul.mubr.f32.gmra.mxu0 %v1594
    %v1873 = vpop.f32.mrf.mxu0
    %v1874 = vadd.f32 %v1770, %v1873
    %v1875 = vpop.f32.mrf.mxu0
    %1876 = vdwg.mxu0
    %1877 = vmatprep.subr.mxu0 0.0
    %1878 = vmatpush1.msra.mxu0 %v1499
    %1879 = vmatprep.subr.mxu0 0.0
    %1880 = vmatpush1.msra.mxu0 %v1498
    %1881 = vmatprep.subr.mxu0 0.0
    %1882 = vmatpush1.msra.mxu0 %v1497
    %1883 = vmatprep.subr.mxu0 0.0
    %1884 = vmatpush1.msra.mxu0 %v1496
    %1885 = vmatprep.subr.mxu0 0.0
    %1886 = vmatpush1.msra.mxu0 %v1495
    %1887 = vmatprep.subr.mxu0 0.0
    %1888 = vmatpush1.msra.mxu0 %v1494
    %1889 = vmatprep.subr.mxu0 0.0
    %1890 = vmatpush1.msra.mxu0 %v1493
    %1891 = vmatprep.subr.mxu0 0.0
    %1892 = vmatpush1.msra.mxu0 %v1492
    %1893 = vmatprep.subr.mxu0 0.0
    %1894 = vmatpush1.msra.mxu0 %v1491
    %1895 = vmatprep.subr.mxu0 0.0
    %1896 = vmatpush1.msra.mxu0 %v1490
    %1897 = vmatprep.subr.mxu0 0.0
    %1898 = vmatpush1.msra.mxu0 %v1489
    %1899 = vmatprep.subr.mxu0 0.0
    %1900 = vmatpush1.msra.mxu0 %v1488
    %1901 = vmatprep.subr.mxu0 0.0
    %1902 = vmatpush1.msra.mxu0 %v1487
    %1903 = vmatprep.subr.mxu0 0.0
    %1904 = vmatpush1.msra.mxu0 %v1486
    %1905 = vmatprep.subr.mxu0 0.0
    %1906 = vmatpush1.msra.mxu0 %v1485
    %1907 = vmatprep.subr.mxu0 0.0
    %1908 = vmatpush1.msra.mxu0 %v1484
    %1909 = vmatprep.subr.mxu0 0.0
    %1910 = vmatpush2.msra.mxu0 %v1515
    %1911 = vmatprep.subr.mxu0 0.0
    %1912 = vmatpush2.msra.mxu0 %v1514
    %1913 = vmatprep.subr.mxu0 0.0
    %1914 = vmatpush2.msra.mxu0 %v1513
    %1915 = vmatprep.subr.mxu0 0.0
    %1916 = vmatpush2.msra.mxu0 %v1512
    %1917 = vmatprep.subr.mxu0 0.0
    %1918 = vmatpush2.msra.mxu0 %v1511
    %1919 = vmatprep.subr.mxu0 0.0
    %1920 = vmatpush2.msra.mxu0 %v1510
    %1921 = vmatprep.subr.mxu0 0.0
    %1922 = vmatpush2.msra.mxu0 %v1509
    %1923 = vmatprep.subr.mxu0 0.0
    %1924 = vmatpush2.msra.mxu0 %v1508
    %1925 = vmatprep.subr.mxu0 0.0
    %1926 = vmatpush2.msra.mxu0 %v1507
    %1927 = vmatprep.subr.mxu0 0.0
    %1928 = vmatpush2.msra.mxu0 %v1506
    %1929 = vmatprep.subr.mxu0 0.0
    %1930 = vmatpush2.msra.mxu0 %v1505
    %1931 = vmatprep.subr.mxu0 0.0
    %1932 = vmatpush2.msra.mxu0 %v1504
    %1933 = vmatprep.subr.mxu0 0.0
    %1934 = vmatpush2.msra.mxu0 %v1503
    %1935 = vmatprep.subr.mxu0 0.0
    %1936 = vmatpush2.msra.mxu0 %v1502
    %1937 = vmatprep.subr.mxu0 0.0
    %1938 = vmatpush2.msra.mxu0 %v1501
    %1939 = vmatprep.subr.mxu0 0.0
    %1940 = vmatpush2.msra.mxu0 %v1500
    %1941 = vmatprep.mubr.f32.mxu0 %v1597
    %1942 = vmatmul.mubr.f32.gmra.mxu0 %v1596
    %v1943 = vpop.f32.mrf.mxu0
    %v1944 = vadd.f32 %v1742, %v1943
    %v1945 = vpop.f32.mrf.mxu0
    %1946 = vmatprep.mubr.f32.mxu0 %v1599
    %1947 = vmatmul.mubr.f32.gmra.mxu0 %v1598
    %v1948 = vpop.f32.mrf.mxu0
    %v1949 = vadd.f32 %v1746, %v1948
    %v1950 = vpop.f32.mrf.mxu0
    %1951 = vmatprep.mubr.f32.mxu0 %v1601
    %1952 = vmatmul.mubr.f32.gmra.mxu0 %v1600
    %v1953 = vpop.f32.mrf.mxu0
    %v1954 = vadd.f32 %v1750, %v1953
    %v1955 = vpop.f32.mrf.mxu0
    %1956 = vmatprep.mubr.f32.mxu0 %v1603
    %1957 = vmatmul.mubr.f32.gmra.mxu0 %v1602
    %v1958 = vpop.f32.mrf.mxu0
    %v1959 = vadd.f32 %v1754, %v1958
    %v1960 = vpop.f32.mrf.mxu0
    %1961 = vmatprep.mubr.f32.mxu0 %v1605
    %1962 = vmatmul.mubr.f32.gmra.mxu0 %v1604
    %v1963 = vpop.f32.mrf.mxu0
    %v1964 = vadd.f32 %v1758, %v1963
    %v1965 = vpop.f32.mrf.mxu0
    %1966 = vmatprep.mubr.f32.mxu0 %v1607
    %1967 = vmatmul.mubr.f32.gmra.mxu0 %v1606
    %v1968 = vpop.f32.mrf.mxu0
    %v1969 = vadd.f32 %v1762, %v1968
    %v1970 = vpop.f32.mrf.mxu0
    %1971 = vmatprep.mubr.f32.mxu0 %v1609
    %1972 = vmatmul.mubr.f32.gmra.mxu0 %v1608
    %v1973 = vpop.f32.mrf.mxu0
    %v1974 = vadd.f32 %v1766, %v1973
    %v1975 = vpop.f32.mrf.mxu0
    %1976 = vmatprep.mubr.f32.mxu0 %v1611
    %1977 = vmatmul.mubr.f32.gmra.mxu0 %v1610
    %v1978 = vpop.f32.mrf.mxu0
    %v1979 = vadd.f32 %v1770, %v1978
    %v1980 = vpop.f32.mrf.mxu0
    %1981 = vdwg.mxu0
    %1982 = vmatprep.subr.mxu0 0.0
    %1983 = vmatpush1.msra.mxu0 %v1507
    %1984 = vmatprep.subr.mxu0 0.0
    %1985 = vmatpush1.msra.mxu0 %v1506
    %1986 = vmatprep.subr.mxu0 0.0
    %1987 = vmatpush1.msra.mxu0 %v1505
    %1988 = vmatprep.subr.mxu0 0.0
    %1989 = vmatpush1.msra.mxu0 %v1504
    %1990 = vmatprep.subr.mxu0 0.0
    %1991 = vmatpush1.msra.mxu0 %v1503
    %1992 = vmatprep.subr.mxu0 0.0
    %1993 = vmatpush1.msra.mxu0 %v1502
    %1994 = vmatprep.subr.mxu0 0.0
    %1995 = vmatpush1.msra.mxu0 %v1501
    %1996 = vmatprep.subr.mxu0 0.0
    %1997 = vmatpush1.msra.mxu0 %v1500
    %1998 = vmatprep.subr.mxu0 0.0
    %1999 = vmatpush1.msra.mxu0 %v1499
    %2000 = vmatprep.subr.mxu0 0.0
    %2001 = vmatpush1.msra.mxu0 %v1498
    %2002 = vmatprep.subr.mxu0 0.0
    %2003 = vmatpush1.msra.mxu0 %v1497
    %2004 = vmatprep.subr.mxu0 0.0
    %2005 = vmatpush1.msra.mxu0 %v1496
    %2006 = vmatprep.subr.mxu0 0.0
    %2007 = vmatpush1.msra.mxu0 %v1495
    %2008 = vmatprep.subr.mxu0 0.0
    %2009 = vmatpush1.msra.mxu0 %v1494
    %2010 = vmatprep.subr.mxu0 0.0
    %2011 = vmatpush1.msra.mxu0 %v1493
    %2012 = vmatprep.subr.mxu0 0.0
    %2013 = vmatpush1.msra.mxu0 %v1492
    %2014 = vmatprep.subr.mxu0 0.0
    %2015 = vmatpush2.msra.mxu0 %v1523
    %2016 = vmatprep.subr.mxu0 0.0
    %2017 = vmatpush2.msra.mxu0 %v1522
    %2018 = vmatprep.subr.mxu0 0.0
    %2019 = vmatpush2.msra.mxu0 %v1521
    %2020 = vmatprep.subr.mxu0 0.0
    %2021 = vmatpush2.msra.mxu0 %v1520
    %2022 = vmatprep.subr.mxu0 0.0
    %2023 = vmatpush2.msra.mxu0 %v1519
    %2024 = vmatprep.subr.mxu0 0.0
    %2025 = vmatpush2.msra.mxu0 %v1518
    %2026 = vmatprep.subr.mxu0 0.0
    %2027 = vmatpush2.msra.mxu0 %v1517
    %2028 = vmatprep.subr.mxu0 0.0
    %2029 = vmatpush2.msra.mxu0 %v1516
    %2030 = vmatprep.subr.mxu0 0.0
    %2031 = vmatpush2.msra.mxu0 %v1515
    %2032 = vmatprep.subr.mxu0 0.0
    %2033 = vmatpush2.msra.mxu0 %v1514
    %2034 = vmatprep.subr.mxu0 0.0
    %2035 = vmatpush2.msra.mxu0 %v1513
    %2036 = vmatprep.subr.mxu0 0.0
    %2037 = vmatpush2.msra.mxu0 %v1512
    %2038 = vmatprep.subr.mxu0 0.0
    %2039 = vmatpush2.msra.mxu0 %v1511
    %2040 = vmatprep.subr.mxu0 0.0
    %2041 = vmatpush2.msra.mxu0 %v1510
    %2042 = vmatprep.subr.mxu0 0.0
    %2043 = vmatpush2.msra.mxu0 %v1509
    %2044 = vmatprep.subr.mxu0 0.0
    %2045 = vmatpush2.msra.mxu0 %v1508
    %2046 = vmatprep.mubr.f32.mxu0 %v1613
    %2047 = vmatmul.mubr.f32.gmra.mxu0 %v1612
    %v2048 = vpop.f32.mrf.mxu0
    %v2049 = vadd.f32 %v1742, %v2048
    %v2050 = vpop.f32.mrf.mxu0
    %2051 = vmatprep.mubr.f32.mxu0 %v1615
    %2052 = vmatmul.mubr.f32.gmra.mxu0 %v1614
    %v2053 = vpop.f32.mrf.mxu0
    %v2054 = vadd.f32 %v1746, %v2053
    %v2055 = vpop.f32.mrf.mxu0
    %2056 = vmatprep.mubr.f32.mxu0 %v1617
    %2057 = vmatmul.mubr.f32.gmra.mxu0 %v1616
    %v2058 = vpop.f32.mrf.mxu0
    %v2059 = vadd.f32 %v1750, %v2058
    %v2060 = vpop.f32.mrf.mxu0
    %2061 = vmatprep.mubr.f32.mxu0 %v1619
    %2062 = vmatmul.mubr.f32.gmra.mxu0 %v1618
    %v2063 = vpop.f32.mrf.mxu0
    %v2064 = vadd.f32 %v1754, %v2063
    %v2065 = vpop.f32.mrf.mxu0
    %2066 = vmatprep.mubr.f32.mxu0 %v1621
    %2067 = vmatmul.mubr.f32.gmra.mxu0 %v1620
    %v2068 = vpop.f32.mrf.mxu0
    %v2069 = vadd.f32 %v1758, %v2068
    %v2070 = vpop.f32.mrf.mxu0
    %2071 = vmatprep.mubr.f32.mxu0 %v1623
    %2072 = vmatmul.mubr.f32.gmra.mxu0 %v1622
    %v2073 = vpop.f32.mrf.mxu0
    %v2074 = vadd.f32 %v1762, %v2073
    %v2075 = vpop.f32.mrf.mxu0
    %2076 = vmatprep.mubr.f32.mxu0 %v1625
    %2077 = vmatmul.mubr.f32.gmra.mxu0 %v1624
    %v2078 = vpop.f32.mrf.mxu0
    %v2079 = vadd.f32 %v1766, %v2078
    %v2080 = vpop.f32.mrf.mxu0
    %2081 = vmatprep.mubr.f32.mxu0 %v1627
    %2082 = vmatmul.mubr.f32.gmra.mxu0 %v1626
    %v2083 = vpop.f32.mrf.mxu0
    %v2084 = vadd.f32 %v1770, %v2083
    %v2085 = vpop.f32.mrf.mxu0
    %2086 = vdwg.mxu0
    %2087 = vmatprep.subr.mxu0 0.0
    %2088 = vmatpush1.msra.mxu0 %v1515
    %2089 = vmatprep.subr.mxu0 0.0
    %2090 = vmatpush1.msra.mxu0 %v1514
    %2091 = vmatprep.subr.mxu0 0.0
    %2092 = vmatpush1.msra.mxu0 %v1513
    %2093 = vmatprep.subr.mxu0 0.0
    %2094 = vmatpush1.msra.mxu0 %v1512
    %2095 = vmatprep.subr.mxu0 0.0
    %2096 = vmatpush1.msra.mxu0 %v1511
    %2097 = vmatprep.subr.mxu0 0.0
    %2098 = vmatpush1.msra.mxu0 %v1510
    %2099 = vmatprep.subr.mxu0 0.0
    %2100 = vmatpush1.msra.mxu0 %v1509
    %2101 = vmatprep.subr.mxu0 0.0
    %2102 = vmatpush1.msra.mxu0 %v1508
    %2103 = vmatprep.subr.mxu0 0.0
    %2104 = vmatpush1.msra.mxu0 %v1507
    %2105 = vmatprep.subr.mxu0 0.0
    %2106 = vmatpush1.msra.mxu0 %v1506
    %2107 = vmatprep.subr.mxu0 0.0
    %2108 = vmatpush1.msra.mxu0 %v1505
    %2109 = vmatprep.subr.mxu0 0.0
    %2110 = vmatpush1.msra.mxu0 %v1504
    %2111 = vmatprep.subr.mxu0 0.0
    %2112 = vmatpush1.msra.mxu0 %v1503
    %2113 = vmatprep.subr.mxu0 0.0
    %2114 = vmatpush1.msra.mxu0 %v1502
    %2115 = vmatprep.subr.mxu0 0.0
    %2116 = vmatpush1.msra.mxu0 %v1501
    %2117 = vmatprep.subr.mxu0 0.0
    %2118 = vmatpush1.msra.mxu0 %v1500
    %2119 = vmatprep.subr.mxu0 0.0
    %2120 = vmatpush2.msra.mxu0 %v1531
    %2121 = vmatprep.subr.mxu0 0.0
    %2122 = vmatpush2.msra.mxu0 %v1530
    %2123 = vmatprep.subr.mxu0 0.0
    %2124 = vmatpush2.msra.mxu0 %v1529
    %2125 = vmatprep.subr.mxu0 0.0
    %2126 = vmatpush2.msra.mxu0 %v1528
    %2127 = vmatprep.subr.mxu0 0.0
    %2128 = vmatpush2.msra.mxu0 %v1527
    %2129 = vmatprep.subr.mxu0 0.0
    %2130 = vmatpush2.msra.mxu0 %v1526
    %2131 = vmatprep.subr.mxu0 0.0
    %2132 = vmatpush2.msra.mxu0 %v1525
    %2133 = vmatprep.subr.mxu0 0.0
    %2134 = vmatpush2.msra.mxu0 %v1524
    %2135 = vmatprep.subr.mxu0 0.0
    %2136 = vmatpush2.msra.mxu0 %v1523
    %2137 = vmatprep.subr.mxu0 0.0
    %2138 = vmatpush2.msra.mxu0 %v1522
    %2139 = vmatprep.subr.mxu0 0.0
    %2140 = vmatpush2.msra.mxu0 %v1521
    %2141 = vmatprep.subr.mxu0 0.0
    %2142 = vmatpush2.msra.mxu0 %v1520
    %2143 = vmatprep.subr.mxu0 0.0
    %2144 = vmatpush2.msra.mxu0 %v1519
    %2145 = vmatprep.subr.mxu0 0.0
    %2146 = vmatpush2.msra.mxu0 %v1518
    %2147 = vmatprep.subr.mxu0 0.0
    %2148 = vmatpush2.msra.mxu0 %v1517
    %2149 = vmatprep.subr.mxu0 0.0
    %2150 = vmatpush2.msra.mxu0 %v1516
    %2151 = vmatprep.mubr.f32.mxu0 %v1629
    %2152 = vmatmul.mubr.f32.gmra.mxu0 %v1628
    %v2153 = vpop.f32.mrf.mxu0
    %v2154 = vadd.f32 %v1742, %v2153
    %v2155 = vpop.f32.mrf.mxu0
    %2156 = vmatprep.mubr.f32.mxu0 %v1631
    %2157 = vmatmul.mubr.f32.gmra.mxu0 %v1630
    %v2158 = vpop.f32.mrf.mxu0
    %v2159 = vadd.f32 %v1746, %v2158
    %v2160 = vpop.f32.mrf.mxu0
    %2161 = vmatprep.mubr.f32.mxu0 %v1633
    %2162 = vmatmul.mubr.f32.gmra.mxu0 %v1632
    %v2163 = vpop.f32.mrf.mxu0
    %v2164 = vadd.f32 %v1750, %v2163
    %v2165 = vpop.f32.mrf.mxu0
    %2166 = vmatprep.mubr.f32.mxu0 %v1635
    %2167 = vmatmul.mubr.f32.gmra.mxu0 %v1634
    %v2168 = vpop.f32.mrf.mxu0
    %v2169 = vadd.f32 %v1754, %v2168
    %v2170 = vpop.f32.mrf.mxu0
    %2171 = vmatprep.mubr.f32.mxu0 %v1637
    %2172 = vmatmul.mubr.f32.gmra.mxu0 %v1636
    %v2173 = vpop.f32.mrf.mxu0
    %v2174 = vadd.f32 %v1758, %v2173
    %v2175 = vpop.f32.mrf.mxu0
    %2176 = vmatprep.mubr.f32.mxu0 %v1639
    %2177 = vmatmul.mubr.f32.gmra.mxu0 %v1638
    %v2178 = vpop.f32.mrf.mxu0
    %v2179 = vadd.f32 %v1762, %v2178
    %v2180 = vpop.f32.mrf.mxu0
    %2181 = vmatprep.mubr.f32.mxu0 %v1641
    %2182 = vmatmul.mubr.f32.gmra.mxu0 %v1640
    %v2183 = vpop.f32.mrf.mxu0
    %v2184 = vadd.f32 %v1766, %v2183
    %v2185 = vpop.f32.mrf.mxu0
    %2186 = vmatprep.mubr.f32.mxu0 %v1643
    %2187 = vmatmul.mubr.f32.gmra.mxu0 %v1642
    %v2188 = vpop.f32.mrf.mxu0
    %v2189 = vadd.f32 %v1770, %v2188
    %v2190 = vpop.f32.mrf.mxu0
    %2191 = vdwg.mxu0
    %2192 = vmatprep.subr.mxu0 0.0
    %2193 = vmatpush1.msra.mxu0 %v1523
    %2194 = vmatprep.subr.mxu0 0.0
    %2195 = vmatpush1.msra.mxu0 %v1522
    %2196 = vmatprep.subr.mxu0 0.0
    %2197 = vmatpush1.msra.mxu0 %v1521
    %2198 = vmatprep.subr.mxu0 0.0
    %2199 = vmatpush1.msra.mxu0 %v1520
    %2200 = vmatprep.subr.mxu0 0.0
    %2201 = vmatpush1.msra.mxu0 %v1519
    %2202 = vmatprep.subr.mxu0 0.0
    %2203 = vmatpush1.msra.mxu0 %v1518
    %2204 = vmatprep.subr.mxu0 0.0
    %2205 = vmatpush1.msra.mxu0 %v1517
    %2206 = vmatprep.subr.mxu0 0.0
    %2207 = vmatpush1.msra.mxu0 %v1516
    %2208 = vmatprep.subr.mxu0 0.0
    %2209 = vmatpush1.msra.mxu0 %v1515
    %2210 = vmatprep.subr.mxu0 0.0
    %2211 = vmatpush1.msra.mxu0 %v1514
    %2212 = vmatprep.subr.mxu0 0.0
    %2213 = vmatpush1.msra.mxu0 %v1513
    %2214 = vmatprep.subr.mxu0 0.0
    %2215 = vmatpush1.msra.mxu0 %v1512
    %2216 = vmatprep.subr.mxu0 0.0
    %2217 = vmatpush1.msra.mxu0 %v1511
    %2218 = vmatprep.subr.mxu0 0.0
    %2219 = vmatpush1.msra.mxu0 %v1510
    %2220 = vmatprep.subr.mxu0 0.0
    %2221 = vmatpush1.msra.mxu0 %v1509
    %2222 = vmatprep.subr.mxu0 0.0
    %2223 = vmatpush1.msra.mxu0 %v1508
    %2224 = vmatprep.subr.mxu0 0.0
    %2225 = vmatpush2.msra.mxu0 %v1539
    %2226 = vmatprep.subr.mxu0 0.0
    %2227 = vmatpush2.msra.mxu0 %v1538
    %2228 = vmatprep.subr.mxu0 0.0
    %2229 = vmatpush2.msra.mxu0 %v1537
    %2230 = vmatprep.subr.mxu0 0.0
    %2231 = vmatpush2.msra.mxu0 %v1536
    %2232 = vmatprep.subr.mxu0 0.0
    %2233 = vmatpush2.msra.mxu0 %v1535
    %2234 = vmatprep.subr.mxu0 0.0
    %2235 = vmatpush2.msra.mxu0 %v1534
    %2236 = vmatprep.subr.mxu0 0.0
    %2237 = vmatpush2.msra.mxu0 %v1533
    %2238 = vmatprep.subr.mxu0 0.0
    %2239 = vmatpush2.msra.mxu0 %v1532
    %2240 = vmatprep.subr.mxu0 0.0
    %2241 = vmatpush2.msra.mxu0 %v1531
    %2242 = vmatprep.subr.mxu0 0.0
    %2243 = vmatpush2.msra.mxu0 %v1530
    %2244 = vmatprep.subr.mxu0 0.0
    %2245 = vmatpush2.msra.mxu0 %v1529
    %2246 = vmatprep.subr.mxu0 0.0
    %2247 = vmatpush2.msra.mxu0 %v1528
    %2248 = vmatprep.subr.mxu0 0.0
    %2249 = vmatpush2.msra.mxu0 %v1527
    %2250 = vmatprep.subr.mxu0 0.0
    %2251 = vmatpush2.msra.mxu0 %v1526
    %2252 = vmatprep.subr.mxu0 0.0
    %2253 = vmatpush2.msra.mxu0 %v1525
    %2254 = vmatprep.subr.mxu0 0.0
    %2255 = vmatpush2.msra.mxu0 %v1524
    %2256 = vmatprep.mubr.f32.mxu0 %v1645
    %2257 = vmatmul.mubr.f32.gmra.mxu0 %v1644
    %v2258 = vpop.f32.mrf.mxu0
    %v2259 = vadd.f32 %v1742, %v2258
    %v2260 = vpop.f32.mrf.mxu0
    %2261 = vmatprep.mubr.f32.mxu0 %v1647
    %2262 = vmatmul.mubr.f32.gmra.mxu0 %v1646
    %v2263 = vpop.f32.mrf.mxu0
    %v2264 = vadd.f32 %v1746, %v2263
    %v2265 = vpop.f32.mrf.mxu0
    %2266 = vmatprep.mubr.f32.mxu0 %v1649
    %2267 = vmatmul.mubr.f32.gmra.mxu0 %v1648
    %v2268 = vpop.f32.mrf.mxu0
    %v2269 = vadd.f32 %v1750, %v2268
    %v2270 = vpop.f32.mrf.mxu0
    %2271 = vmatprep.mubr.f32.mxu0 %v1651
    %2272 = vmatmul.mubr.f32.gmra.mxu0 %v1650
    %v2273 = vpop.f32.mrf.mxu0
    %v2274 = vadd.f32 %v1754, %v2273
    %v2275 = vpop.f32.mrf.mxu0
    %2276 = vmatprep.mubr.f32.mxu0 %v1653
    %2277 = vmatmul.mubr.f32.gmra.mxu0 %v1652
    %v2278 = vpop.f32.mrf.mxu0
    %v2279 = vadd.f32 %v1758, %v2278
    %v2280 = vpop.f32.mrf.mxu0
    %2281 = vmatprep.mubr.f32.mxu0 %v1655
    %2282 = vmatmul.mubr.f32.gmra.mxu0 %v1654
    %v2283 = vpop.f32.mrf.mxu0
    %v2284 = vadd.f32 %v1762, %v2283
    %v2285 = vpop.f32.mrf.mxu0
    %2286 = vmatprep.mubr.f32.mxu0 %v1657
    %2287 = vmatmul.mubr.f32.gmra.mxu0 %v1656
    %v2288 = vpop.f32.mrf.mxu0
    %v2289 = vadd.f32 %v1766, %v2288
    %v2290 = vpop.f32.mrf.mxu0
    %2291 = vmatprep.mubr.f32.mxu0 %v1659
    %2292 = vmatmul.mubr.f32.gmra.mxu0 %v1658
    %v2293 = vpop.f32.mrf.mxu0
    %v2294 = vadd.f32 %v1770, %v2293
    %v2295 = vpop.f32.mrf.mxu0
    %2296 = vdwg.mxu0
    %2297 = vmatprep.subr.mxu0 0.0
    %2298 = vmatpush1.msra.mxu0 %v1531
    %2299 = vmatprep.subr.mxu0 0.0
    %2300 = vmatpush1.msra.mxu0 %v1530
    %2301 = vmatprep.subr.mxu0 0.0
    %2302 = vmatpush1.msra.mxu0 %v1529
    %2303 = vmatprep.subr.mxu0 0.0
    %2304 = vmatpush1.msra.mxu0 %v1528
    %2305 = vmatprep.subr.mxu0 0.0
    %2306 = vmatpush1.msra.mxu0 %v1527
    %2307 = vmatprep.subr.mxu0 0.0
    %2308 = vmatpush1.msra.mxu0 %v1526
    %2309 = vmatprep.subr.mxu0 0.0
    %2310 = vmatpush1.msra.mxu0 %v1525
    %2311 = vmatprep.subr.mxu0 0.0
    %2312 = vmatpush1.msra.mxu0 %v1524
    %2313 = vmatprep.subr.mxu0 0.0
    %2314 = vmatpush1.msra.mxu0 %v1523
    %2315 = vmatprep.subr.mxu0 0.0
    %2316 = vmatpush1.msra.mxu0 %v1522
    %2317 = vmatprep.subr.mxu0 0.0
    %2318 = vmatpush1.msra.mxu0 %v1521
    %2319 = vmatprep.subr.mxu0 0.0
    %2320 = vmatpush1.msra.mxu0 %v1520
    %2321 = vmatprep.subr.mxu0 0.0
    %2322 = vmatpush1.msra.mxu0 %v1519
    %2323 = vmatprep.subr.mxu0 0.0
    %2324 = vmatpush1.msra.mxu0 %v1518
    %2325 = vmatprep.subr.mxu0 0.0
    %2326 = vmatpush1.msra.mxu0 %v1517
    %2327 = vmatprep.subr.mxu0 0.0
    %2328 = vmatpush1.msra.mxu0 %v1516
    %2329 = vmatprep.subr.mxu0 0.0
    %2330 = vmatpush2.msra.mxu0 %v1547
    %2331 = vmatprep.subr.mxu0 0.0
    %2332 = vmatpush2.msra.mxu0 %v1546
    %2333 = vmatprep.subr.mxu0 0.0
    %2334 = vmatpush2.msra.mxu0 %v1545
    %2335 = vmatprep.subr.mxu0 0.0
    %2336 = vmatpush2.msra.mxu0 %v1544
    %2337 = vmatprep.subr.mxu0 0.0
    %2338 = vmatpush2.msra.mxu0 %v1543
    %2339 = vmatprep.subr.mxu0 0.0
    %2340 = vmatpush2.msra.mxu0 %v1542
    %2341 = vmatprep.subr.mxu0 0.0
    %2342 = vmatpush2.msra.mxu0 %v1541
    %2343 = vmatprep.subr.mxu0 0.0
    %2344 = vmatpush2.msra.mxu0 %v1540
    %2345 = vmatprep.subr.mxu0 0.0
    %2346 = vmatpush2.msra.mxu0 %v1539
    %2347 = vmatprep.subr.mxu0 0.0
    %2348 = vmatpush2.msra.mxu0 %v1538
    %2349 = vmatprep.subr.mxu0 0.0
    %2350 = vmatpush2.msra.mxu0 %v1537
    %2351 = vmatprep.subr.mxu0 0.0
    %2352 = vmatpush2.msra.mxu0 %v1536
    %2353 = vmatprep.subr.mxu0 0.0
    %2354 = vmatpush2.msra.mxu0 %v1535
    %2355 = vmatprep.subr.mxu0 0.0
    %2356 = vmatpush2.msra.mxu0 %v1534
    %2357 = vmatprep.subr.mxu0 0.0
    %2358 = vmatpush2.msra.mxu0 %v1533
    %2359 = vmatprep.subr.mxu0 0.0
    %2360 = vmatpush2.msra.mxu0 %v1532
    %2361 = vmatprep.mubr.f32.mxu0 %v1661
    %2362 = vmatmul.mubr.f32.gmra.mxu0 %v1660
    %v2363 = vpop.f32.mrf.mxu0
    %v2364 = vadd.f32 %v1742, %v2363
    %v2365 = vpop.f32.mrf.mxu0
    %2366 = vmatprep.mubr.f32.mxu0 %v1663
    %2367 = vmatmul.mubr.f32.gmra.mxu0 %v1662
    %v2368 = vpop.f32.mrf.mxu0
    %v2369 = vadd.f32 %v1746, %v2368
    %v2370 = vpop.f32.mrf.mxu0
    %2371 = vmatprep.mubr.f32.mxu0 %v1665
    %2372 = vmatmul.mubr.f32.gmra.mxu0 %v1664
    %v2373 = vpop.f32.mrf.mxu0
    %v2374 = vadd.f32 %v1750, %v2373
    %v2375 = vpop.f32.mrf.mxu0
    %2376 = vmatprep.mubr.f32.mxu0 %v1667
    %2377 = vmatmul.mubr.f32.gmra.mxu0 %v1666
    %v2378 = vpop.f32.mrf.mxu0
    %v2379 = vadd.f32 %v1754, %v2378
    %v2380 = vpop.f32.mrf.mxu0
    %2381 = vmatprep.mubr.f32.mxu0 %v1669
    %2382 = vmatmul.mubr.f32.gmra.mxu0 %v1668
    %v2383 = vpop.f32.mrf.mxu0
    %v2384 = vadd.f32 %v1758, %v2383
    %v2385 = vpop.f32.mrf.mxu0
    %2386 = vmatprep.mubr.f32.mxu0 %v1671
    %2387 = vmatmul.mubr.f32.gmra.mxu0 %v1670
    %v2388 = vpop.f32.mrf.mxu0
    %v2389 = vadd.f32 %v1762, %v2388
    %v2390 = vpop.f32.mrf.mxu0
    %2391 = vmatprep.mubr.f32.mxu0 %v1673
    %2392 = vmatmul.mubr.f32.gmra.mxu0 %v1672
    %v2393 = vpop.f32.mrf.mxu0
    %v2394 = vadd.f32 %v1766, %v2393
    %v2395 = vpop.f32.mrf.mxu0
    %2396 = vmatprep.mubr.f32.mxu0 %v1675
    %2397 = vmatmul.mubr.f32.gmra.mxu0 %v1674
    %v2398 = vpop.f32.mrf.mxu0
    %v2399 = vadd.f32 %v1770, %v2398
    %v2400 = vpop.f32.mrf.mxu0
    %2401 = vdwg.mxu0
    %2402 = vmatprep.subr.mxu0 0.0
    %2403 = vmatpush1.msra.mxu0 %v1539
    %2404 = vmatprep.subr.mxu0 0.0
    %2405 = vmatpush1.msra.mxu0 %v1538
    %2406 = vmatprep.subr.mxu0 0.0
    %2407 = vmatpush1.msra.mxu0 %v1537
    %2408 = vmatprep.subr.mxu0 0.0
    %2409 = vmatpush1.msra.mxu0 %v1536
    %2410 = vmatprep.subr.mxu0 0.0
    %2411 = vmatpush1.msra.mxu0 %v1535
    %2412 = vmatprep.subr.mxu0 0.0
    %2413 = vmatpush1.msra.mxu0 %v1534
    %2414 = vmatprep.subr.mxu0 0.0
    %2415 = vmatpush1.msra.mxu0 %v1533
    %2416 = vmatprep.subr.mxu0 0.0
    %2417 = vmatpush1.msra.mxu0 %v1532
    %2418 = vmatprep.subr.mxu0 0.0
    %2419 = vmatpush1.msra.mxu0 %v1531
    %2420 = vmatprep.subr.mxu0 0.0
    %2421 = vmatpush1.msra.mxu0 %v1530
    %2422 = vmatprep.subr.mxu0 0.0
    %2423 = vmatpush1.msra.mxu0 %v1529
    %2424 = vmatprep.subr.mxu0 0.0
    %2425 = vmatpush1.msra.mxu0 %v1528
    %2426 = vmatprep.subr.mxu0 0.0
    %2427 = vmatpush1.msra.mxu0 %v1527
    %2428 = vmatprep.subr.mxu0 0.0
    %2429 = vmatpush1.msra.mxu0 %v1526
    %2430 = vmatprep.subr.mxu0 0.0
    %2431 = vmatpush1.msra.mxu0 %v1525
    %2432 = vmatprep.subr.mxu0 0.0
    %2433 = vmatpush1.msra.mxu0 %v1524
    %2434 = vmatprep.subr.mxu0 0.0
    %2435 = vmatpush2.msra.mxu0 %v1555
    %2436 = vmatprep.subr.mxu0 0.0
    %2437 = vmatpush2.msra.mxu0 %v1554
    %2438 = vmatprep.subr.mxu0 0.0
    %2439 = vmatpush2.msra.mxu0 %v1553
    %2440 = vmatprep.subr.mxu0 0.0
    %2441 = vmatpush2.msra.mxu0 %v1552
    %2442 = vmatprep.subr.mxu0 0.0
    %2443 = vmatpush2.msra.mxu0 %v1551
    %2444 = vmatprep.subr.mxu0 0.0
    %2445 = vmatpush2.msra.mxu0 %v1550
    %2446 = vmatprep.subr.mxu0 0.0
    %2447 = vmatpush2.msra.mxu0 %v1549
    %2448 = vmatprep.subr.mxu0 0.0
    %2449 = vmatpush2.msra.mxu0 %v1548
    %2450 = vmatprep.subr.mxu0 0.0
    %2451 = vmatpush2.msra.mxu0 %v1547
    %2452 = vmatprep.subr.mxu0 0.0
    %2453 = vmatpush2.msra.mxu0 %v1546
    %2454 = vmatprep.subr.mxu0 0.0
    %2455 = vmatpush2.msra.mxu0 %v1545
    %2456 = vmatprep.subr.mxu0 0.0
    %2457 = vmatpush2.msra.mxu0 %v1544
    %2458 = vmatprep.subr.mxu0 0.0
    %2459 = vmatpush2.msra.mxu0 %v1543
    %2460 = vmatprep.subr.mxu0 0.0
    %2461 = vmatpush2.msra.mxu0 %v1542
    %2462 = vmatprep.subr.mxu0 0.0
    %2463 = vmatpush2.msra.mxu0 %v1541
    %2464 = vmatprep.subr.mxu0 0.0
    %2465 = vmatpush2.msra.mxu0 %v1540
    %2466 = vmatprep.mubr.f32.mxu0 %v1677
    %2467 = vmatmul.mubr.f32.gmra.mxu0 %v1676
    %v2468 = vpop.f32.mrf.mxu0
    %v2469 = vadd.f32 %v1742, %v2468
    %v2470 = vpop.f32.mrf.mxu0
    %2471 = vmatprep.mubr.f32.mxu0 %v1679
    %2472 = vmatmul.mubr.f32.gmra.mxu0 %v1678
    %v2473 = vpop.f32.mrf.mxu0
    %v2474 = vadd.f32 %v1746, %v2473
    %v2475 = vpop.f32.mrf.mxu0
    %2476 = vmatprep.mubr.f32.mxu0 %v1681
    %2477 = vmatmul.mubr.f32.gmra.mxu0 %v1680
    %v2478 = vpop.f32.mrf.mxu0
    %v2479 = vadd.f32 %v1750, %v2478
    %v2480 = vpop.f32.mrf.mxu0
    %2481 = vmatprep.mubr.f32.mxu0 %v1683
    %2482 = vmatmul.mubr.f32.gmra.mxu0 %v1682
    %v2483 = vpop.f32.mrf.mxu0
    %v2484 = vadd.f32 %v1754, %v2483
    %v2485 = vpop.f32.mrf.mxu0
    %2486 = vmatprep.mubr.f32.mxu0 %v1685
    %2487 = vmatmul.mubr.f32.gmra.mxu0 %v1684
    %v2488 = vpop.f32.mrf.mxu0
    %v2489 = vadd.f32 %v1758, %v2488
    %v2490 = vpop.f32.mrf.mxu0
    %2491 = vmatprep.mubr.f32.mxu0 %v1687
    %2492 = vmatmul.mubr.f32.gmra.mxu0 %v1686
    %v2493 = vpop.f32.mrf.mxu0
    %v2494 = vadd.f32 %v1762, %v2493
    %v2495 = vpop.f32.mrf.mxu0
    %2496 = vmatprep.mubr.f32.mxu0 %v1689
    %2497 = vmatmul.mubr.f32.gmra.mxu0 %v1688
    %v2498 = vpop.f32.mrf.mxu0
    %v2499 = vadd.f32 %v1766, %v2498
    %v2500 = vpop.f32.mrf.mxu0
    %2501 = vmatprep.mubr.f32.mxu0 %v1691
    %2502 = vmatmul.mubr.f32.gmra.mxu0 %v1690
    %v2503 = vpop.f32.mrf.mxu0
    %v2504 = vadd.f32 %v1770, %v2503
    %v2505 = vpop.f32.mrf.mxu0
    %2506 = vdwg.mxu0
    %2507 = vmatprep.subr.mxu0 0.0
    %2508 = vmatpush1.msra.mxu0 %v1547
    %2509 = vmatprep.subr.mxu0 0.0
    %2510 = vmatpush1.msra.mxu0 %v1546
    %2511 = vmatprep.subr.mxu0 0.0
    %2512 = vmatpush1.msra.mxu0 %v1545
    %2513 = vmatprep.subr.mxu0 0.0
    %2514 = vmatpush1.msra.mxu0 %v1544
    %2515 = vmatprep.subr.mxu0 0.0
    %2516 = vmatpush1.msra.mxu0 %v1543
    %2517 = vmatprep.subr.mxu0 0.0
    %2518 = vmatpush1.msra.mxu0 %v1542
    %2519 = vmatprep.subr.mxu0 0.0
    %2520 = vmatpush1.msra.mxu0 %v1541
    %2521 = vmatprep.subr.mxu0 0.0
    %2522 = vmatpush1.msra.mxu0 %v1540
    %2523 = vmatprep.subr.mxu0 0.0
    %2524 = vmatpush1.msra.mxu0 %v1539
    %2525 = vmatprep.subr.mxu0 0.0
    %2526 = vmatpush1.msra.mxu0 %v1538
    %2527 = vmatprep.subr.mxu0 0.0
    %2528 = vmatpush1.msra.mxu0 %v1537
    %2529 = vmatprep.subr.mxu0 0.0
    %2530 = vmatpush1.msra.mxu0 %v1536
    %2531 = vmatprep.subr.mxu0 0.0
    %2532 = vmatpush1.msra.mxu0 %v1535
    %2533 = vmatprep.subr.mxu0 0.0
    %2534 = vmatpush1.msra.mxu0 %v1534
    %2535 = vmatprep.subr.mxu0 0.0
    %2536 = vmatpush1.msra.mxu0 %v1533
    %2537 = vmatprep.subr.mxu0 0.0
    %2538 = vmatpush1.msra.mxu0 %v1532
    %2539 = vmatprep.subr.mxu0 0.0
    %2540 = vmatpush2.msra.mxu0 %v1563
    %2541 = vmatprep.subr.mxu0 0.0
    %2542 = vmatpush2.msra.mxu0 %v1562
    %2543 = vmatprep.subr.mxu0 0.0
    %2544 = vmatpush2.msra.mxu0 %v1561
    %2545 = vmatprep.subr.mxu0 0.0
    %2546 = vmatpush2.msra.mxu0 %v1560
    %2547 = vmatprep.subr.mxu0 0.0
    %2548 = vmatpush2.msra.mxu0 %v1559
    %2549 = vmatprep.subr.mxu0 0.0
    %2550 = vmatpush2.msra.mxu0 %v1558
    %2551 = vmatprep.subr.mxu0 0.0
    %2552 = vmatpush2.msra.mxu0 %v1557
    %2553 = vmatprep.subr.mxu0 0.0
    %2554 = vmatpush2.msra.mxu0 %v1556
    %2555 = vmatprep.subr.mxu0 0.0
    %2556 = vmatpush2.msra.mxu0 %v1555
    %2557 = vmatprep.subr.mxu0 0.0
    %2558 = vmatpush2.msra.mxu0 %v1554
    %2559 = vmatprep.subr.mxu0 0.0
    %2560 = vmatpush2.msra.mxu0 %v1553
    %2561 = vmatprep.subr.mxu0 0.0
    %2562 = vmatpush2.msra.mxu0 %v1552
    %2563 = vmatprep.subr.mxu0 0.0
    %2564 = vmatpush2.msra.mxu0 %v1551
    %2565 = vmatprep.subr.mxu0 0.0
    %2566 = vmatpush2.msra.mxu0 %v1550
    %2567 = vmatprep.subr.mxu0 0.0
    %2568 = vmatpush2.msra.mxu0 %v1549
    %2569 = vmatprep.subr.mxu0 0.0
    %2570 = vmatpush2.msra.mxu0 %v1548
    %2571 = vmatprep.mubr.f32.mxu0 %v1693
    %2572 = vmatmul.mubr.f32.gmra.mxu0 %v1692
    %v2573 = vpop.f32.mrf.mxu0
    %v2574 = vadd.f32 %v1742, %v2573
    %v2575 = vpop.f32.mrf.mxu0
    %2576 = vmatprep.mubr.f32.mxu0 %v1695
    %2577 = vmatmul.mubr.f32.gmra.mxu0 %v1694
    %v2578 = vpop.f32.mrf.mxu0
    %v2579 = vadd.f32 %v1746, %v2578
    %v2580 = vpop.f32.mrf.mxu0
    %2581 = vmatprep.mubr.f32.mxu0 %v1697
    %2582 = vmatmul.mubr.f32.gmra.mxu0 %v1696
    %v2583 = vpop.f32.mrf.mxu0
    %v2584 = vadd.f32 %v1750, %v2583
    %v2585 = vpop.f32.mrf.mxu0
    %2586 = vmatprep.mubr.f32.mxu0 %v1699
    %2587 = vmatmul.mubr.f32.gmra.mxu0 %v1698
    %v2588 = vpop.f32.mrf.mxu0
    %v2589 = vadd.f32 %v1754, %v2588
    %v2590 = vpop.f32.mrf.mxu0
    %2591 = vmatprep.mubr.f32.mxu0 %v1701
    %2592 = vmatmul.mubr.f32.gmra.mxu0 %v1700
    %v2593 = vpop.f32.mrf.mxu0
    %v2594 = vadd.f32 %v1758, %v2593
    %v2595 = vpop.f32.mrf.mxu0
    %2596 = vmatprep.mubr.f32.mxu0 %v1703
    %2597 = vmatmul.mubr.f32.gmra.mxu0 %v1702
    %v2598 = vpop.f32.mrf.mxu0
    %v2599 = vadd.f32 %v1762, %v2598
    %v2600 = vpop.f32.mrf.mxu0
    %2601 = vmatprep.mubr.f32.mxu0 %v1705
    %2602 = vmatmul.mubr.f32.gmra.mxu0 %v1704
    %v2603 = vpop.f32.mrf.mxu0
    %v2604 = vadd.f32 %v1766, %v2603
    %v2605 = vpop.f32.mrf.mxu0
    %2606 = vmatprep.mubr.f32.mxu0 %v1707
    %2607 = vmatmul.mubr.f32.gmra.mxu0 %v1706
    %v2608 = vpop.f32.mrf.mxu0
    %v2609 = vadd.f32 %v1770, %v2608
    %v2610 = vpop.f32.mrf.mxu0
    %2611 = vdwg.mxu0
    %2612 = vmatprep.subr.mxu0 0.0
    %2613 = vmatpush1.msra.mxu0 %v1555
    %2614 = vmatprep.subr.mxu0 0.0
    %2615 = vmatpush1.msra.mxu0 %v1554
    %2616 = vmatprep.subr.mxu0 0.0
    %2617 = vmatpush1.msra.mxu0 %v1553
    %2618 = vmatprep.subr.mxu0 0.0
    %2619 = vmatpush1.msra.mxu0 %v1552
    %2620 = vmatprep.subr.mxu0 0.0
    %2621 = vmatpush1.msra.mxu0 %v1551
    %2622 = vmatprep.subr.mxu0 0.0
    %2623 = vmatpush1.msra.mxu0 %v1550
    %2624 = vmatprep.subr.mxu0 0.0
    %2625 = vmatpush1.msra.mxu0 %v1549
    %2626 = vmatprep.subr.mxu0 0.0
    %2627 = vmatpush1.msra.mxu0 %v1548
    %2628 = vmatprep.subr.mxu0 0.0
    %2629 = vmatpush1.msra.mxu0 %v1547
    %2630 = vmatprep.subr.mxu0 0.0
    %2631 = vmatpush1.msra.mxu0 %v1546
    %2632 = vmatprep.subr.mxu0 0.0
    %2633 = vmatpush1.msra.mxu0 %v1545
    %2634 = vmatprep.subr.mxu0 0.0
    %2635 = vmatpush1.msra.mxu0 %v1544
    %2636 = vmatprep.subr.mxu0 0.0
    %2637 = vmatpush1.msra.mxu0 %v1543
    %2638 = vmatprep.subr.mxu0 0.0
    %2639 = vmatpush1.msra.mxu0 %v1542
    %2640 = vmatprep.subr.mxu0 0.0
    %2641 = vmatpush1.msra.mxu0 %v1541
    %2642 = vmatprep.subr.mxu0 0.0
    %2643 = vmatpush1.msra.mxu0 %v1540
    %2644 = vmatprep.subr.mxu0 0.0
    %2645 = vmatpush2.msra.mxu0 %v1571
    %2646 = vmatprep.subr.mxu0 0.0
    %2647 = vmatpush2.msra.mxu0 %v1570
    %2648 = vmatprep.subr.mxu0 0.0
    %2649 = vmatpush2.msra.mxu0 %v1569
    %2650 = vmatprep.subr.mxu0 0.0
    %2651 = vmatpush2.msra.mxu0 %v1568
    %2652 = vmatprep.subr.mxu0 0.0
    %2653 = vmatpush2.msra.mxu0 %v1567
    %2654 = vmatprep.subr.mxu0 0.0
    %2655 = vmatpush2.msra.mxu0 %v1566
    %2656 = vmatprep.subr.mxu0 0.0
    %2657 = vmatpush2.msra.mxu0 %v1565
    %2658 = vmatprep.subr.mxu0 0.0
    %2659 = vmatpush2.msra.mxu0 %v1564
    %2660 = vmatprep.subr.mxu0 0.0
    %2661 = vmatpush2.msra.mxu0 %v1563
    %2662 = vmatprep.subr.mxu0 0.0
    %2663 = vmatpush2.msra.mxu0 %v1562
    %2664 = vmatprep.subr.mxu0 0.0
    %2665 = vmatpush2.msra.mxu0 %v1561
    %2666 = vmatprep.subr.mxu0 0.0
    %2667 = vmatpush2.msra.mxu0 %v1560
    %2668 = vmatprep.subr.mxu0 0.0
    %2669 = vmatpush2.msra.mxu0 %v1559
    %2670 = vmatprep.subr.mxu0 0.0
    %2671 = vmatpush2.msra.mxu0 %v1558
    %2672 = vmatprep.subr.mxu0 0.0
    %2673 = vmatpush2.msra.mxu0 %v1557
    %2674 = vmatprep.subr.mxu0 0.0
    %2675 = vmatpush2.msra.mxu0 %v1556
    %2676 = vmatprep.mubr.f32.mxu0 %v1709
    %2677 = vmatmul.mubr.f32.gmra.mxu0 %v1708
    %v2678 = vpop.f32.mrf.mxu0
    %v2679 = vadd.f32 %v1742, %v2678
    %v2680 = vpop.f32.mrf.mxu0
    %2681 = vmatprep.mubr.f32.mxu0 %v1711
    %2682 = vmatmul.mubr.f32.gmra.mxu0 %v1710
    %v2683 = vpop.f32.mrf.mxu0
    %v2684 = vadd.f32 %v1746, %v2683
    %v2685 = vpop.f32.mrf.mxu0
    %2686 = vmatprep.mubr.f32.mxu0 %v1713
    %2687 = vmatmul.mubr.f32.gmra.mxu0 %v1712
    %v2688 = vpop.f32.mrf.mxu0
    %v2689 = vadd.f32 %v1750, %v2688
    %v2690 = vpop.f32.mrf.mxu0
    %2691 = vmatprep.mubr.f32.mxu0 %v1715
    %2692 = vmatmul.mubr.f32.gmra.mxu0 %v1714
    %v2693 = vpop.f32.mrf.mxu0
    %v2694 = vadd.f32 %v1754, %v2693
    %v2695 = vpop.f32.mrf.mxu0
    %2696 = vmatprep.mubr.f32.mxu0 %v1717
    %2697 = vmatmul.mubr.f32.gmra.mxu0 %v1716
    %v2698 = vpop.f32.mrf.mxu0
    %v2699 = vadd.f32 %v1758, %v2698
    %v2700 = vpop.f32.mrf.mxu0
    %2701 = vmatprep.mubr.f32.mxu0 %v1719
    %2702 = vmatmul.mubr.f32.gmra.mxu0 %v1718
    %v2703 = vpop.f32.mrf.mxu0
    %v2704 = vadd.f32 %v1762, %v2703
    %v2705 = vpop.f32.mrf.mxu0
    %2706 = vmatprep.mubr.f32.mxu0 %v1721
    %2707 = vmatmul.mubr.f32.gmra.mxu0 %v1720
    %v2708 = vpop.f32.mrf.mxu0
    %v2709 = vadd.f32 %v1766, %v2708
    %v2710 = vpop.f32.mrf.mxu0
    %2711 = vmatprep.mubr.f32.mxu0 %v1723
    %2712 = vmatmul.mubr.f32.gmra.mxu0 %v1722
    %v2713 = vpop.f32.mrf.mxu0
    %v2714 = vadd.f32 %v1770, %v2713
    %v2715 = vpop.f32.mrf.mxu0
    %2716 = vdwg.mxu0
    %2717 = vmatprep.subr.mxu0 0.0
    %2718 = vmatpush1.msra.mxu0 %v1563
    %2719 = vmatprep.subr.mxu0 0.0
    %2720 = vmatpush1.msra.mxu0 %v1562
    %2721 = vmatprep.subr.mxu0 0.0
    %2722 = vmatpush1.msra.mxu0 %v1561
    %2723 = vmatprep.subr.mxu0 0.0
    %2724 = vmatpush1.msra.mxu0 %v1560
    %2725 = vmatprep.subr.mxu0 0.0
    %2726 = vmatpush1.msra.mxu0 %v1559
    %2727 = vmatprep.subr.mxu0 0.0
    %2728 = vmatpush1.msra.mxu0 %v1558
    %2729 = vmatprep.subr.mxu0 0.0
    %2730 = vmatpush1.msra.mxu0 %v1557
    %2731 = vmatprep.subr.mxu0 0.0
    %2732 = vmatpush1.msra.mxu0 %v1556
    %2733 = vmatprep.subr.mxu0 0.0
    %2734 = vmatpush1.msra.mxu0 %v1555
    %2735 = vmatprep.subr.mxu0 0.0
    %2736 = vmatpush1.msra.mxu0 %v1554
    %2737 = vmatprep.subr.mxu0 0.0
    %2738 = vmatpush1.msra.mxu0 %v1553
    %2739 = vmatprep.subr.mxu0 0.0
    %2740 = vmatpush1.msra.mxu0 %v1552
    %2741 = vmatprep.subr.mxu0 0.0
    %2742 = vmatpush1.msra.mxu0 %v1551
    %2743 = vmatprep.subr.mxu0 0.0
    %2744 = vmatpush1.msra.mxu0 %v1550
    %2745 = vmatprep.subr.mxu0 0.0
    %2746 = vmatpush1.msra.mxu0 %v1549
    %2747 = vmatprep.subr.mxu0 0.0
    %2748 = vmatpush1.msra.mxu0 %v1548
    %2749 = vmatprep.subr.mxu0 0.0
    %2750 = vmatpush2.msra.mxu0 %v1579
    %2751 = vmatprep.subr.mxu0 0.0
    %2752 = vmatpush2.msra.mxu0 %v1578
    %2753 = vmatprep.subr.mxu0 0.0
    %2754 = vmatpush2.msra.mxu0 %v1577
    %2755 = vmatprep.subr.mxu0 0.0
    %2756 = vmatpush2.msra.mxu0 %v1576
    %2757 = vmatprep.subr.mxu0 0.0
    %2758 = vmatpush2.msra.mxu0 %v1575
    %2759 = vmatprep.subr.mxu0 0.0
    %2760 = vmatpush2.msra.mxu0 %v1574
    %2761 = vmatprep.subr.mxu0 0.0
    %2762 = vmatpush2.msra.mxu0 %v1573
    %2763 = vmatprep.subr.mxu0 0.0
    %2764 = vmatpush2.msra.mxu0 %v1572
    %2765 = vmatprep.subr.mxu0 0.0
    %2766 = vmatpush2.msra.mxu0 %v1571
    %2767 = vmatprep.subr.mxu0 0.0
    %2768 = vmatpush2.msra.mxu0 %v1570
    %2769 = vmatprep.subr.mxu0 0.0
    %2770 = vmatpush2.msra.mxu0 %v1569
    %2771 = vmatprep.subr.mxu0 0.0
    %2772 = vmatpush2.msra.mxu0 %v1568
    %2773 = vmatprep.subr.mxu0 0.0
    %2774 = vmatpush2.msra.mxu0 %v1567
    %2775 = vmatprep.subr.mxu0 0.0
    %2776 = vmatpush2.msra.mxu0 %v1566
    %2777 = vmatprep.subr.mxu0 0.0
    %2778 = vmatpush2.msra.mxu0 %v1565
    %2779 = vmatprep.subr.mxu0 0.0
    %2780 = vmatpush2.msra.mxu0 %v1564
    %2781 = vmatprep.mubr.f32.mxu0 %v1725
    %2782 = vmatmul.mubr.f32.gmra.mxu0 %v1724
    %v2783 = vpop.f32.mrf.mxu0
    %v2784 = vadd.f32 %v1742, %v2783
    %v2785 = vpop.f32.mrf.mxu0
    %2786 = vmatprep.mubr.f32.mxu0 %v1727
    %2787 = vmatmul.mubr.f32.gmra.mxu0 %v1726
    %v2788 = vpop.f32.mrf.mxu0
    %v2789 = vadd.f32 %v1746, %v2788
    %v2790 = vpop.f32.mrf.mxu0
    %2791 = vmatprep.mubr.f32.mxu0 %v1729
    %2792 = vmatmul.mubr.f32.gmra.mxu0 %v1728
    %v2793 = vpop.f32.mrf.mxu0
    %v2794 = vadd.f32 %v1750, %v2793
    %v2795 = vpop.f32.mrf.mxu0
    %2796 = vmatprep.mubr.f32.mxu0 %v1731
    %2797 = vmatmul.mubr.f32.gmra.mxu0 %v1730
    %v2798 = vpop.f32.mrf.mxu0
    %v2799 = vadd.f32 %v1754, %v2798
    %v2800 = vpop.f32.mrf.mxu0
    %2801 = vmatprep.mubr.f32.mxu0 %v1733
    %2802 = vmatmul.mubr.f32.gmra.mxu0 %v1732
    %v2803 = vpop.f32.mrf.mxu0
    %v2804 = vadd.f32 %v1758, %v2803
    %v2805 = vpop.f32.mrf.mxu0
    %2806 = vmatprep.mubr.f32.mxu0 %v1735
    %2807 = vmatmul.mubr.f32.gmra.mxu0 %v1734
    %v2808 = vpop.f32.mrf.mxu0
    %v2809 = vadd.f32 %v1762, %v2808
    %v2810 = vpop.f32.mrf.mxu0
    %2811 = vmatprep.mubr.f32.mxu0 %v1737
    %2812 = vmatmul.mubr.f32.gmra.mxu0 %v1736
    %v2813 = vpop.f32.mrf.mxu0
    %v2814 = vadd.f32 %v1766, %v2813
    %v2815 = vpop.f32.mrf.mxu0
    %2816 = vmatprep.mubr.f32.mxu0 %v1739
    %2817 = vmatmul.mubr.f32.gmra.mxu0 %v1738
    %v2818 = vpop.f32.mrf.mxu0
    %v2819 = vadd.f32 %v1770, %v2818
    %v2820 = vpop.f32.mrf.mxu0
    %2821 = vdwg.mxu0
    %v2822 = vmax.f32 %v1839, 0.0
    %v2823 = vmax.f32 %v1844, 0.0
    %v2824 = vmax.f32 %v1849, 0.0
    %v2825 = vmax.f32 %v1854, 0.0
    %v2826 = vmax.f32 %v1859, 0.0
    %v2827 = vmax.f32 %v1864, 0.0
    %v2828 = vmax.f32 %v1869, 0.0
    %v2829 = vmax.f32 %v1874, 0.0
    %v2830 = vmax.f32 %v1944, 0.0
    %v2831 = vmax.f32 %v1949, 0.0
    %v2832 = vmax.f32 %v1954, 0.0
    %v2833 = vmax.f32 %v1959, 0.0
    %v2834 = vmax.f32 %v1964, 0.0
    %v2835 = vmax.f32 %v1969, 0.0
    %v2836 = vmax.f32 %v1974, 0.0
    %v2837 = vmax.f32 %v1979, 0.0
    %v2838 = vmax.f32 %v2049, 0.0
    %v2839 = vmax.f32 %v2054, 0.0
    %v2840 = vmax.f32 %v2059, 0.0
    %v2841 = vmax.f32 %v2064, 0.0
    %v2842 = vmax.f32 %v2069, 0.0
    %v2843 = vmax.f32 %v2074, 0.0
    %v2844 = vmax.f32 %v2079, 0.0
    %v2845 = vmax.f32 %v2084, 0.0
    %v2846 = vmax.f32 %v2154, 0.0
    %v2847 = vmax.f32 %v2159, 0.0
    %v2848 = vmax.f32 %v2164, 0.0
    %v2849 = vmax.f32 %v2169, 0.0
    %v2850 = vmax.f32 %v2174, 0.0
    %v2851 = vmax.f32 %v2179, 0.0
    %v2852 = vmax.f32 %v2184, 0.0
    %v2853 = vmax.f32 %v2189, 0.0
    %v2854 = vmax.f32 %v2259, 0.0
    %v2855 = vmax.f32 %v2264, 0.0
    %v2856 = vmax.f32 %v2269, 0.0
    %v2857 = vmax.f32 %v2274, 0.0
    %v2858 = vmax.f32 %v2279, 0.0
    %v2859 = vmax.f32 %v2284, 0.0
    %v2860 = vmax.f32 %v2289, 0.0
    %v2861 = vmax.f32 %v2294, 0.0
    %v2862 = vmax.f32 %v2364, 0.0
    %v2863 = vmax.f32 %v2369, 0.0
    %v2864 = vmax.f32 %v2374, 0.0
    %v2865 = vmax.f32 %v2379, 0.0
    %v2866 = vmax.f32 %v2384, 0.0
    %v2867 = vmax.f32 %v2389, 0.0
    %v2868 = vmax.f32 %v2394, 0.0
    %v2869 = vmax.f32 %v2399, 0.0
    %v2870 = vmax.f32 %v2469, 0.0
    %v2871 = vmax.f32 %v2474, 0.0
    %v2872 = vmax.f32 %v2479, 0.0
    %v2873 = vmax.f32 %v2484, 0.0
    %v2874 = vmax.f32 %v2489, 0.0
    %v2875 = vmax.f32 %v2494, 0.0
    %v2876 = vmax.f32 %v2499, 0.0
    %v2877 = vmax.f32 %v2504, 0.0
    %v2878 = vmax.f32 %v2574, 0.0
    %v2879 = vmax.f32 %v2579, 0.0
    %v2880 = vmax.f32 %v2584, 0.0
    %v2881 = vmax.f32 %v2589, 0.0
    %v2882 = vmax.f32 %v2594, 0.0
    %v2883 = vmax.f32 %v2599, 0.0
    %v2884 = vmax.f32 %v2604, 0.0
    %v2885 = vmax.f32 %v2609, 0.0
    %v2886 = vmax.f32 %v2679, 0.0
    %v2887 = vmax.f32 %v2684, 0.0
    %v2888 = vmax.f32 %v2689, 0.0
    %v2889 = vmax.f32 %v2694, 0.0
    %v2890 = vmax.f32 %v2699, 0.0
    %v2891 = vmax.f32 %v2704, 0.0
    %v2892 = vmax.f32 %v2709, 0.0
    %v2893 = vmax.f32 %v2714, 0.0
    %v2894 = vmax.f32 %v2784, 0.0
    %v2895 = vmax.f32 %v2789, 0.0
    %v2896 = vmax.f32 %v2794, 0.0
    %v2897 = vmax.f32 %v2799, 0.0
    %v2898 = vmax.f32 %v2804, 0.0
    %v2899 = vmax.f32 %v2809, 0.0
    %v2900 = vmax.f32 %v2814, 0.0
    %v2901 = vmax.f32 %v2819, 0.0
    %v2902 = vld [vmem:[#allocation3] sm:$0xff]
    %v2903 = vld [vmem:[#allocation3 + $0x8] sm:$0xff]
    %v2904 = vld [vmem:[#allocation3 + $0x10] sm:$0xff]
    %v2905 = vld [vmem:[#allocation3 + $0x18] sm:$0xff]
    %v2906 = vld [vmem:[#allocation3 + $0x20] sm:$0xff]
    %v2907 = vld [vmem:[#allocation3 + $0x28] sm:$0xff]
    %v2908 = vld [vmem:[#allocation3 + $0x30] sm:$0xff]
    %v2909 = vld [vmem:[#allocation3 + $0x38] sm:$0xff]
    %v2910 = vld [vmem:[#allocation3 + $0x40] sm:$0xff]
    %v2911 = vld [vmem:[#allocation3 + $0x48] sm:$0xff]
    %v2912 = vld [vmem:[#allocation3 + $0x50] sm:$0xff]
    %v2913 = vld [vmem:[#allocation3 + $0x58] sm:$0xff]
    %v2914 = vld [vmem:[#allocation3 + $0x60] sm:$0xff]
    %v2915 = vld [vmem:[#allocation3 + $0x68] sm:$0xff]
    %v2916 = vld [vmem:[#allocation3 + $0x70] sm:$0xff]
    %v2917 = vld [vmem:[#allocation3 + $0x78] sm:$0xff]
    %v2918 = vld [vmem:[#allocation3 + $0x80] sm:$0xff]
    %v2919 = vld [vmem:[#allocation3 + $0x88] sm:$0xff]
    %v2920 = vld [vmem:[#allocation3 + $0x90] sm:$0xff]
    %v2921 = vld [vmem:[#allocation3 + $0x98] sm:$0xff]
    %v2922 = vld [vmem:[#allocation3 + $0xa0] sm:$0xff]
    %v2923 = vld [vmem:[#allocation3 + $0xa8] sm:$0xff]
    %v2924 = vld [vmem:[#allocation3 + $0xb0] sm:$0xff]
    %v2925 = vld [vmem:[#allocation3 + $0xb8] sm:$0xff]
    %v2926 = vld [vmem:[#allocation3 + $0xc0] sm:$0xff]
    %v2927 = vld [vmem:[#allocation3 + $0xc8] sm:$0xff]
    %v2928 = vld [vmem:[#allocation3 + $0xd0] sm:$0xff]
    %v2929 = vld [vmem:[#allocation3 + $0xd8] sm:$0xff]
    %v2930 = vld [vmem:[#allocation3 + $0xe0] sm:$0xff]
    %v2931 = vld [vmem:[#allocation3 + $0xe8] sm:$0xff]
    %v2932 = vld [vmem:[#allocation3 + $0xf0] sm:$0xff]
    %v2933 = vld [vmem:[#allocation3 + $0xf8] sm:$0xff]
    %v2934 = vld [vmem:[#allocation3 + $0x100] sm:$0xff]
    %v2935 = vld [vmem:[#allocation3 + $0x108] sm:$0xff]
    %v2936 = vld [vmem:[#allocation3 + $0x110] sm:$0xff]
    %v2937 = vld [vmem:[#allocation3 + $0x118] sm:$0xff]
    %v2938 = vld [vmem:[#allocation3 + $0x120] sm:$0xff]
    %v2939 = vld [vmem:[#allocation3 + $0x128] sm:$0xff]
    %v2940 = vld [vmem:[#allocation3 + $0x130] sm:$0xff]
    %v2941 = vld [vmem:[#allocation3 + $0x138] sm:$0xff]
    %v2942 = vld [vmem:[#allocation3 + $0x140] sm:$0xff]
    %v2943 = vld [vmem:[#allocation3 + $0x148] sm:$0xff]
    %v2944 = vld [vmem:[#allocation3 + $0x150] sm:$0xff]
    %v2945 = vld [vmem:[#allocation3 + $0x158] sm:$0xff]
    %v2946 = vld [vmem:[#allocation3 + $0x160] sm:$0xff]
    %v2947 = vld [vmem:[#allocation3 + $0x168] sm:$0xff]
    %v2948 = vld [vmem:[#allocation3 + $0x170] sm:$0xff]
    %v2949 = vld [vmem:[#allocation3 + $0x178] sm:$0xff]
    %v2950 = vld [vmem:[#allocation3 + $0x180] sm:$0xff]
    %v2951 = vld [vmem:[#allocation3 + $0x188] sm:$0xff]
    %v2952 = vld [vmem:[#allocation3 + $0x190] sm:$0xff]
    %v2953 = vld [vmem:[#allocation3 + $0x198] sm:$0xff]
    %v2954 = vld [vmem:[#allocation3 + $0x1a0] sm:$0xff]
    %v2955 = vld [vmem:[#allocation3 + $0x1a8] sm:$0xff]
    %v2956 = vld [vmem:[#allocation3 + $0x1b0] sm:$0xff]
    %v2957 = vld [vmem:[#allocation3 + $0x1b8] sm:$0xff]
    %v2958 = vld [vmem:[#allocation3 + $0x1c0] sm:$0xff]
    %v2959 = vld [vmem:[#allocation3 + $0x1c8] sm:$0xff]
    %v2960 = vld [vmem:[#allocation3 + $0x1d0] sm:$0xff]
    %v2961 = vld [vmem:[#allocation3 + $0x1d8] sm:$0xff]
    %v2962 = vld [vmem:[#allocation3 + $0x1e0] sm:$0xff]
    %v2963 = vld [vmem:[#allocation3 + $0x1e8] sm:$0xff]
    %v2964 = vld [vmem:[#allocation3 + $0x1f0] sm:$0xff]
    %v2965 = vld [vmem:[#allocation3 + $0x1f8] sm:$0xff]
    %v2966 = vld [vmem:[#allocation3 + $0x200] sm:$0xff]
    %v2967 = vld [vmem:[#allocation3 + $0x208] sm:$0xff]
    %v2968 = vld [vmem:[#allocation3 + $0x210] sm:$0xff]
    %v2969 = vld [vmem:[#allocation3 + $0x218] sm:$0xff]
    %v2970 = vld [vmem:[#allocation3 + $0x220] sm:$0xff]
    %v2971 = vld [vmem:[#allocation3 + $0x228] sm:$0xff]
    %v2972 = vld [vmem:[#allocation3 + $0x230] sm:$0xff]
    %v2973 = vld [vmem:[#allocation3 + $0x238] sm:$0xff]
    %v2974 = vld [vmem:[#allocation3 + $0x240] sm:$0xff]
    %v2975 = vld [vmem:[#allocation3 + $0x248] sm:$0xff]
    %v2976 = vld [vmem:[#allocation3 + $0x250] sm:$0xff]
    %v2977 = vld [vmem:[#allocation3 + $0x258] sm:$0xff]
    %v2978 = vld [vmem:[#allocation3 + $0x260] sm:$0xff]
    %v2979 = vld [vmem:[#allocation3 + $0x268] sm:$0xff]
    %v2980 = vld [vmem:[#allocation3 + $0x270] sm:$0xff]
    %v2981 = vld [vmem:[#allocation3 + $0x278] sm:$0xff]
    %v2982 = vld [vmem:[#allocation3 + $0x280] sm:$0xff]
    %v2983 = vld [vmem:[#allocation3 + $0x288] sm:$0xff]
    %v2984 = vld [vmem:[#allocation3 + $0x290] sm:$0xff]
    %v2985 = vld [vmem:[#allocation3 + $0x298] sm:$0xff]
    %v2986 = vld [vmem:[#allocation3 + $0x2a0] sm:$0xff]
    %v2987 = vld [vmem:[#allocation3 + $0x2a8] sm:$0xff]
    %v2988 = vld [vmem:[#allocation3 + $0x2b0] sm:$0xff]
    %v2989 = vld [vmem:[#allocation3 + $0x2b8] sm:$0xff]
    %v2990 = vld [vmem:[#allocation3 + $0x2c0] sm:$0xff]
    %v2991 = vld [vmem:[#allocation3 + $0x2c8] sm:$0xff]
    %v2992 = vld [vmem:[#allocation3 + $0x2d0] sm:$0xff]
    %v2993 = vld [vmem:[#allocation3 + $0x2d8] sm:$0xff]
    %v2994 = vld [vmem:[#allocation3 + $0x2e0] sm:$0xff]
    %v2995 = vld [vmem:[#allocation3 + $0x2e8] sm:$0xff]
    %v2996 = vld [vmem:[#allocation3 + $0x2f0] sm:$0xff]
    %v2997 = vld [vmem:[#allocation3 + $0x2f8] sm:$0xff]
    %v2998 = vld [vmem:[#allocation3 + $0x300] sm:$0xff]
    %v2999 = vld [vmem:[#allocation3 + $0x308] sm:$0xff]
    %v3000 = vld [vmem:[#allocation3 + $0x310] sm:$0xff]
    %v3001 = vld [vmem:[#allocation3 + $0x318] sm:$0xff]
    %v3002 = vld [vmem:[#allocation3 + $0x320] sm:$0xff]
    %v3003 = vld [vmem:[#allocation3 + $0x328] sm:$0xff]
    %v3004 = vld [vmem:[#allocation3 + $0x330] sm:$0xff]
    %v3005 = vld [vmem:[#allocation3 + $0x338] sm:$0xff]
    %v3006 = vld [vmem:[#allocation3 + $0x340] sm:$0xff]
    %v3007 = vld [vmem:[#allocation3 + $0x348] sm:$0xff]
    %v3008 = vld [vmem:[#allocation3 + $0x350] sm:$0xff]
    %v3009 = vld [vmem:[#allocation3 + $0x358] sm:$0xff]
    %v3010 = vld [vmem:[#allocation3 + $0x360] sm:$0xff]
    %v3011 = vld [vmem:[#allocation3 + $0x368] sm:$0xff]
    %v3012 = vld [vmem:[#allocation3 + $0x370] sm:$0xff]
    %v3013 = vld [vmem:[#allocation3 + $0x378] sm:$0xff]
    %3014 = vset.pattern.permute.xlu0 2
    %3015 = vperm.xlu0 %3014, %v42
    %v3016 = vpop.permute.xlu0 %3015
    %3018 = vset.pattern.permute.xlu0 2
    %3019 = vperm.xlu0 %3018, %v43
    %v3020 = vpop.permute.xlu0 %3019
    %3022 = vset.pattern.permute.xlu0 2
    %3023 = vperm.xlu0 %3022, %v44
    %v3024 = vpop.permute.xlu0 %3023
    %3026 = vset.pattern.permute.xlu0 2
    %3027 = vperm.xlu0 %3026, %v45
    %v3028 = vpop.permute.xlu0 %3027
    %3030 = vset.pattern.permute.xlu0 2
    %3031 = vperm.xlu0 %3030, %v46
    %v3032 = vpop.permute.xlu0 %3031
    %3034 = vset.pattern.permute.xlu0 2
    %3035 = vperm.xlu0 %3034, %v47
    %v3036 = vpop.permute.xlu0 %3035
    %3038 = vset.pattern.permute.xlu0 2
    %3039 = vperm.xlu0 %3038, %v48
    %v3040 = vpop.permute.xlu0 %3039
    %3042 = vset.pattern.permute.xlu0 2
    %3043 = vperm.xlu0 %3042, %v49
    %v3044 = vpop.permute.xlu0 %3043
    %3046 = vmatprep.subr.mxu0 0.0
    %3047 = vmatpush1.msra.mxu0 %v2837
    %3048 = vmatprep.subr.mxu0 0.0
    %3049 = vmatpush1.msra.mxu0 %v2836
    %3050 = vmatprep.subr.mxu0 0.0
    %3051 = vmatpush1.msra.mxu0 %v2835
    %3052 = vmatprep.subr.mxu0 0.0
    %3053 = vmatpush1.msra.mxu0 %v2834
    %3054 = vmatprep.subr.mxu0 0.0
    %3055 = vmatpush1.msra.mxu0 %v2833
    %3056 = vmatprep.subr.mxu0 0.0
    %3057 = vmatpush1.msra.mxu0 %v2832
    %3058 = vmatprep.subr.mxu0 0.0
    %3059 = vmatpush1.msra.mxu0 %v2831
    %3060 = vmatprep.subr.mxu0 0.0
    %3061 = vmatpush1.msra.mxu0 %v2830
    %3062 = vmatprep.subr.mxu0 0.0
    %3063 = vmatpush1.msra.mxu0 %v2829
    %3064 = vmatprep.subr.mxu0 0.0
    %3065 = vmatpush1.msra.mxu0 %v2828
    %3066 = vmatprep.subr.mxu0 0.0
    %3067 = vmatpush1.msra.mxu0 %v2827
    %3068 = vmatprep.subr.mxu0 0.0
    %3069 = vmatpush1.msra.mxu0 %v2826
    %3070 = vmatprep.subr.mxu0 0.0
    %3071 = vmatpush1.msra.mxu0 %v2825
    %3072 = vmatprep.subr.mxu0 0.0
    %3073 = vmatpush1.msra.mxu0 %v2824
    %3074 = vmatprep.subr.mxu0 0.0
    %3075 = vmatpush1.msra.mxu0 %v2823
    %3076 = vmatprep.subr.mxu0 0.0
    %3077 = vmatpush1.msra.mxu0 %v2822
    %3078 = vmatprep.subr.mxu0 0.0
    %3079 = vmatpush2.msra.mxu0 %v2853
    %3080 = vmatprep.subr.mxu0 0.0
    %3081 = vmatpush2.msra.mxu0 %v2852
    %3082 = vmatprep.subr.mxu0 0.0
    %3083 = vmatpush2.msra.mxu0 %v2851
    %3084 = vmatprep.subr.mxu0 0.0
    %3085 = vmatpush2.msra.mxu0 %v2850
    %3086 = vmatprep.subr.mxu0 0.0
    %3087 = vmatpush2.msra.mxu0 %v2849
    %3088 = vmatprep.subr.mxu0 0.0
    %3089 = vmatpush2.msra.mxu0 %v2848
    %3090 = vmatprep.subr.mxu0 0.0
    %3091 = vmatpush2.msra.mxu0 %v2847
    %3092 = vmatprep.subr.mxu0 0.0
    %3093 = vmatpush2.msra.mxu0 %v2846
    %3094 = vmatprep.subr.mxu0 0.0
    %3095 = vmatpush2.msra.mxu0 %v2845
    %3096 = vmatprep.subr.mxu0 0.0
    %3097 = vmatpush2.msra.mxu0 %v2844
    %3098 = vmatprep.subr.mxu0 0.0
    %3099 = vmatpush2.msra.mxu0 %v2843
    %3100 = vmatprep.subr.mxu0 0.0
    %3101 = vmatpush2.msra.mxu0 %v2842
    %3102 = vmatprep.subr.mxu0 0.0
    %3103 = vmatpush2.msra.mxu0 %v2841
    %3104 = vmatprep.subr.mxu0 0.0
    %3105 = vmatpush2.msra.mxu0 %v2840
    %3106 = vmatprep.subr.mxu0 0.0
    %3107 = vmatpush2.msra.mxu0 %v2839
    %3108 = vmatprep.subr.mxu0 0.0
    %3109 = vmatpush2.msra.mxu0 %v2838
    %3110 = vmatprep.mubr.f32.mxu0 %v2903
    %3111 = vmatmul.mubr.f32.gmra.mxu0 %v2902
    %v3112 = vpop.f32.mrf.mxu0
    %v3113 = vadd.f32 %v3016, %v3112
    %v3114 = vpop.f32.mrf.mxu0
    %3115 = vmatprep.mubr.f32.mxu0 %v2905
    %3116 = vmatmul.mubr.f32.gmra.mxu0 %v2904
    %v3117 = vpop.f32.mrf.mxu0
    %v3118 = vadd.f32 %v3020, %v3117
    %v3119 = vpop.f32.mrf.mxu0
    %3120 = vmatprep.mubr.f32.mxu0 %v2907
    %3121 = vmatmul.mubr.f32.gmra.mxu0 %v2906
    %v3122 = vpop.f32.mrf.mxu0
    %v3123 = vadd.f32 %v3024, %v3122
    %v3124 = vpop.f32.mrf.mxu0
    %3125 = vmatprep.mubr.f32.mxu0 %v2909
    %3126 = vmatmul.mubr.f32.gmra.mxu0 %v2908
    %v3127 = vpop.f32.mrf.mxu0
    %v3128 = vadd.f32 %v3028, %v3127
    %v3129 = vpop.f32.mrf.mxu0
    %3130 = vmatprep.mubr.f32.mxu0 %v2911
    %3131 = vmatmul.mubr.f32.gmra.mxu0 %v2910
    %v3132 = vpop.f32.mrf.mxu0
    %v3133 = vadd.f32 %v3032, %v3132
    %v3134 = vpop.f32.mrf.mxu0
    %3135 = vmatprep.mubr.f32.mxu0 %v2913
    %3136 = vmatmul.mubr.f32.gmra.mxu0 %v2912
    %v3137 = vpop.f32.mrf.mxu0
    %v3138 = vadd.f32 %v3036, %v3137
    %v3139 = vpop.f32.mrf.mxu0
    %3140 = vmatprep.mubr.f32.mxu0 %v2915
    %3141 = vmatmul.mubr.f32.gmra.mxu0 %v2914
    %v3142 = vpop.f32.mrf.mxu0
    %v3143 = vadd.f32 %v3040, %v3142
    %v3144 = vpop.f32.mrf.mxu0
    %3145 = vmatprep.mubr.f32.mxu0 %v2917
    %3146 = vmatmul.mubr.f32.gmra.mxu0 %v2916
    %v3147 = vpop.f32.mrf.mxu0
    %v3148 = vadd.f32 %v3044, %v3147
    %v3149 = vpop.f32.mrf.mxu0
    %3150 = vdwg.mxu0
    %3151 = vmatprep.subr.mxu0 0.0
    %3152 = vmatpush1.msra.mxu0 %v2845
    %3153 = vmatprep.subr.mxu0 0.0
    %3154 = vmatpush1.msra.mxu0 %v2844
    %3155 = vmatprep.subr.mxu0 0.0
    %3156 = vmatpush1.msra.mxu0 %v2843
    %3157 = vmatprep.subr.mxu0 0.0
    %3158 = vmatpush1.msra.mxu0 %v2842
    %3159 = vmatprep.subr.mxu0 0.0
    %3160 = vmatpush1.msra.mxu0 %v2841
    %3161 = vmatprep.subr.mxu0 0.0
    %3162 = vmatpush1.msra.mxu0 %v2840
    %3163 = vmatprep.subr.mxu0 0.0
    %3164 = vmatpush1.msra.mxu0 %v2839
    %3165 = vmatprep.subr.mxu0 0.0
    %3166 = vmatpush1.msra.mxu0 %v2838
    %3167 = vmatprep.subr.mxu0 0.0
    %3168 = vmatpush1.msra.mxu0 %v2837
    %3169 = vmatprep.subr.mxu0 0.0
    %3170 = vmatpush1.msra.mxu0 %v2836
    %3171 = vmatprep.subr.mxu0 0.0
    %3172 = vmatpush1.msra.mxu0 %v2835
    %3173 = vmatprep.subr.mxu0 0.0
    %3174 = vmatpush1.msra.mxu0 %v2834
    %3175 = vmatprep.subr.mxu0 0.0
    %3176 = vmatpush1.msra.mxu0 %v2833
    %3177 = vmatprep.subr.mxu0 0.0
    %3178 = vmatpush1.msra.mxu0 %v2832
    %3179 = vmatprep.subr.mxu0 0.0
    %3180 = vmatpush1.msra.mxu0 %v2831
    %3181 = vmatprep.subr.mxu0 0.0
    %3182 = vmatpush1.msra.mxu0 %v2830
    %3183 = vmatprep.subr.mxu0 0.0
    %3184 = vmatpush2.msra.mxu0 %v2861
    %3185 = vmatprep.subr.mxu0 0.0
    %3186 = vmatpush2.msra.mxu0 %v2860
    %3187 = vmatprep.subr.mxu0 0.0
    %3188 = vmatpush2.msra.mxu0 %v2859
    %3189 = vmatprep.subr.mxu0 0.0
    %3190 = vmatpush2.msra.mxu0 %v2858
    %3191 = vmatprep.subr.mxu0 0.0
    %3192 = vmatpush2.msra.mxu0 %v2857
    %3193 = vmatprep.subr.mxu0 0.0
    %3194 = vmatpush2.msra.mxu0 %v2856
    %3195 = vmatprep.subr.mxu0 0.0
    %3196 = vmatpush2.msra.mxu0 %v2855
    %3197 = vmatprep.subr.mxu0 0.0
    %3198 = vmatpush2.msra.mxu0 %v2854
    %3199 = vmatprep.subr.mxu0 0.0
    %3200 = vmatpush2.msra.mxu0 %v2853
    %3201 = vmatprep.subr.mxu0 0.0
    %3202 = vmatpush2.msra.mxu0 %v2852
    %3203 = vmatprep.subr.mxu0 0.0
    %3204 = vmatpush2.msra.mxu0 %v2851
    %3205 = vmatprep.subr.mxu0 0.0
    %3206 = vmatpush2.msra.mxu0 %v2850
    %3207 = vmatprep.subr.mxu0 0.0
    %3208 = vmatpush2.msra.mxu0 %v2849
    %3209 = vmatprep.subr.mxu0 0.0
    %3210 = vmatpush2.msra.mxu0 %v2848
    %3211 = vmatprep.subr.mxu0 0.0
    %3212 = vmatpush2.msra.mxu0 %v2847
    %3213 = vmatprep.subr.mxu0 0.0
    %3214 = vmatpush2.msra.mxu0 %v2846
    %3215 = vmatprep.mubr.f32.mxu0 %v2919
    %3216 = vmatmul.mubr.f32.gmra.mxu0 %v2918
    %v3217 = vpop.f32.mrf.mxu0
    %v3218 = vadd.f32 %v3016, %v3217
    %v3219 = vpop.f32.mrf.mxu0
    %3220 = vmatprep.mubr.f32.mxu0 %v2921
    %3221 = vmatmul.mubr.f32.gmra.mxu0 %v2920
    %v3222 = vpop.f32.mrf.mxu0
    %v3223 = vadd.f32 %v3020, %v3222
    %v3224 = vpop.f32.mrf.mxu0
    %3225 = vmatprep.mubr.f32.mxu0 %v2923
    %3226 = vmatmul.mubr.f32.gmra.mxu0 %v2922
    %v3227 = vpop.f32.mrf.mxu0
    %v3228 = vadd.f32 %v3024, %v3227
    %v3229 = vpop.f32.mrf.mxu0
    %3230 = vmatprep.mubr.f32.mxu0 %v2925
    %3231 = vmatmul.mubr.f32.gmra.mxu0 %v2924
    %v3232 = vpop.f32.mrf.mxu0
    %v3233 = vadd.f32 %v3028, %v3232
    %v3234 = vpop.f32.mrf.mxu0
    %3235 = vmatprep.mubr.f32.mxu0 %v2927
    %3236 = vmatmul.mubr.f32.gmra.mxu0 %v2926
    %v3237 = vpop.f32.mrf.mxu0
    %v3238 = vadd.f32 %v3032, %v3237
    %v3239 = vpop.f32.mrf.mxu0
    %3240 = vmatprep.mubr.f32.mxu0 %v2929
    %3241 = vmatmul.mubr.f32.gmra.mxu0 %v2928
    %v3242 = vpop.f32.mrf.mxu0
    %v3243 = vadd.f32 %v3036, %v3242
    %v3244 = vpop.f32.mrf.mxu0
    %3245 = vmatprep.mubr.f32.mxu0 %v2931
    %3246 = vmatmul.mubr.f32.gmra.mxu0 %v2930
    %v3247 = vpop.f32.mrf.mxu0
    %v3248 = vadd.f32 %v3040, %v3247
    %v3249 = vpop.f32.mrf.mxu0
    %3250 = vmatprep.mubr.f32.mxu0 %v2933
    %3251 = vmatmul.mubr.f32.gmra.mxu0 %v2932
    %v3252 = vpop.f32.mrf.mxu0
    %v3253 = vadd.f32 %v3044, %v3252
    %v3254 = vpop.f32.mrf.mxu0
    %3255 = vdwg.mxu0
    %3256 = vmatprep.subr.mxu0 0.0
    %3257 = vmatpush1.msra.mxu0 %v2853
    %3258 = vmatprep.subr.mxu0 0.0
    %3259 = vmatpush1.msra.mxu0 %v2852
    %3260 = vmatprep.subr.mxu0 0.0
    %3261 = vmatpush1.msra.mxu0 %v2851
    %3262 = vmatprep.subr.mxu0 0.0
    %3263 = vmatpush1.msra.mxu0 %v2850
    %3264 = vmatprep.subr.mxu0 0.0
    %3265 = vmatpush1.msra.mxu0 %v2849
    %3266 = vmatprep.subr.mxu0 0.0
    %3267 = vmatpush1.msra.mxu0 %v2848
    %3268 = vmatprep.subr.mxu0 0.0
    %3269 = vmatpush1.msra.mxu0 %v2847
    %3270 = vmatprep.subr.mxu0 0.0
    %3271 = vmatpush1.msra.mxu0 %v2846
    %3272 = vmatprep.subr.mxu0 0.0
    %3273 = vmatpush1.msra.mxu0 %v2845
    %3274 = vmatprep.subr.mxu0 0.0
    %3275 = vmatpush1.msra.mxu0 %v2844
    %3276 = vmatprep.subr.mxu0 0.0
    %3277 = vmatpush1.msra.mxu0 %v2843
    %3278 = vmatprep.subr.mxu0 0.0
    %3279 = vmatpush1.msra.mxu0 %v2842
    %3280 = vmatprep.subr.mxu0 0.0
    %3281 = vmatpush1.msra.mxu0 %v2841
    %3282 = vmatprep.subr.mxu0 0.0
    %3283 = vmatpush1.msra.mxu0 %v2840
    %3284 = vmatprep.subr.mxu0 0.0
    %3285 = vmatpush1.msra.mxu0 %v2839
    %3286 = vmatprep.subr.mxu0 0.0
    %3287 = vmatpush1.msra.mxu0 %v2838
    %3288 = vmatprep.subr.mxu0 0.0
    %3289 = vmatpush2.msra.mxu0 %v2869
    %3290 = vmatprep.subr.mxu0 0.0
    %3291 = vmatpush2.msra.mxu0 %v2868
    %3292 = vmatprep.subr.mxu0 0.0
    %3293 = vmatpush2.msra.mxu0 %v2867
    %3294 = vmatprep.subr.mxu0 0.0
    %3295 = vmatpush2.msra.mxu0 %v2866
    %3296 = vmatprep.subr.mxu0 0.0
    %3297 = vmatpush2.msra.mxu0 %v2865
    %3298 = vmatprep.subr.mxu0 0.0
    %3299 = vmatpush2.msra.mxu0 %v2864
    %3300 = vmatprep.subr.mxu0 0.0
    %3301 = vmatpush2.msra.mxu0 %v2863
    %3302 = vmatprep.subr.mxu0 0.0
    %3303 = vmatpush2.msra.mxu0 %v2862
    %3304 = vmatprep.subr.mxu0 0.0
    %3305 = vmatpush2.msra.mxu0 %v2861
    %3306 = vmatprep.subr.mxu0 0.0
    %3307 = vmatpush2.msra.mxu0 %v2860
    %3308 = vmatprep.subr.mxu0 0.0
    %3309 = vmatpush2.msra.mxu0 %v2859
    %3310 = vmatprep.subr.mxu0 0.0
    %3311 = vmatpush2.msra.mxu0 %v2858
    %3312 = vmatprep.subr.mxu0 0.0
    %3313 = vmatpush2.msra.mxu0 %v2857
    %3314 = vmatprep.subr.mxu0 0.0
    %3315 = vmatpush2.msra.mxu0 %v2856
    %3316 = vmatprep.subr.mxu0 0.0
    %3317 = vmatpush2.msra.mxu0 %v2855
    %3318 = vmatprep.subr.mxu0 0.0
    %3319 = vmatpush2.msra.mxu0 %v2854
    %3320 = vmatprep.mubr.f32.mxu0 %v2935
    %3321 = vmatmul.mubr.f32.gmra.mxu0 %v2934
    %v3322 = vpop.f32.mrf.mxu0
    %v3323 = vadd.f32 %v3016, %v3322
    %v3324 = vpop.f32.mrf.mxu0
    %3325 = vmatprep.mubr.f32.mxu0 %v2937
    %3326 = vmatmul.mubr.f32.gmra.mxu0 %v2936
    %v3327 = vpop.f32.mrf.mxu0
    %v3328 = vadd.f32 %v3020, %v3327
    %v3329 = vpop.f32.mrf.mxu0
    %3330 = vmatprep.mubr.f32.mxu0 %v2939
    %3331 = vmatmul.mubr.f32.gmra.mxu0 %v2938
    %v3332 = vpop.f32.mrf.mxu0
    %v3333 = vadd.f32 %v3024, %v3332
    %v3334 = vpop.f32.mrf.mxu0
    %3335 = vmatprep.mubr.f32.mxu0 %v2941
    %3336 = vmatmul.mubr.f32.gmra.mxu0 %v2940
    %v3337 = vpop.f32.mrf.mxu0
    %v3338 = vadd.f32 %v3028, %v3337
    %v3339 = vpop.f32.mrf.mxu0
    %3340 = vmatprep.mubr.f32.mxu0 %v2943
    %3341 = vmatmul.mubr.f32.gmra.mxu0 %v2942
    %v3342 = vpop.f32.mrf.mxu0
    %v3343 = vadd.f32 %v3032, %v3342
    %v3344 = vpop.f32.mrf.mxu0
    %3345 = vmatprep.mubr.f32.mxu0 %v2945
    %3346 = vmatmul.mubr.f32.gmra.mxu0 %v2944
    %v3347 = vpop.f32.mrf.mxu0
    %v3348 = vadd.f32 %v3036, %v3347
    %v3349 = vpop.f32.mrf.mxu0
    %3350 = vmatprep.mubr.f32.mxu0 %v2947
    %3351 = vmatmul.mubr.f32.gmra.mxu0 %v2946
    %v3352 = vpop.f32.mrf.mxu0
    %v3353 = vadd.f32 %v3040, %v3352
    %v3354 = vpop.f32.mrf.mxu0
    %3355 = vmatprep.mubr.f32.mxu0 %v2949
    %3356 = vmatmul.mubr.f32.gmra.mxu0 %v2948
    %v3357 = vpop.f32.mrf.mxu0
    %v3358 = vadd.f32 %v3044, %v3357
    %v3359 = vpop.f32.mrf.mxu0
    %3360 = vdwg.mxu0
    %3361 = vmatprep.subr.mxu0 0.0
    %3362 = vmatpush1.msra.mxu0 %v2861
    %3363 = vmatprep.subr.mxu0 0.0
    %3364 = vmatpush1.msra.mxu0 %v2860
    %3365 = vmatprep.subr.mxu0 0.0
    %3366 = vmatpush1.msra.mxu0 %v2859
    %3367 = vmatprep.subr.mxu0 0.0
    %3368 = vmatpush1.msra.mxu0 %v2858
    %3369 = vmatprep.subr.mxu0 0.0
    %3370 = vmatpush1.msra.mxu0 %v2857
    %3371 = vmatprep.subr.mxu0 0.0
    %3372 = vmatpush1.msra.mxu0 %v2856
    %3373 = vmatprep.subr.mxu0 0.0
    %3374 = vmatpush1.msra.mxu0 %v2855
    %3375 = vmatprep.subr.mxu0 0.0
    %3376 = vmatpush1.msra.mxu0 %v2854
    %3377 = vmatprep.subr.mxu0 0.0
    %3378 = vmatpush1.msra.mxu0 %v2853
    %3379 = vmatprep.subr.mxu0 0.0
    %3380 = vmatpush1.msra.mxu0 %v2852
    %3381 = vmatprep.subr.mxu0 0.0
    %3382 = vmatpush1.msra.mxu0 %v2851
    %3383 = vmatprep.subr.mxu0 0.0
    %3384 = vmatpush1.msra.mxu0 %v2850
    %3385 = vmatprep.subr.mxu0 0.0
    %3386 = vmatpush1.msra.mxu0 %v2849
    %3387 = vmatprep.subr.mxu0 0.0
    %3388 = vmatpush1.msra.mxu0 %v2848
    %3389 = vmatprep.subr.mxu0 0.0
    %3390 = vmatpush1.msra.mxu0 %v2847
    %3391 = vmatprep.subr.mxu0 0.0
    %3392 = vmatpush1.msra.mxu0 %v2846
    %3393 = vmatprep.subr.mxu0 0.0
    %3394 = vmatpush2.msra.mxu0 %v2877
    %3395 = vmatprep.subr.mxu0 0.0
    %3396 = vmatpush2.msra.mxu0 %v2876
    %3397 = vmatprep.subr.mxu0 0.0
    %3398 = vmatpush2.msra.mxu0 %v2875
    %3399 = vmatprep.subr.mxu0 0.0
    %3400 = vmatpush2.msra.mxu0 %v2874
    %3401 = vmatprep.subr.mxu0 0.0
    %3402 = vmatpush2.msra.mxu0 %v2873
    %3403 = vmatprep.subr.mxu0 0.0
    %3404 = vmatpush2.msra.mxu0 %v2872
    %3405 = vmatprep.subr.mxu0 0.0
    %3406 = vmatpush2.msra.mxu0 %v2871
    %3407 = vmatprep.subr.mxu0 0.0
    %3408 = vmatpush2.msra.mxu0 %v2870
    %3409 = vmatprep.subr.mxu0 0.0
    %3410 = vmatpush2.msra.mxu0 %v2869
    %3411 = vmatprep.subr.mxu0 0.0
    %3412 = vmatpush2.msra.mxu0 %v2868
    %3413 = vmatprep.subr.mxu0 0.0
    %3414 = vmatpush2.msra.mxu0 %v2867
    %3415 = vmatprep.subr.mxu0 0.0
    %3416 = vmatpush2.msra.mxu0 %v2866
    %3417 = vmatprep.subr.mxu0 0.0
    %3418 = vmatpush2.msra.mxu0 %v2865
    %3419 = vmatprep.subr.mxu0 0.0
    %3420 = vmatpush2.msra.mxu0 %v2864
    %3421 = vmatprep.subr.mxu0 0.0
    %3422 = vmatpush2.msra.mxu0 %v2863
    %3423 = vmatprep.subr.mxu0 0.0
    %3424 = vmatpush2.msra.mxu0 %v2862
    %3425 = vmatprep.mubr.f32.mxu0 %v2951
    %3426 = vmatmul.mubr.f32.gmra.mxu0 %v2950
    %v3427 = vpop.f32.mrf.mxu0
    %v3428 = vadd.f32 %v3016, %v3427
    %v3429 = vpop.f32.mrf.mxu0
    %3430 = vmatprep.mubr.f32.mxu0 %v2953
    %3431 = vmatmul.mubr.f32.gmra.mxu0 %v2952
    %v3432 = vpop.f32.mrf.mxu0
    %v3433 = vadd.f32 %v3020, %v3432
    %v3434 = vpop.f32.mrf.mxu0
    %3435 = vmatprep.mubr.f32.mxu0 %v2955
    %3436 = vmatmul.mubr.f32.gmra.mxu0 %v2954
    %v3437 = vpop.f32.mrf.mxu0
    %v3438 = vadd.f32 %v3024, %v3437
    %v3439 = vpop.f32.mrf.mxu0
    %3440 = vmatprep.mubr.f32.mxu0 %v2957
    %3441 = vmatmul.mubr.f32.gmra.mxu0 %v2956
    %v3442 = vpop.f32.mrf.mxu0
    %v3443 = vadd.f32 %v3028, %v3442
    %v3444 = vpop.f32.mrf.mxu0
    %3445 = vmatprep.mubr.f32.mxu0 %v2959
    %3446 = vmatmul.mubr.f32.gmra.mxu0 %v2958
    %v3447 = vpop.f32.mrf.mxu0
    %v3448 = vadd.f32 %v3032, %v3447
    %v3449 = vpop.f32.mrf.mxu0
    %3450 = vmatprep.mubr.f32.mxu0 %v2961
    %3451 = vmatmul.mubr.f32.gmra.mxu0 %v2960
    %v3452 = vpop.f32.mrf.mxu0
    %v3453 = vadd.f32 %v3036, %v3452
    %v3454 = vpop.f32.mrf.mxu0
    %3455 = vmatprep.mubr.f32.mxu0 %v2963
    %3456 = vmatmul.mubr.f32.gmra.mxu0 %v2962
    %v3457 = vpop.f32.mrf.mxu0
    %v3458 = vadd.f32 %v3040, %v3457
    %v3459 = vpop.f32.mrf.mxu0
    %3460 = vmatprep.mubr.f32.mxu0 %v2965
    %3461 = vmatmul.mubr.f32.gmra.mxu0 %v2964
    %v3462 = vpop.f32.mrf.mxu0
    %v3463 = vadd.f32 %v3044, %v3462
    %v3464 = vpop.f32.mrf.mxu0
    %3465 = vdwg.mxu0
    %3466 = vmatprep.subr.mxu0 0.0
    %3467 = vmatpush1.msra.mxu0 %v2869
    %3468 = vmatprep.subr.mxu0 0.0
    %3469 = vmatpush1.msra.mxu0 %v2868
    %3470 = vmatprep.subr.mxu0 0.0
    %3471 = vmatpush1.msra.mxu0 %v2867
    %3472 = vmatprep.subr.mxu0 0.0
    %3473 = vmatpush1.msra.mxu0 %v2866
    %3474 = vmatprep.subr.mxu0 0.0
    %3475 = vmatpush1.msra.mxu0 %v2865
    %3476 = vmatprep.subr.mxu0 0.0
    %3477 = vmatpush1.msra.mxu0 %v2864
    %3478 = vmatprep.subr.mxu0 0.0
    %3479 = vmatpush1.msra.mxu0 %v2863
    %3480 = vmatprep.subr.mxu0 0.0
    %3481 = vmatpush1.msra.mxu0 %v2862
    %3482 = vmatprep.subr.mxu0 0.0
    %3483 = vmatpush1.msra.mxu0 %v2861
    %3484 = vmatprep.subr.mxu0 0.0
    %3485 = vmatpush1.msra.mxu0 %v2860
    %3486 = vmatprep.subr.mxu0 0.0
    %3487 = vmatpush1.msra.mxu0 %v2859
    %3488 = vmatprep.subr.mxu0 0.0
    %3489 = vmatpush1.msra.mxu0 %v2858
    %3490 = vmatprep.subr.mxu0 0.0
    %3491 = vmatpush1.msra.mxu0 %v2857
    %3492 = vmatprep.subr.mxu0 0.0
    %3493 = vmatpush1.msra.mxu0 %v2856
    %3494 = vmatprep.subr.mxu0 0.0
    %3495 = vmatpush1.msra.mxu0 %v2855
    %3496 = vmatprep.subr.mxu0 0.0
    %3497 = vmatpush1.msra.mxu0 %v2854
    %3498 = vmatprep.subr.mxu0 0.0
    %3499 = vmatpush2.msra.mxu0 %v2885
    %3500 = vmatprep.subr.mxu0 0.0
    %3501 = vmatpush2.msra.mxu0 %v2884
    %3502 = vmatprep.subr.mxu0 0.0
    %3503 = vmatpush2.msra.mxu0 %v2883
    %3504 = vmatprep.subr.mxu0 0.0
    %3505 = vmatpush2.msra.mxu0 %v2882
    %3506 = vmatprep.subr.mxu0 0.0
    %3507 = vmatpush2.msra.mxu0 %v2881
    %3508 = vmatprep.subr.mxu0 0.0
    %3509 = vmatpush2.msra.mxu0 %v2880
    %3510 = vmatprep.subr.mxu0 0.0
    %3511 = vmatpush2.msra.mxu0 %v2879
    %3512 = vmatprep.subr.mxu0 0.0
    %3513 = vmatpush2.msra.mxu0 %v2878
    %3514 = vmatprep.subr.mxu0 0.0
    %3515 = vmatpush2.msra.mxu0 %v2877
    %3516 = vmatprep.subr.mxu0 0.0
    %3517 = vmatpush2.msra.mxu0 %v2876
    %3518 = vmatprep.subr.mxu0 0.0
    %3519 = vmatpush2.msra.mxu0 %v2875
    %3520 = vmatprep.subr.mxu0 0.0
    %3521 = vmatpush2.msra.mxu0 %v2874
    %3522 = vmatprep.subr.mxu0 0.0
    %3523 = vmatpush2.msra.mxu0 %v2873
    %3524 = vmatprep.subr.mxu0 0.0
    %3525 = vmatpush2.msra.mxu0 %v2872
    %3526 = vmatprep.subr.mxu0 0.0
    %3527 = vmatpush2.msra.mxu0 %v2871
    %3528 = vmatprep.subr.mxu0 0.0
    %3529 = vmatpush2.msra.mxu0 %v2870
    %3530 = vmatprep.mubr.f32.mxu0 %v2967
    %3531 = vmatmul.mubr.f32.gmra.mxu0 %v2966
    %v3532 = vpop.f32.mrf.mxu0
    %v3533 = vadd.f32 %v3016, %v3532
    %v3534 = vpop.f32.mrf.mxu0
    %3535 = vmatprep.mubr.f32.mxu0 %v2969
    %3536 = vmatmul.mubr.f32.gmra.mxu0 %v2968
    %v3537 = vpop.f32.mrf.mxu0
    %v3538 = vadd.f32 %v3020, %v3537
    %v3539 = vpop.f32.mrf.mxu0
    %3540 = vmatprep.mubr.f32.mxu0 %v2971
    %3541 = vmatmul.mubr.f32.gmra.mxu0 %v2970
    %v3542 = vpop.f32.mrf.mxu0
    %v3543 = vadd.f32 %v3024, %v3542
    %v3544 = vpop.f32.mrf.mxu0
    %3545 = vmatprep.mubr.f32.mxu0 %v2973
    %3546 = vmatmul.mubr.f32.gmra.mxu0 %v2972
    %v3547 = vpop.f32.mrf.mxu0
    %v3548 = vadd.f32 %v3028, %v3547
    %v3549 = vpop.f32.mrf.mxu0
    %3550 = vmatprep.mubr.f32.mxu0 %v2975
    %3551 = vmatmul.mubr.f32.gmra.mxu0 %v2974
    %v3552 = vpop.f32.mrf.mxu0
    %v3553 = vadd.f32 %v3032, %v3552
    %v3554 = vpop.f32.mrf.mxu0
    %3555 = vmatprep.mubr.f32.mxu0 %v2977
    %3556 = vmatmul.mubr.f32.gmra.mxu0 %v2976
    %v3557 = vpop.f32.mrf.mxu0
    %v3558 = vadd.f32 %v3036, %v3557
    %v3559 = vpop.f32.mrf.mxu0
    %3560 = vmatprep.mubr.f32.mxu0 %v2979
    %3561 = vmatmul.mubr.f32.gmra.mxu0 %v2978
    %v3562 = vpop.f32.mrf.mxu0
    %v3563 = vadd.f32 %v3040, %v3562
    %v3564 = vpop.f32.mrf.mxu0
    %3565 = vmatprep.mubr.f32.mxu0 %v2981
    %3566 = vmatmul.mubr.f32.gmra.mxu0 %v2980
    %v3567 = vpop.f32.mrf.mxu0
    %v3568 = vadd.f32 %v3044, %v3567
    %v3569 = vpop.f32.mrf.mxu0
    %3570 = vdwg.mxu0
    %3571 = vmatprep.subr.mxu0 0.0
    %3572 = vmatpush1.msra.mxu0 %v2877
    %3573 = vmatprep.subr.mxu0 0.0
    %3574 = vmatpush1.msra.mxu0 %v2876
    %3575 = vmatprep.subr.mxu0 0.0
    %3576 = vmatpush1.msra.mxu0 %v2875
    %3577 = vmatprep.subr.mxu0 0.0
    %3578 = vmatpush1.msra.mxu0 %v2874
    %3579 = vmatprep.subr.mxu0 0.0
    %3580 = vmatpush1.msra.mxu0 %v2873
    %3581 = vmatprep.subr.mxu0 0.0
    %3582 = vmatpush1.msra.mxu0 %v2872
    %3583 = vmatprep.subr.mxu0 0.0
    %3584 = vmatpush1.msra.mxu0 %v2871
    %3585 = vmatprep.subr.mxu0 0.0
    %3586 = vmatpush1.msra.mxu0 %v2870
    %3587 = vmatprep.subr.mxu0 0.0
    %3588 = vmatpush1.msra.mxu0 %v2869
    %3589 = vmatprep.subr.mxu0 0.0
    %3590 = vmatpush1.msra.mxu0 %v2868
    %3591 = vmatprep.subr.mxu0 0.0
    %3592 = vmatpush1.msra.mxu0 %v2867
    %3593 = vmatprep.subr.mxu0 0.0
    %3594 = vmatpush1.msra.mxu0 %v2866
    %3595 = vmatprep.subr.mxu0 0.0
    %3596 = vmatpush1.msra.mxu0 %v2865
    %3597 = vmatprep.subr.mxu0 0.0
    %3598 = vmatpush1.msra.mxu0 %v2864
    %3599 = vmatprep.subr.mxu0 0.0
    %3600 = vmatpush1.msra.mxu0 %v2863
    %3601 = vmatprep.subr.mxu0 0.0
    %3602 = vmatpush1.msra.mxu0 %v2862
    %3603 = vmatprep.subr.mxu0 0.0
    %3604 = vmatpush2.msra.mxu0 %v2893
    %3605 = vmatprep.subr.mxu0 0.0
    %3606 = vmatpush2.msra.mxu0 %v2892
    %3607 = vmatprep.subr.mxu0 0.0
    %3608 = vmatpush2.msra.mxu0 %v2891
    %3609 = vmatprep.subr.mxu0 0.0
    %3610 = vmatpush2.msra.mxu0 %v2890
    %3611 = vmatprep.subr.mxu0 0.0
    %3612 = vmatpush2.msra.mxu0 %v2889
    %3613 = vmatprep.subr.mxu0 0.0
    %3614 = vmatpush2.msra.mxu0 %v2888
    %3615 = vmatprep.subr.mxu0 0.0
    %3616 = vmatpush2.msra.mxu0 %v2887
    %3617 = vmatprep.subr.mxu0 0.0
    %3618 = vmatpush2.msra.mxu0 %v2886
    %3619 = vmatprep.subr.mxu0 0.0
    %3620 = vmatpush2.msra.mxu0 %v2885
    %3621 = vmatprep.subr.mxu0 0.0
    %3622 = vmatpush2.msra.mxu0 %v2884
    %3623 = vmatprep.subr.mxu0 0.0
    %3624 = vmatpush2.msra.mxu0 %v2883
    %3625 = vmatprep.subr.mxu0 0.0
    %3626 = vmatpush2.msra.mxu0 %v2882
    %3627 = vmatprep.subr.mxu0 0.0
    %3628 = vmatpush2.msra.mxu0 %v2881
    %3629 = vmatprep.subr.mxu0 0.0
    %3630 = vmatpush2.msra.mxu0 %v2880
    %3631 = vmatprep.subr.mxu0 0.0
    %3632 = vmatpush2.msra.mxu0 %v2879
    %3633 = vmatprep.subr.mxu0 0.0
    %3634 = vmatpush2.msra.mxu0 %v2878
    %3635 = vmatprep.mubr.f32.mxu0 %v2983
    %3636 = vmatmul.mubr.f32.gmra.mxu0 %v2982
    %v3637 = vpop.f32.mrf.mxu0
    %v3638 = vadd.f32 %v3016, %v3637
    %v3639 = vpop.f32.mrf.mxu0
    %3640 = vmatprep.mubr.f32.mxu0 %v2985
    %3641 = vmatmul.mubr.f32.gmra.mxu0 %v2984
    %v3642 = vpop.f32.mrf.mxu0
    %v3643 = vadd.f32 %v3020, %v3642
    %v3644 = vpop.f32.mrf.mxu0
    %3645 = vmatprep.mubr.f32.mxu0 %v2987
    %3646 = vmatmul.mubr.f32.gmra.mxu0 %v2986
    %v3647 = vpop.f32.mrf.mxu0
    %v3648 = vadd.f32 %v3024, %v3647
    %v3649 = vpop.f32.mrf.mxu0
    %3650 = vmatprep.mubr.f32.mxu0 %v2989
    %3651 = vmatmul.mubr.f32.gmra.mxu0 %v2988
    %v3652 = vpop.f32.mrf.mxu0
    %v3653 = vadd.f32 %v3028, %v3652
    %v3654 = vpop.f32.mrf.mxu0
    %3655 = vmatprep.mubr.f32.mxu0 %v2991
    %3656 = vmatmul.mubr.f32.gmra.mxu0 %v2990
    %v3657 = vpop.f32.mrf.mxu0
    %v3658 = vadd.f32 %v3032, %v3657
    %v3659 = vpop.f32.mrf.mxu0
    %3660 = vmatprep.mubr.f32.mxu0 %v2993
    %3661 = vmatmul.mubr.f32.gmra.mxu0 %v2992
    %v3662 = vpop.f32.mrf.mxu0
    %v3663 = vadd.f32 %v3036, %v3662
    %v3664 = vpop.f32.mrf.mxu0
    %3665 = vmatprep.mubr.f32.mxu0 %v2995
    %3666 = vmatmul.mubr.f32.gmra.mxu0 %v2994
    %v3667 = vpop.f32.mrf.mxu0
    %v3668 = vadd.f32 %v3040, %v3667
    %v3669 = vpop.f32.mrf.mxu0
    %3670 = vmatprep.mubr.f32.mxu0 %v2997
    %3671 = vmatmul.mubr.f32.gmra.mxu0 %v2996
    %v3672 = vpop.f32.mrf.mxu0
    %v3673 = vadd.f32 %v3044, %v3672
    %v3674 = vpop.f32.mrf.mxu0
    %3675 = vdwg.mxu0
    %3676 = vmatprep.subr.mxu0 0.0
    %3677 = vmatpush1.msra.mxu0 %v2885
    %3678 = vmatprep.subr.mxu0 0.0
    %3679 = vmatpush1.msra.mxu0 %v2884
    %3680 = vmatprep.subr.mxu0 0.0
    %3681 = vmatpush1.msra.mxu0 %v2883
    %3682 = vmatprep.subr.mxu0 0.0
    %3683 = vmatpush1.msra.mxu0 %v2882
    %3684 = vmatprep.subr.mxu0 0.0
    %3685 = vmatpush1.msra.mxu0 %v2881
    %3686 = vmatprep.subr.mxu0 0.0
    %3687 = vmatpush1.msra.mxu0 %v2880
    %3688 = vmatprep.subr.mxu0 0.0
    %3689 = vmatpush1.msra.mxu0 %v2879
    %3690 = vmatprep.subr.mxu0 0.0
    %3691 = vmatpush1.msra.mxu0 %v2878
    %3692 = vmatprep.subr.mxu0 0.0
    %3693 = vmatpush1.msra.mxu0 %v2877
    %3694 = vmatprep.subr.mxu0 0.0
    %3695 = vmatpush1.msra.mxu0 %v2876
    %3696 = vmatprep.subr.mxu0 0.0
    %3697 = vmatpush1.msra.mxu0 %v2875
    %3698 = vmatprep.subr.mxu0 0.0
    %3699 = vmatpush1.msra.mxu0 %v2874
    %3700 = vmatprep.subr.mxu0 0.0
    %3701 = vmatpush1.msra.mxu0 %v2873
    %3702 = vmatprep.subr.mxu0 0.0
    %3703 = vmatpush1.msra.mxu0 %v2872
    %3704 = vmatprep.subr.mxu0 0.0
    %3705 = vmatpush1.msra.mxu0 %v2871
    %3706 = vmatprep.subr.mxu0 0.0
    %3707 = vmatpush1.msra.mxu0 %v2870
    %3708 = vmatprep.subr.mxu0 0.0
    %3709 = vmatpush2.msra.mxu0 %v2901
    %3710 = vmatprep.subr.mxu0 0.0
    %3711 = vmatpush2.msra.mxu0 %v2900
    %3712 = vmatprep.subr.mxu0 0.0
    %3713 = vmatpush2.msra.mxu0 %v2899
    %3714 = vmatprep.subr.mxu0 0.0
    %3715 = vmatpush2.msra.mxu0 %v2898
    %3716 = vmatprep.subr.mxu0 0.0
    %3717 = vmatpush2.msra.mxu0 %v2897
    %3718 = vmatprep.subr.mxu0 0.0
    %3719 = vmatpush2.msra.mxu0 %v2896
    %3720 = vmatprep.subr.mxu0 0.0
    %3721 = vmatpush2.msra.mxu0 %v2895
    %3722 = vmatprep.subr.mxu0 0.0
    %3723 = vmatpush2.msra.mxu0 %v2894
    %3724 = vmatprep.subr.mxu0 0.0
    %3725 = vmatpush2.msra.mxu0 %v2893
    %3726 = vmatprep.subr.mxu0 0.0
    %3727 = vmatpush2.msra.mxu0 %v2892
    %3728 = vmatprep.subr.mxu0 0.0
    %3729 = vmatpush2.msra.mxu0 %v2891
    %3730 = vmatprep.subr.mxu0 0.0
    %3731 = vmatpush2.msra.mxu0 %v2890
    %3732 = vmatprep.subr.mxu0 0.0
    %3733 = vmatpush2.msra.mxu0 %v2889
    %3734 = vmatprep.subr.mxu0 0.0
    %3735 = vmatpush2.msra.mxu0 %v2888
    %3736 = vmatprep.subr.mxu0 0.0
    %3737 = vmatpush2.msra.mxu0 %v2887
    %3738 = vmatprep.subr.mxu0 0.0
    %3739 = vmatpush2.msra.mxu0 %v2886
    %3740 = vmatprep.mubr.f32.mxu0 %v2999
    %3741 = vmatmul.mubr.f32.gmra.mxu0 %v2998
    %v3742 = vpop.f32.mrf.mxu0
    %v3743 = vadd.f32 %v3016, %v3742
    %v3744 = vpop.f32.mrf.mxu0
    %3745 = vmatprep.mubr.f32.mxu0 %v3001
    %3746 = vmatmul.mubr.f32.gmra.mxu0 %v3000
    %v3747 = vpop.f32.mrf.mxu0
    %v3748 = vadd.f32 %v3020, %v3747
    %v3749 = vpop.f32.mrf.mxu0
    %3750 = vmatprep.mubr.f32.mxu0 %v3003
    %3751 = vmatmul.mubr.f32.gmra.mxu0 %v3002
    %v3752 = vpop.f32.mrf.mxu0
    %v3753 = vadd.f32 %v3024, %v3752
    %v3754 = vpop.f32.mrf.mxu0
    %3755 = vmatprep.mubr.f32.mxu0 %v3005
    %3756 = vmatmul.mubr.f32.gmra.mxu0 %v3004
    %v3757 = vpop.f32.mrf.mxu0
    %v3758 = vadd.f32 %v3028, %v3757
    %v3759 = vpop.f32.mrf.mxu0
    %3760 = vmatprep.mubr.f32.mxu0 %v3007
    %3761 = vmatmul.mubr.f32.gmra.mxu0 %v3006
    %v3762 = vpop.f32.mrf.mxu0
    %v3763 = vadd.f32 %v3032, %v3762
    %v3764 = vpop.f32.mrf.mxu0
    %3765 = vmatprep.mubr.f32.mxu0 %v3009
    %3766 = vmatmul.mubr.f32.gmra.mxu0 %v3008
    %v3767 = vpop.f32.mrf.mxu0
    %v3768 = vadd.f32 %v3036, %v3767
    %v3769 = vpop.f32.mrf.mxu0
    %3770 = vmatprep.mubr.f32.mxu0 %v3011
    %3771 = vmatmul.mubr.f32.gmra.mxu0 %v3010
    %v3772 = vpop.f32.mrf.mxu0
    %v3773 = vadd.f32 %v3040, %v3772
    %v3774 = vpop.f32.mrf.mxu0
    %3775 = vmatprep.mubr.f32.mxu0 %v3013
    %3776 = vmatmul.mubr.f32.gmra.mxu0 %v3012
    %v3777 = vpop.f32.mrf.mxu0
    %v3778 = vadd.f32 %v3044, %v3777
    %v3779 = vpop.f32.mrf.mxu0
    %3780 = vdwg.mxu0
    %v3781 = vmax.f32 %v3113, 0.0
    %v3782 = vmax.f32 %v3118, 0.0
    %v3783 = vmax.f32 %v3123, 0.0
    %v3784 = vmax.f32 %v3128, 0.0
    %v3785 = vmax.f32 %v3133, 0.0
    %v3786 = vmax.f32 %v3138, 0.0
    %v3787 = vmax.f32 %v3143, 0.0
    %v3788 = vmax.f32 %v3148, 0.0
    %v3789 = vmax.f32 %v3218, 0.0
    %v3790 = vmax.f32 %v3223, 0.0
    %v3791 = vmax.f32 %v3228, 0.0
    %v3792 = vmax.f32 %v3233, 0.0
    %v3793 = vmax.f32 %v3238, 0.0
    %v3794 = vmax.f32 %v3243, 0.0
    %v3795 = vmax.f32 %v3248, 0.0
    %v3796 = vmax.f32 %v3253, 0.0
    %v3797 = vmax.f32 %v3323, 0.0
    %v3798 = vmax.f32 %v3328, 0.0
    %v3799 = vmax.f32 %v3333, 0.0
    %v3800 = vmax.f32 %v3338, 0.0
    %v3801 = vmax.f32 %v3343, 0.0
    %v3802 = vmax.f32 %v3348, 0.0
    %v3803 = vmax.f32 %v3353, 0.0
    %v3804 = vmax.f32 %v3358, 0.0
    %v3805 = vmax.f32 %v3428, 0.0
    %v3806 = vmax.f32 %v3433, 0.0
    %v3807 = vmax.f32 %v3438, 0.0
    %v3808 = vmax.f32 %v3443, 0.0
    %v3809 = vmax.f32 %v3448, 0.0
    %v3810 = vmax.f32 %v3453, 0.0
    %v3811 = vmax.f32 %v3458, 0.0
    %v3812 = vmax.f32 %v3463, 0.0
    %v3813 = vmax.f32 %v3533, 0.0
    %v3814 = vmax.f32 %v3538, 0.0
    %v3815 = vmax.f32 %v3543, 0.0
    %v3816 = vmax.f32 %v3548, 0.0
    %v3817 = vmax.f32 %v3553, 0.0
    %v3818 = vmax.f32 %v3558, 0.0
    %v3819 = vmax.f32 %v3563, 0.0
    %v3820 = vmax.f32 %v3568, 0.0
    %v3821 = vmax.f32 %v3638, 0.0
    %v3822 = vmax.f32 %v3643, 0.0
    %v3823 = vmax.f32 %v3648, 0.0
    %v3824 = vmax.f32 %v3653, 0.0
    %v3825 = vmax.f32 %v3658, 0.0
    %v3826 = vmax.f32 %v3663, 0.0
    %v3827 = vmax.f32 %v3668, 0.0
    %v3828 = vmax.f32 %v3673, 0.0
    %v3829 = vmax.f32 %v3743, 0.0
    %v3830 = vmax.f32 %v3748, 0.0
    %v3831 = vmax.f32 %v3753, 0.0
    %v3832 = vmax.f32 %v3758, 0.0
    %v3833 = vmax.f32 %v3763, 0.0
    %v3834 = vmax.f32 %v3768, 0.0
    %v3835 = vmax.f32 %v3773, 0.0
    %v3836 = vmax.f32 %v3778, 0.0
    %v3837 = vld [vmem:[%s5] sm:$0x7f]
    %v3838 = vlaneseq
    %v3839 = vshrl.u32 %v3838, 7
    %v3840 = vsub.s32 0, %v3839
    %v3841 = vrot.slane %v3837, %v3840
    %3843 = vbcast.lane.b32.xlu0 %v3841, 256
    %v3844 = vpop.permute.xlu0 %3843
    %s3846 = sor.u32 256, 8
    %3847 = vbcast.lane.b32.xlu0 %v3841, %s3846
    %v3848 = vpop.permute.xlu0 %3847
    %s3850 = sor.u32 256, 16
    %3851 = vbcast.lane.b32.xlu0 %v3841, %s3850
    %v3852 = vpop.permute.xlu0 %3851
    %s3854 = sor.u32 256, 24
    %3855 = vbcast.lane.b32.xlu0 %v3841, %s3854
    %v3856 = vpop.permute.xlu0 %3855
    %s3858 = sor.u32 256, 32
    %3859 = vbcast.lane.b32.xlu0 %v3841, %s3858
    %v3860 = vpop.permute.xlu0 %3859
    %s3862 = sor.u32 256, 40
    %3863 = vbcast.lane.b32.xlu0 %v3841, %s3862
    %v3864 = vpop.permute.xlu0 %3863
    %s3866 = sor.u32 256, 48
    %3867 = vbcast.lane.b32.xlu0 %v3841, %s3866
    %v3868 = vpop.permute.xlu0 %3867
    %s3870 = sor.u32 256, 56
    %3871 = vbcast.lane.b32.xlu0 %v3841, %s3870
    %v3872 = vpop.permute.xlu0 %3871
    %v3873 = vlaneseq
    %v3874 = vshrl.u32 %v3873, 7
    %v3875 = vsub.s32 1, %v3874
    %v3876 = vrot.slane %v3837, %v3875
    %3878 = vbcast.lane.b32.xlu0 %v3876, 256
    %v3879 = vpop.permute.xlu0 %3878
    %s3881 = sor.u32 256, 8
    %3882 = vbcast.lane.b32.xlu0 %v3876, %s3881
    %v3883 = vpop.permute.xlu0 %3882
    %s3885 = sor.u32 256, 16
    %3886 = vbcast.lane.b32.xlu0 %v3876, %s3885
    %v3887 = vpop.permute.xlu0 %3886
    %s3889 = sor.u32 256, 24
    %3890 = vbcast.lane.b32.xlu0 %v3876, %s3889
    %v3891 = vpop.permute.xlu0 %3890
    %s3893 = sor.u32 256, 32
    %3894 = vbcast.lane.b32.xlu0 %v3876, %s3893
    %v3895 = vpop.permute.xlu0 %3894
    %s3897 = sor.u32 256, 40
    %3898 = vbcast.lane.b32.xlu0 %v3876, %s3897
    %v3899 = vpop.permute.xlu0 %3898
    %s3901 = sor.u32 256, 48
    %3902 = vbcast.lane.b32.xlu0 %v3876, %s3901
    %v3903 = vpop.permute.xlu0 %3902
    %s3905 = sor.u32 256, 56
    %3906 = vbcast.lane.b32.xlu0 %v3876, %s3905
    %v3907 = vpop.permute.xlu0 %3906
    %v3908 = vlaneseq
    %v3909 = vshrl.u32 %v3908, 7
    %v3910 = vsub.s32 2, %v3909
    %v3911 = vrot.slane %v3837, %v3910
    %3913 = vbcast.lane.b32.xlu0 %v3911, 256
    %v3914 = vpop.permute.xlu0 %3913
    %s3916 = sor.u32 256, 8
    %3917 = vbcast.lane.b32.xlu0 %v3911, %s3916
    %v3918 = vpop.permute.xlu0 %3917
    %s3920 = sor.u32 256, 16
    %3921 = vbcast.lane.b32.xlu0 %v3911, %s3920
    %v3922 = vpop.permute.xlu0 %3921
    %s3924 = sor.u32 256, 24
    %3925 = vbcast.lane.b32.xlu0 %v3911, %s3924
    %v3926 = vpop.permute.xlu0 %3925
    %s3928 = sor.u32 256, 32
    %3929 = vbcast.lane.b32.xlu0 %v3911, %s3928
    %v3930 = vpop.permute.xlu0 %3929
    %s3932 = sor.u32 256, 40
    %3933 = vbcast.lane.b32.xlu0 %v3911, %s3932
    %v3934 = vpop.permute.xlu0 %3933
    %s3936 = sor.u32 256, 48
    %3937 = vbcast.lane.b32.xlu0 %v3911, %s3936
    %v3938 = vpop.permute.xlu0 %3937
    %s3940 = sor.u32 256, 56
    %3941 = vbcast.lane.b32.xlu0 %v3911, %s3940
    %v3942 = vpop.permute.xlu0 %3941
    %v3943 = vlaneseq
    %v3944 = vshrl.u32 %v3943, 7
    %v3945 = vsub.s32 3, %v3944
    %v3946 = vrot.slane %v3837, %v3945
    %3948 = vbcast.lane.b32.xlu0 %v3946, 256
    %v3949 = vpop.permute.xlu0 %3948
    %s3951 = sor.u32 256, 8
    %3952 = vbcast.lane.b32.xlu0 %v3946, %s3951
    %v3953 = vpop.permute.xlu0 %3952
    %s3955 = sor.u32 256, 16
    %3956 = vbcast.lane.b32.xlu0 %v3946, %s3955
    %v3957 = vpop.permute.xlu0 %3956
    %s3959 = sor.u32 256, 24
    %3960 = vbcast.lane.b32.xlu0 %v3946, %s3959
    %v3961 = vpop.permute.xlu0 %3960
    %s3963 = sor.u32 256, 32
    %3964 = vbcast.lane.b32.xlu0 %v3946, %s3963
    %v3965 = vpop.permute.xlu0 %3964
    %s3967 = sor.u32 256, 40
    %3968 = vbcast.lane.b32.xlu0 %v3946, %s3967
    %v3969 = vpop.permute.xlu0 %3968
    %s3971 = sor.u32 256, 48
    %3972 = vbcast.lane.b32.xlu0 %v3946, %s3971
    %v3973 = vpop.permute.xlu0 %3972
    %s3975 = sor.u32 256, 56
    %3976 = vbcast.lane.b32.xlu0 %v3946, %s3975
    %v3977 = vpop.permute.xlu0 %3976
    %v3978 = vlaneseq
    %v3979 = vshrl.u32 %v3978, 7
    %v3980 = vsub.s32 4, %v3979
    %v3981 = vrot.slane %v3837, %v3980
    %3983 = vbcast.lane.b32.xlu0 %v3981, 256
    %v3984 = vpop.permute.xlu0 %3983
    %s3986 = sor.u32 256, 8
    %3987 = vbcast.lane.b32.xlu0 %v3981, %s3986
    %v3988 = vpop.permute.xlu0 %3987
    %s3990 = sor.u32 256, 16
    %3991 = vbcast.lane.b32.xlu0 %v3981, %s3990
    %v3992 = vpop.permute.xlu0 %3991
    %s3994 = sor.u32 256, 24
    %3995 = vbcast.lane.b32.xlu0 %v3981, %s3994
    %v3996 = vpop.permute.xlu0 %3995
    %s3998 = sor.u32 256, 32
    %3999 = vbcast.lane.b32.xlu0 %v3981, %s3998
    %v4000 = vpop.permute.xlu0 %3999
    %s4002 = sor.u32 256, 40
    %4003 = vbcast.lane.b32.xlu0 %v3981, %s4002
    %v4004 = vpop.permute.xlu0 %4003
    %s4006 = sor.u32 256, 48
    %4007 = vbcast.lane.b32.xlu0 %v3981, %s4006
    %v4008 = vpop.permute.xlu0 %4007
    %s4010 = sor.u32 256, 56
    %4011 = vbcast.lane.b32.xlu0 %v3981, %s4010
    %v4012 = vpop.permute.xlu0 %4011
    %v4013 = vlaneseq
    %v4014 = vshrl.u32 %v4013, 7
    %v4015 = vsub.s32 5, %v4014
    %v4016 = vrot.slane %v3837, %v4015
    %4018 = vbcast.lane.b32.xlu0 %v4016, 256
    %v4019 = vpop.permute.xlu0 %4018
    %s4021 = sor.u32 256, 8
    %4022 = vbcast.lane.b32.xlu0 %v4016, %s4021
    %v4023 = vpop.permute.xlu0 %4022
    %s4025 = sor.u32 256, 16
    %4026 = vbcast.lane.b32.xlu0 %v4016, %s4025
    %v4027 = vpop.permute.xlu0 %4026
    %s4029 = sor.u32 256, 24
    %4030 = vbcast.lane.b32.xlu0 %v4016, %s4029
    %v4031 = vpop.permute.xlu0 %4030
    %s4033 = sor.u32 256, 32
    %4034 = vbcast.lane.b32.xlu0 %v4016, %s4033
    %v4035 = vpop.permute.xlu0 %4034
    %s4037 = sor.u32 256, 40
    %4038 = vbcast.lane.b32.xlu0 %v4016, %s4037
    %v4039 = vpop.permute.xlu0 %4038
    %s4041 = sor.u32 256, 48
    %4042 = vbcast.lane.b32.xlu0 %v4016, %s4041
    %v4043 = vpop.permute.xlu0 %4042
    %s4045 = sor.u32 256, 56
    %4046 = vbcast.lane.b32.xlu0 %v4016, %s4045
    %v4047 = vpop.permute.xlu0 %4046
    %v4048 = vlaneseq
    %v4049 = vshrl.u32 %v4048, 7
    %v4050 = vsub.s32 6, %v4049
    %v4051 = vrot.slane %v3837, %v4050
    %4053 = vbcast.lane.b32.xlu0 %v4051, 256
    %v4054 = vpop.permute.xlu0 %4053
    %s4056 = sor.u32 256, 8
    %4057 = vbcast.lane.b32.xlu0 %v4051, %s4056
    %v4058 = vpop.permute.xlu0 %4057
    %s4060 = sor.u32 256, 16
    %4061 = vbcast.lane.b32.xlu0 %v4051, %s4060
    %v4062 = vpop.permute.xlu0 %4061
    %s4064 = sor.u32 256, 24
    %4065 = vbcast.lane.b32.xlu0 %v4051, %s4064
    %v4066 = vpop.permute.xlu0 %4065
    %s4068 = sor.u32 256, 32
    %4069 = vbcast.lane.b32.xlu0 %v4051, %s4068
    %v4070 = vpop.permute.xlu0 %4069
    %s4072 = sor.u32 256, 40
    %4073 = vbcast.lane.b32.xlu0 %v4051, %s4072
    %v4074 = vpop.permute.xlu0 %4073
    %s4076 = sor.u32 256, 48
    %4077 = vbcast.lane.b32.xlu0 %v4051, %s4076
    %v4078 = vpop.permute.xlu0 %4077
    %s4080 = sor.u32 256, 56
    %4081 = vbcast.lane.b32.xlu0 %v4051, %s4080
    %v4082 = vpop.permute.xlu0 %4081
    %v4083 = vmul.f32 %v3781, %v3844
    %v4084 = vmul.f32 %v3782, %v3848
    %v4085 = vmul.f32 %v3783, %v3852
    %v4086 = vmul.f32 %v3784, %v3856
    %v4087 = vmul.f32 %v3785, %v3860
    %v4088 = vmul.f32 %v3786, %v3864
    %v4089 = vmul.f32 %v3787, %v3868
    %v4090 = vmul.f32 %v3788, %v3872
    %v4091 = vmul.f32 %v3789, %v3879
    %v4092 = vmul.f32 %v3790, %v3883
    %v4093 = vmul.f32 %v3791, %v3887
    %v4094 = vmul.f32 %v3792, %v3891
    %v4095 = vmul.f32 %v3793, %v3895
    %v4096 = vmul.f32 %v3794, %v3899
    %v4097 = vmul.f32 %v3795, %v3903
    %v4098 = vmul.f32 %v3796, %v3907
    %v4099 = vmul.f32 %v3797, %v3914
    %v4100 = vmul.f32 %v3798, %v3918
    %v4101 = vmul.f32 %v3799, %v3922
    %v4102 = vmul.f32 %v3800, %v3926
    %v4103 = vmul.f32 %v3801, %v3930
    %v4104 = vmul.f32 %v3802, %v3934
    %v4105 = vmul.f32 %v3803, %v3938
    %v4106 = vmul.f32 %v3804, %v3942
    %v4107 = vmul.f32 %v3805, %v3949
    %v4108 = vmul.f32 %v3806, %v3953
    %v4109 = vmul.f32 %v3807, %v3957
    %v4110 = vmul.f32 %v3808, %v3961
    %v4111 = vmul.f32 %v3809, %v3965
    %v4112 = vmul.f32 %v3810, %v3969
    %v4113 = vmul.f32 %v3811, %v3973
    %v4114 = vmul.f32 %v3812, %v3977
    %v4115 = vmul.f32 %v3813, %v3984
    %v4116 = vmul.f32 %v3814, %v3988
    %v4117 = vmul.f32 %v3815, %v3992
    %v4118 = vmul.f32 %v3816, %v3996
    %v4119 = vmul.f32 %v3817, %v4000
    %v4120 = vmul.f32 %v3818, %v4004
    %v4121 = vmul.f32 %v3819, %v4008
    %v4122 = vmul.f32 %v3820, %v4012
    %v4123 = vmul.f32 %v3821, %v4019
    %v4124 = vmul.f32 %v3822, %v4023
    %v4125 = vmul.f32 %v3823, %v4027
    %v4126 = vmul.f32 %v3824, %v4031
    %v4127 = vmul.f32 %v3825, %v4035
    %v4128 = vmul.f32 %v3826, %v4039
    %v4129 = vmul.f32 %v3827, %v4043
    %v4130 = vmul.f32 %v3828, %v4047
    %v4131 = vmul.f32 %v3829, %v4054
    %v4132 = vmul.f32 %v3830, %v4058
    %v4133 = vmul.f32 %v3831, %v4062
    %v4134 = vmul.f32 %v3832, %v4066
    %v4135 = vmul.f32 %v3833, %v4070
    %v4136 = vmul.f32 %v3834, %v4074
    %v4137 = vmul.f32 %v3835, %v4078
    %v4138 = vmul.f32 %v3836, %v4082
    %vm4139 = vcmask 64512
    %v4140 = vsel %vm4139, %v4083, 0.0
    %v4141 = vsel %vm4139, %v4091, 0.0
    %v4142 = vadd.f32 %v4140, %v4141
    %v4143 = vsel %vm4139, %v4099, 0.0
    %v4144 = vadd.f32 %v4142, %v4143
    %v4145 = vsel %vm4139, %v4107, 0.0
    %v4146 = vadd.f32 %v4144, %v4145
    %v4147 = vsel %vm4139, %v4115, 0.0
    %v4148 = vadd.f32 %v4146, %v4147
    %v4149 = vsel %vm4139, %v4123, 0.0
    %v4150 = vadd.f32 %v4148, %v4149
    %v4151 = vsel %vm4139, %v4131, 0.0
    %v4152 = vadd.f32 %v4150, %v4151
    %v4153 = vsel %vm4139, %v4084, 0.0
    %v4154 = vsel %vm4139, %v4092, 0.0
    %v4155 = vadd.f32 %v4153, %v4154
    %v4156 = vsel %vm4139, %v4100, 0.0
    %v4157 = vadd.f32 %v4155, %v4156
    %v4158 = vsel %vm4139, %v4108, 0.0
    %v4159 = vadd.f32 %v4157, %v4158
    %v4160 = vsel %vm4139, %v4116, 0.0
    %v4161 = vadd.f32 %v4159, %v4160
    %v4162 = vsel %vm4139, %v4124, 0.0
    %v4163 = vadd.f32 %v4161, %v4162
    %v4164 = vsel %vm4139, %v4132, 0.0
    %v4165 = vadd.f32 %v4163, %v4164
    %v4166 = vsel %vm4139, %v4085, 0.0
    %v4167 = vsel %vm4139, %v4093, 0.0
    %v4168 = vadd.f32 %v4166, %v4167
    %v4169 = vsel %vm4139, %v4101, 0.0
    %v4170 = vadd.f32 %v4168, %v4169
    %v4171 = vsel %vm4139, %v4109, 0.0
    %v4172 = vadd.f32 %v4170, %v4171
    %v4173 = vsel %vm4139, %v4117, 0.0
    %v4174 = vadd.f32 %v4172, %v4173
    %v4175 = vsel %vm4139, %v4125, 0.0
    %v4176 = vadd.f32 %v4174, %v4175
    %v4177 = vsel %vm4139, %v4133, 0.0
    %v4178 = vadd.f32 %v4176, %v4177
    %v4179 = vsel %vm4139, %v4086, 0.0
    %v4180 = vsel %vm4139, %v4094, 0.0
    %v4181 = vadd.f32 %v4179, %v4180
    %v4182 = vsel %vm4139, %v4102, 0.0
    %v4183 = vadd.f32 %v4181, %v4182
    %v4184 = vsel %vm4139, %v4110, 0.0
    %v4185 = vadd.f32 %v4183, %v4184
    %v4186 = vsel %vm4139, %v4118, 0.0
    %v4187 = vadd.f32 %v4185, %v4186
    %v4188 = vsel %vm4139, %v4126, 0.0
    %v4189 = vadd.f32 %v4187, %v4188
    %v4190 = vsel %vm4139, %v4134, 0.0
    %v4191 = vadd.f32 %v4189, %v4190
    %v4192 = vsel %vm4139, %v4087, 0.0
    %v4193 = vsel %vm4139, %v4095, 0.0
    %v4194 = vadd.f32 %v4192, %v4193
    %v4195 = vsel %vm4139, %v4103, 0.0
    %v4196 = vadd.f32 %v4194, %v4195
    %v4197 = vsel %vm4139, %v4111, 0.0
    %v4198 = vadd.f32 %v4196, %v4197
    %v4199 = vsel %vm4139, %v4119, 0.0
    %v4200 = vadd.f32 %v4198, %v4199
    %v4201 = vsel %vm4139, %v4127, 0.0
    %v4202 = vadd.f32 %v4200, %v4201
    %v4203 = vsel %vm4139, %v4135, 0.0
    %v4204 = vadd.f32 %v4202, %v4203
    %v4205 = vsel %vm4139, %v4088, 0.0
    %v4206 = vsel %vm4139, %v4096, 0.0
    %v4207 = vadd.f32 %v4205, %v4206
    %v4208 = vsel %vm4139, %v4104, 0.0
    %v4209 = vadd.f32 %v4207, %v4208
    %v4210 = vsel %vm4139, %v4112, 0.0
    %v4211 = vadd.f32 %v4209, %v4210
    %v4212 = vsel %vm4139, %v4120, 0.0
    %v4213 = vadd.f32 %v4211, %v4212
    %v4214 = vsel %vm4139, %v4128, 0.0
    %v4215 = vadd.f32 %v4213, %v4214
    %v4216 = vsel %vm4139, %v4136, 0.0
    %v4217 = vadd.f32 %v4215, %v4216
    %v4218 = vsel %vm4139, %v4089, 0.0
    %v4219 = vsel %vm4139, %v4097, 0.0
    %v4220 = vadd.f32 %v4218, %v4219
    %v4221 = vsel %vm4139, %v4105, 0.0
    %v4222 = vadd.f32 %v4220, %v4221
    %v4223 = vsel %vm4139, %v4113, 0.0
    %v4224 = vadd.f32 %v4222, %v4223
    %v4225 = vsel %vm4139, %v4121, 0.0
    %v4226 = vadd.f32 %v4224, %v4225
    %v4227 = vsel %vm4139, %v4129, 0.0
    %v4228 = vadd.f32 %v4226, %v4227
    %v4229 = vsel %vm4139, %v4137, 0.0
    %v4230 = vadd.f32 %v4228, %v4229
    %v4231 = vsel %vm4139, %v4090, 0.0
    %v4232 = vsel %vm4139, %v4098, 0.0
    %v4233 = vadd.f32 %v4231, %v4232
    %v4234 = vsel %vm4139, %v4106, 0.0
    %v4235 = vadd.f32 %v4233, %v4234
    %v4236 = vsel %vm4139, %v4114, 0.0
    %v4237 = vadd.f32 %v4235, %v4236
    %v4238 = vsel %vm4139, %v4122, 0.0
    %v4239 = vadd.f32 %v4237, %v4238
    %v4240 = vsel %vm4139, %v4130, 0.0
    %v4241 = vadd.f32 %v4239, %v4240
    %v4242 = vsel %vm4139, %v4138, 0.0
    %v4243 = vadd.f32 %v4241, %v4242
    %v4244 = vsel %vm4139, %v4152, 0.0
    %v4245 = vsel %vm4139, %v4165, 0.0
    %v4246 = vadd.f32 %v4244, %v4245
    %v4247 = vsel %vm4139, %v4178, 0.0
    %v4248 = vadd.f32 %v4246, %v4247
    %v4249 = vsel %vm4139, %v4191, 0.0
    %v4250 = vadd.f32 %v4248, %v4249
    %v4251 = vsel %vm4139, %v4204, 0.0
    %v4252 = vadd.f32 %v4250, %v4251
    %v4253 = vsel %vm4139, %v4217, 0.0
    %v4254 = vadd.f32 %v4252, %v4253
    %v4255 = vsel %vm4139, %v4230, 0.0
    %v4256 = vadd.f32 %v4254, %v4255
    %v4257 = vsel %vm4139, %v4243, 0.0
    %v4258 = vadd.f32 %v4256, %v4257
    %v4259 = vrot.slane %v4258, 4
    %v4260 = vadd.f32 %v4258, %v4259
    %v4261 = vrot.slane %v4260, 2
    %v4262 = vadd.f32 %v4260, %v4261
    %v4263 = vrot.slane %v4262, 1
    %v4264 = vadd.f32 %v4262, %v4263
    %s4265 = sld [smem:[#allocation2]]
    %v4266 = vstv %s4265
    %v4267 = vadd.f32 %v4264, %v4266
    %vm4268 = vcmask 57344
    %4269 = vst.msk [vmem:[#allocation6] sm:$0x1] %vm4268, %v4267
    // Predicated region
    $region34: #{tpu_custom_call.1} parent=1 // pred_check
      _
    $region35: #{tpu_custom_call.1} parent=1 // pred_check_branch
      %4271 = sbr.rel (0) target = $region37
    $region36: #{tpu_custom_call.1} parent=1 // pred_region
      %s4273 = ssub.s32 16, 16
      %4274 = vsyncadd [#allocation5], %s4273
      %s4276 = sshll.u32 [#allocation6], 4
      %s4277 = int_to_ptr.vmem [resolvable:$true] %s4276
      %4279 = dma.vmem_to_hbm [thread:$0]  %s4277, 16, %s7, [#allocation5]
    $region37: #{tpu_custom_call.1} parent=1 // pred_fallthru
      _
    // Predicated region
    $region38: #{tpu_custom_call.1} parent=1 // pred_check
      _
    $region39: #{tpu_custom_call.1} parent=1 // pred_check_branch
      %4281 = sbr.rel (0) target = $region41
    $region40: #{tpu_custom_call.1} parent=1 // pred_region
      %4282 = dma.done [#allocation5], 16
    $region41: #{tpu_custom_call.1} parent=1 // pred_fallthru
      _
    %4283 = vsyncpa [#allocation4], 1
    %4284 = vsyncpa [#allocation5], 1

</llo_original>
